<compile_context>
chip_gen: v7x
topology: tpu7x:2x2x1
jax: 0.10.0
libtpu: 0.0.40
codegen_flags: <defaults>
</compile_context>

<pallas_src>
import functools
import math

import jax
import jax.numpy as jnp
import numpy as np
from jax import lax
from jax.experimental import pallas as pl
from jax.experimental.pallas import tpu as pltpu

EPS = 1e-5                       # torch nn.LayerNorm default
VMEM_LIMIT = 32 * 1024 * 1024    # explicit scoped-VMEM budget (fits v5e/v6e/v7x)


def _layernorm(x):
    mu = jnp.mean(x, axis=-1, keepdims=True)
    var = jnp.mean((x - mu) ** 2, axis=-1, keepdims=True)
    return (x - mu) * lax.rsqrt(var + EPS)


def _pick_group(batch, seq):
    """Batch elements per grid step: aim for >=128 MXU rows, keep rows sublane-aligned."""
    target = max(1, (128 + seq - 1) // seq)
    gb = min(batch, target)
    while batch % gb != 0:
        gb -= 1
    if (gb * seq) % 8 != 0 and gb != batch:
        gb = batch   # full row block is always a legal BlockSpec
    return gb


# --------------------------------------------------------------------------
# Fused encoder stack: grid = (row_groups, num_layers); activation resident
# in VMEM scratch across the layer axis; per-layer weights streamed in.
# --------------------------------------------------------------------------
def _encoder_stack_kernel(heads, depth, gb, seq,
                          x_ref, wqkv_ref, w1_ref, b1_ref, w2_ref, b2_ref,
                          o_ref, xs_ref, attn_ref):
    layer = pl.program_id(1)
    D = heads * depth
    rows = gb * seq

    @pl.when(layer == 0)
    def _():                                   # load this row group's activation once
        xs_ref[...] = x_ref[...]

    x = xs_ref[...]                            # (rows, D) f32, resident across layers

    # ---- fused QKV projection: one (rows, D) @ (D, 3D) bf16 matmul, f32 accumulate ----
    qkv = jnp.dot(x.astype(jnp.bfloat16), wqkv_ref[0],
                  preferred_element_type=jnp.float32)            # (rows, 3D) f32
    qkv3 = qkv.reshape(gb, seq, 3 * D)                           # leading-dim split only

    inv_sqrt_dk = 1.0 / math.sqrt(depth)
    # Heads handled with a static loop (depth << 128 lanes at these sizes); the batch
    # dimension is batched inside each einsum and head outputs go straight into a VMEM
    # scratch slice (no concatenate / lane relayout at the end).
    for h in range(heads):
        lo = h * depth
        qh = qkv3[:, :, lo:lo + depth].astype(jnp.bfloat16)          # (gb, S, dh)
        kh = qkv3[:, :, D + lo:D + lo + depth].astype(jnp.bfloat16)
        vh = qkv3[:, :, 2 * D + lo:2 * D + lo + depth].astype(jnp.bfloat16)

        s = jnp.einsum('bqd,bkd->bqk', qh, kh,
                       preferred_element_type=jnp.float32) * inv_sqrt_dk
        # softmax over keys (the uniform 1e9 "mask" of the torch code cancels here)
        s = s - jnp.max(s, axis=-1, keepdims=True)
        p = jnp.exp(s)
        p = p * pl.reciprocal(jnp.sum(p, axis=-1, keepdims=True), approx=True)
        oh = jnp.einsum('bqk,bkd->bqd', p.astype(jnp.bfloat16), vh,
                        preferred_element_type=jnp.float32)          # (gb, S, dh)
        attn_ref[:, :, lo:lo + depth] = oh

    x1 = _layernorm(x + attn_ref[...].reshape(rows, D))

    # ---- feed-forward on the flattened row block (bf16 matmuls, f32 accumulate) ----
    h1 = jnp.dot(x1.astype(jnp.bfloat16), w1_ref[0],
                 preferred_element_type=jnp.float32) + b1_ref[0]
    h1 = jnp.maximum(h1, 0.0)
    ffn = jnp.dot(h1.astype(jnp.bfloat16), w2_ref[0],
                  preferred_element_type=jnp.float32) + b2_ref[0]

    x2 = _layernorm(x1 + ffn)
    xs_ref[...] = x2                           # carry activation to the next layer

    @pl.when(layer == pl.num_programs(1) - 1)
    def _():
        o_ref[...] = x2


def encoder_stack(x2d, wqkv, w1, b1, w2, b2, *, heads, batch, seq):
    M, D = x2d.shape
    assert D % heads == 0, "latent_dim must be divisible by heads"
    assert M == batch * seq
    L = wqkv.shape[0]
    dff = w1.shape[2]
    depth = D // heads
    gb = _pick_group(batch, seq)
    rows = gb * seq
    n_groups = batch // gb

    kernel = functools.partial(_encoder_stack_kernel, heads, depth, gb, seq)
    return pl.pallas_call(
        kernel,
        out_shape=jax.ShapeDtypeStruct((M, D), jnp.float32),
        grid_spec=pltpu.PrefetchScalarGridSpec(
            num_scalar_prefetch=0,
            grid=(n_groups, L),
            in_specs=[
                pl.BlockSpec((rows, D), lambda g, l: (g, 0)),
                pl.BlockSpec((1, D, 3 * D), lambda g, l: (l, 0, 0)),
                pl.BlockSpec((1, D, dff), lambda g, l: (l, 0, 0)),
                pl.BlockSpec((1, 1, dff), lambda g, l: (l, 0, 0)),
                pl.BlockSpec((1, dff, D), lambda g, l: (l, 0, 0)),
                pl.BlockSpec((1, 1, D), lambda g, l: (l, 0, 0)),
            ],
            out_specs=pl.BlockSpec((rows, D), lambda g, l: (g, 0)),
            scratch_shapes=[pltpu.VMEM((rows, D), jnp.float32),       # resident activation
                            pltpu.VMEM((gb, seq, D), jnp.float32)]),  # attention output
        compiler_params=pltpu.CompilerParams(
            dimension_semantics=("parallel", "arbitrary"),
            vmem_limit_bytes=VMEM_LIMIT),
    )(x2d, wqkv, w1, b1, w2, b2)


# --------------------------------------------------------------------------
# Final vocabulary projection: tiled over (row tiles, vocab tiles).
# --------------------------------------------------------------------------
def _final_kernel(x_ref, w_ref, b_ref, o_ref):
    o_ref[...] = (jnp.dot(x_ref[...].astype(jnp.bfloat16), w_ref[...],
                          preferred_element_type=jnp.float32) + b_ref[...])


def final_proj(x2d, w, b):
    M, D = x2d.shape
    V = w.shape[1]
    tm = 256 if M % 256 == 0 else (128 if M % 128 == 0 else M)
    tv = 512 if V % 512 == 0 else (128 if V % 128 == 0 else V)
    return pl.pallas_call(
        _final_kernel,
        out_shape=jax.ShapeDtypeStruct((M, V), jnp.float32),
        grid_spec=pltpu.PrefetchScalarGridSpec(
            num_scalar_prefetch=0,
            grid=(M // tm, V // tv),
            in_specs=[pl.BlockSpec((tm, D), lambda i, j: (i, 0)),
                      pl.BlockSpec((D, tv), lambda i, j: (0, j)),
                      pl.BlockSpec((1, tv), lambda i, j: (0, j))],
            out_specs=pl.BlockSpec((tm, tv), lambda i, j: (i, j))),
        compiler_params=pltpu.CompilerParams(
            dimension_semantics=("parallel", "parallel"),
            vmem_limit_bytes=VMEM_LIMIT),
    )(x2d, w, b)


# --------------------------------------------------------------------------
# Parameter setup (deterministic), positional encoding, full forward.
# --------------------------------------------------------------------------
def positional_encoding(max_pos, d):
    position = np.arange(max_pos).reshape((max_pos, 1))
    dm = np.arange(d).reshape((1, d))
    angle_rates = 1.0 / np.power(10000, 2 * (dm // 2) / np.float32(d))
    angle_rads = position * angle_rates
    angle_rads[:, 0::2] = np.sin(angle_rads[:, 0::2])
    angle_rads[:, 1::2] = np.cos(angle_rads[:, 1::2])
    return jnp.asarray(angle_rads[np.newaxis, ...], dtype=jnp.float32)


def init_params(key, vocab, d, num_layers, dff=512):
    keys = jax.random.split(key, 8)

    def lin(k, shape, fan_in):
        bound = 1.0 / math.sqrt(fan_in)
        return jax.random.uniform(k, shape, jnp.float32, -bound, bound)

    emb = jax.random.normal(keys[0], (vocab, d), jnp.float32) * 0.5
    emb = emb.at[0].set(0.0)                                      # padding_idx=0

    return dict(
        emb=emb,
        pos=positional_encoding(1000, d),
        wqkv=lin(keys[1], (num_layers, d, 3 * d), d),             # [wq | wk | wv]
        w1=lin(keys[2], (num_layers, d, dff), d),
        b1=lin(keys[3], (num_layers, 1, dff), d),
        w2=lin(keys[4], (num_layers, dff, d), dff),
        b2=lin(keys[5], (num_layers, 1, d), dff),
        wf=lin(keys[6], (d, vocab), d),
        bf=lin(keys[7], (1, vocab), d),
    )


def transformer_forward(tokens, params, *, heads):
    B, S = tokens.shape
    x = params['emb'][tokens]                        # embedding gather (XLA glue)
    x = x + params['pos'][:, :S, :]                  # positional encoding (glue)
    # TODO(synk): dropout_em / dropout_attn / dropout_ffn treated as identity.
    D = x.shape[-1]
    x2d = x.reshape(B * S, D)                        # flatten (B,S) -> M rows for the MXU
    out2d = encoder_stack(
        x2d,
        params['wqkv'].astype(jnp.bfloat16),
        params['w1'].astype(jnp.bfloat16), params['b1'],
        params['w2'].astype(jnp.bfloat16), params['b2'],
        heads=heads, batch=B, seq=S)
    logits2d = final_proj(out2d, params['wf'].astype(jnp.bfloat16), params['bf'])
    return logits2d.reshape(B, S, -1)


# Pure-JAX f32 reference for correctness sanity check.
def reference_forward(tokens, params, *, heads):
    def ln(x):
        mu = jnp.mean(x, -1, keepdims=True)
        var = jnp.mean((x - mu) ** 2, -1, keepdims=True)
        return (x - mu) / jnp.sqrt(var + EPS)

    x = params['emb'][tokens]
    B, S, D = x.shape
    depth = D // heads
    x = x + params['pos'][:, :S, :]
    L = params['wqkv'].shape[0]
    for l in range(L):
        wq = params['wqkv'][l, :, :D]
        wk = params['wqkv'][l, :, D:2 * D]
        wv = params['wqkv'][l, :, 2 * D:]
        q = (x @ wq).reshape(B, S, heads, depth).transpose(0, 2, 1, 3)
        k = (x @ wk).reshape(B, S, heads, depth).transpose(0, 2, 1, 3)
        v = (x @ wv).reshape(B, S, heads, depth).transpose(0, 2, 1, 3)
        s = jnp.einsum('bhqd,bhkd->bhqk', q, k) / math.sqrt(depth)
        p = jax.nn.softmax(s, axis=-1)
        attn = jnp.einsum('bhqk,bhkd->bhqd', p, v).transpose(0, 2, 1, 3).reshape(B, S, D)
        x = ln(x + attn)
        f = jnp.maximum(x @ params['w1'][l] + params['b1'][l], 0.0) @ params['w2'][l] \
            + params['b2'][l]
        x = ln(x + f)
    return x @ params['wf'] + params['bf']


if __name__ == "__main__":
    vocab_size, em_dim, num_layers, heads = 64, 32, 2, 8
    B, S = 2, 8

    key = jax.random.PRNGKey(0)
    k_tok, k_par = jax.random.split(key)
    tokens = jax.random.randint(k_tok, (B, S), 0, vocab_size, dtype=jnp.int32)
    params = init_params(k_par, vocab_size, em_dim, num_layers)

    out = transformer_forward(tokens, params, heads=heads)
    out = jax.block_until_ready(out)
    assert out.shape == (B, S, vocab_size), out.shape

    ref = reference_forward(tokens, params, heads=heads)
    max_diff = float(jnp.max(jnp.abs(out - ref)))
    # Kernel uses bf16 matmul operands (f32 accumulation) vs. the pure-f32 reference;
    # expected discrepancy is ~1e-2 level at these sizes.
    assert max_diff < 1e-1, f"max abs diff vs reference: {max_diff}"

    print("KERNEL_OK")
</pallas_src>

<mosaic_0001>
module attributes {stable_mosaic.version = 11 : i64} {
  func.func @_encoder_stack_kernel(%arg0: i32, %arg1: i32, %arg2: memref<16x32xf32, #tpu.memory_space<vmem>>, %arg3: memref<1x32x96xbf16, #tpu.memory_space<vmem>>, %arg4: memref<1x32x512xbf16, #tpu.memory_space<vmem>>, %arg5: memref<1x1x512xf32, #tpu.memory_space<vmem>>, %arg6: memref<1x512x32xbf16, #tpu.memory_space<vmem>>, %arg7: memref<1x1x32xf32, #tpu.memory_space<vmem>>, %arg8: memref<16x32xf32, #tpu.memory_space<vmem>>, %arg9: memref<16x32xf32, #tpu.memory_space<vmem>>, %arg10: memref<2x8x32xf32, #tpu.memory_space<vmem>>) attributes {dimension_semantics = [#tpu.dimension_semantics<parallel>, #tpu.dimension_semantics<arbitrary>], iteration_bounds = array<i64: 1, 2>, scalar_prefetch = 0 : i64, scratch_operands = 2 : i64, tpu.core_type = #tpu.core_type<tc>, window_params = [{transform_indices = @transform_0, window_bounds = array<i64: 16, 32>}, {transform_indices = @transform_1, window_bounds = array<i64: 1, 32, 96>}, {transform_indices = @transform_2, window_bounds = array<i64: 1, 32, 512>}, {transform_indices = @transform_3, window_bounds = array<i64: 1, 1, 512>}, {transform_indices = @transform_4, window_bounds = array<i64: 1, 512, 32>}, {transform_indices = @transform_5, window_bounds = array<i64: 1, 1, 32>}, {transform_indices = @transform_6, window_bounds = array<i64: 16, 32>}]} {
    %c0_i32 = arith.constant 0 : i32
    %0 = arith.cmpi eq, %arg1, %c0_i32 : i32
    %1 = arith.extui %0 : i1 to i32
    %c0_i32_0 = arith.constant 0 : i32
    %2 = arith.cmpi ne, %1, %c0_i32_0 : i32
    scf.if %2 {
      %c0_93 = arith.constant 0 : index
      %c0_94 = arith.constant 0 : index
      %247 = vector.load %arg2[%c0_93, %c0_94] : memref<16x32xf32, #tpu.memory_space<vmem>>, vector<16x32xf32>
      %c0_95 = arith.constant 0 : index
      %c0_96 = arith.constant 0 : index
      %248 = vector.load %arg9[%c0_95, %c0_96] : memref<16x32xf32, #tpu.memory_space<vmem>>, vector<16x32xf32>
      tpu.vector_store %arg9[%c0_95, %c0_96], %247 {strides = array<i32>} : memref<16x32xf32, #tpu.memory_space<vmem>>, vector<16x32xf32>,
    } else {
    }
    %c0 = arith.constant 0 : index
    %c0_1 = arith.constant 0 : index
    %3 = vector.load %arg9[%c0, %c0_1] : memref<16x32xf32, #tpu.memory_space<vmem>>, vector<16x32xf32>
    %4 = arith.truncf %3 : vector<16x32xf32> to vector<16x32xbf16>
    %c0_2 = arith.constant 0 : index
    %c0_3 = arith.constant 0 : index
    %c0_4 = arith.constant 0 : index
    %5 = vector.load %arg3[%c0_2, %c0_3, %c0_4] : memref<1x32x96xbf16, #tpu.memory_space<vmem>>, vector<1x32x96xbf16>
    %6 = vector.shape_cast %5 : vector<1x32x96xbf16> to vector<32x96xbf16>
    %cst = arith.constant dense<0.000000e+00> : vector<16x96xf32>
    %7 = tpu.matmul %4, %6, %cst {dimension_numbers = #tpu.dot_dimension_numbers<[1], [0], [0], [1], [0, 0, 1, 1], [], []>} : vector<16x32xbf16>, vector<32x96xbf16>, vector<16x96xf32> -> vector<16x96xf32>
    %8 = vector.shape_cast %7 : vector<16x96xf32> to vector<2x8x96xf32>
    %9 = vector.extract_strided_slice %8 {offsets = [0, 0, 0], sizes = [2, 8, 4], strides = [1, 1, 1]} : vector<2x8x96xf32> to vector<2x8x4xf32>
    %10 = arith.truncf %9 : vector<2x8x4xf32> to vector<2x8x4xbf16>
    %11 = vector.extract_strided_slice %8 {offsets = [0, 0, 32], sizes = [2, 8, 4], strides = [1, 1, 1]} : vector<2x8x96xf32> to vector<2x8x4xf32>
    %12 = arith.truncf %11 : vector<2x8x4xf32> to vector<2x8x4xbf16>
    %13 = vector.extract_strided_slice %8 {offsets = [0, 0, 64], sizes = [2, 8, 4], strides = [1, 1, 1]} : vector<2x8x96xf32> to vector<2x8x4xf32>
    %14 = arith.truncf %13 : vector<2x8x4xf32> to vector<2x8x4xbf16>
    "tpu.trace_start"() <{level = 10 : i32, message = "bqd,bkd->bqk"}> : () -> ()
    %cst_5 = arith.constant dense<0.000000e+00> : vector<2x8x8xf32>
    %15 = tpu.matmul %10, %12, %cst_5 {dimension_numbers = #tpu.dot_dimension_numbers<[2], [2], [1], [1], [0, 0, 0, 1, 1, 1], [0], [0]>} : vector<2x8x4xbf16>, vector<2x8x4xbf16>, vector<2x8x8xf32> -> vector<2x8x8xf32>
    "tpu.trace_stop"() : () -> ()
    %cst_6 = arith.constant 5.000000e-01 : f32
    %16 = vector.broadcast %cst_6 : f32 to vector<2x8x8xf32>
    %17 = arith.mulf %15, %16 : vector<2x8x8xf32>
    %cst_7 = arith.constant dense<0xFF800000> : vector<2x8xf32>
    %18 = vector.multi_reduction <maximumf>, %17, %cst_7 [2] : vector<2x8x8xf32> to vector<2x8xf32>
    %19 = vector.shape_cast %18 : vector<2x8xf32> to vector<2x8x1xf32>
    %20 = vector.broadcast %19 : vector<2x8x1xf32> to vector<2x8x8xf32>
    %21 = arith.subf %17, %20 : vector<2x8x8xf32>
    %22 = math.exp %21 : vector<2x8x8xf32>
    %cst_8 = arith.constant dense<0.000000e+00> : vector<2x8xf32>
    %23 = vector.multi_reduction <add>, %22, %cst_8 [2] : vector<2x8x8xf32> to vector<2x8xf32>
    %24 = vector.shape_cast %23 : vector<2x8xf32> to vector<2x8x1xf32>
    %25 = tpu.reciprocal %24 {approx = true} : vector<2x8x1xf32> -> vector<2x8x1xf32>
    %26 = vector.broadcast %25 : vector<2x8x1xf32> to vector<2x8x8xf32>
    %27 = arith.mulf %22, %26 : vector<2x8x8xf32>
    %28 = arith.truncf %27 : vector<2x8x8xf32> to vector<2x8x8xbf16>
    "tpu.trace_start"() <{level = 10 : i32, message = "bqk,bkd->bqd"}> : () -> ()
    %cst_9 = arith.constant dense<0.000000e+00> : vector<2x8x4xf32>
    %29 = tpu.matmul %28, %14, %cst_9 {dimension_numbers = #tpu.dot_dimension_numbers<[2], [1], [1], [2], [0, 0, 0, 1, 1, 2], [0], [0]>} : vector<2x8x8xbf16>, vector<2x8x4xbf16>, vector<2x8x4xf32> -> vector<2x8x4xf32>
    "tpu.trace_stop"() : () -> ()
    %c0_10 = arith.constant 0 : index
    %c0_11 = arith.constant 0 : index
    %c0_12 = arith.constant 0 : index
    %30 = vector.load %arg10[%c0_10, %c0_11, %c0_12] : memref<2x8x32xf32, #tpu.memory_space<vmem>>, vector<2x8x4xf32>
    tpu.vector_store %arg10[%c0_10, %c0_11, %c0_12], %29 {strides = array<i32>} : memref<2x8x32xf32, #tpu.memory_space<vmem>>, vector<2x8x4xf32>,
    %31 = vector.extract_strided_slice %8 {offsets = [0, 0, 4], sizes = [2, 8, 4], strides = [1, 1, 1]} : vector<2x8x96xf32> to vector<2x8x4xf32>
    %32 = arith.truncf %31 : vector<2x8x4xf32> to vector<2x8x4xbf16>
    %33 = vector.extract_strided_slice %8 {offsets = [0, 0, 36], sizes = [2, 8, 4], strides = [1, 1, 1]} : vector<2x8x96xf32> to vector<2x8x4xf32>
    %34 = arith.truncf %33 : vector<2x8x4xf32> to vector<2x8x4xbf16>
    %35 = vector.extract_strided_slice %8 {offsets = [0, 0, 68], sizes = [2, 8, 4], strides = [1, 1, 1]} : vector<2x8x96xf32> to vector<2x8x4xf32>
    %36 = arith.truncf %35 : vector<2x8x4xf32> to vector<2x8x4xbf16>
    "tpu.trace_start"() <{level = 10 : i32, message = "bqd,bkd->bqk"}> : () -> ()
    %cst_13 = arith.constant dense<0.000000e+00> : vector<2x8x8xf32>
    %37 = tpu.matmul %32, %34, %cst_13 {dimension_numbers = #tpu.dot_dimension_numbers<[2], [2], [1], [1], [0, 0, 0, 1, 1, 1], [0], [0]>} : vector<2x8x4xbf16>, vector<2x8x4xbf16>, vector<2x8x8xf32> -> vector<2x8x8xf32>
    "tpu.trace_stop"() : () -> ()
    %cst_14 = arith.constant 5.000000e-01 : f32
    %38 = vector.broadcast %cst_14 : f32 to vector<2x8x8xf32>
    %39 = arith.mulf %37, %38 : vector<2x8x8xf32>
    %cst_15 = arith.constant dense<0xFF800000> : vector<2x8xf32>
    %40 = vector.multi_reduction <maximumf>, %39, %cst_15 [2] : vector<2x8x8xf32> to vector<2x8xf32>
    %41 = vector.shape_cast %40 : vector<2x8xf32> to vector<2x8x1xf32>
    %42 = vector.broadcast %41 : vector<2x8x1xf32> to vector<2x8x8xf32>
    %43 = arith.subf %39, %42 : vector<2x8x8xf32>
    %44 = math.exp %43 : vector<2x8x8xf32>
    %cst_16 = arith.constant dense<0.000000e+00> : vector<2x8xf32>
    %45 = vector.multi_reduction <add>, %44, %cst_16 [2] : vector<2x8x8xf32> to vector<2x8xf32>
    %46 = vector.shape_cast %45 : vector<2x8xf32> to vector<2x8x1xf32>
    %47 = tpu.reciprocal %46 {approx = true} : vector<2x8x1xf32> -> vector<2x8x1xf32>
    %48 = vector.broadcast %47 : vector<2x8x1xf32> to vector<2x8x8xf32>
    %49 = arith.mulf %44, %48 : vector<2x8x8xf32>
    %50 = arith.truncf %49 : vector<2x8x8xf32> to vector<2x8x8xbf16>
    "tpu.trace_start"() <{level = 10 : i32, message = "bqk,bkd->bqd"}> : () -> ()
    %cst_17 = arith.constant dense<0.000000e+00> : vector<2x8x4xf32>
    %51 = tpu.matmul %50, %36, %cst_17 {dimension_numbers = #tpu.dot_dimension_numbers<[2], [1], [1], [2], [0, 0, 0, 1, 1, 2], [0], [0]>} : vector<2x8x8xbf16>, vector<2x8x4xbf16>, vector<2x8x4xf32> -> vector<2x8x4xf32>
    "tpu.trace_stop"() : () -> ()
    %c0_18 = arith.constant 0 : index
    %c0_19 = arith.constant 0 : index
    %c4 = arith.constant 4 : index
    %52 = vector.load %arg10[%c0_18, %c0_19, %c4] : memref<2x8x32xf32, #tpu.memory_space<vmem>>, vector<2x8x4xf32>
    tpu.vector_store %arg10[%c0_18, %c0_19, %c4], %51 {strides = array<i32>} : memref<2x8x32xf32, #tpu.memory_space<vmem>>, vector<2x8x4xf32>,
    %53 = vector.extract_strided_slice %8 {offsets = [0, 0, 8], sizes = [2, 8, 4], strides = [1, 1, 1]} : vector<2x8x96xf32> to vector<2x8x4xf32>
    %54 = arith.truncf %53 : vector<2x8x4xf32> to vector<2x8x4xbf16>
    %55 = vector.extract_strided_slice %8 {offsets = [0, 0, 40], sizes = [2, 8, 4], strides = [1, 1, 1]} : vector<2x8x96xf32> to vector<2x8x4xf32>
    %56 = arith.truncf %55 : vector<2x8x4xf32> to vector<2x8x4xbf16>
    %57 = vector.extract_strided_slice %8 {offsets = [0, 0, 72], sizes = [2, 8, 4], strides = [1, 1, 1]} : vector<2x8x96xf32> to vector<2x8x4xf32>
    %58 = arith.truncf %57 : vector<2x8x4xf32> to vector<2x8x4xbf16>
    "tpu.trace_start"() <{level = 10 : i32, message = "bqd,bkd->bqk"}> : () -> ()
    %cst_20 = arith.constant dense<0.000000e+00> : vector<2x8x8xf32>
    %59 = tpu.matmul %54, %56, %cst_20 {dimension_numbers = #tpu.dot_dimension_numbers<[2], [2], [1], [1], [0, 0, 0, 1, 1, 1], [0], [0]>} : vector<2x8x4xbf16>, vector<2x8x4xbf16>, vector<2x8x8xf32> -> vector<2x8x8xf32>
    "tpu.trace_stop"() : () -> ()
    %cst_21 = arith.constant 5.000000e-01 : f32
    %60 = vector.broadcast %cst_21 : f32 to vector<2x8x8xf32>
    %61 = arith.mulf %59, %60 : vector<2x8x8xf32>
    %cst_22 = arith.constant dense<0xFF800000> : vector<2x8xf32>
    %62 = vector.multi_reduction <maximumf>, %61, %cst_22 [2] : vector<2x8x8xf32> to vector<2x8xf32>
    %63 = vector.shape_cast %62 : vector<2x8xf32> to vector<2x8x1xf32>
    %64 = vector.broadcast %63 : vector<2x8x1xf32> to vector<2x8x8xf32>
    %65 = arith.subf %61, %64 : vector<2x8x8xf32>
    %66 = math.exp %65 : vector<2x8x8xf32>
    %cst_23 = arith.constant dense<0.000000e+00> : vector<2x8xf32>
    %67 = vector.multi_reduction <add>, %66, %cst_23 [2] : vector<2x8x8xf32> to vector<2x8xf32>
    %68 = vector.shape_cast %67 : vector<2x8xf32> to vector<2x8x1xf32>
    %69 = tpu.reciprocal %68 {approx = true} : vector<2x8x1xf32> -> vector<2x8x1xf32>
    %70 = vector.broadcast %69 : vector<2x8x1xf32> to vector<2x8x8xf32>
    %71 = arith.mulf %66, %70 : vector<2x8x8xf32>
    %72 = arith.truncf %71 : vector<2x8x8xf32> to vector<2x8x8xbf16>
    "tpu.trace_start"() <{level = 10 : i32, message = "bqk,bkd->bqd"}> : () -> ()
    %cst_24 = arith.constant dense<0.000000e+00> : vector<2x8x4xf32>
    %73 = tpu.matmul %72, %58, %cst_24 {dimension_numbers = #tpu.dot_dimension_numbers<[2], [1], [1], [2], [0, 0, 0, 1, 1, 2], [0], [0]>} : vector<2x8x8xbf16>, vector<2x8x4xbf16>, vector<2x8x4xf32> -> vector<2x8x4xf32>
    "tpu.trace_stop"() : () -> ()
    %c0_25 = arith.constant 0 : index
    %c0_26 = arith.constant 0 : index
    %c8 = arith.constant 8 : index
    %74 = vector.load %arg10[%c0_25, %c0_26, %c8] : memref<2x8x32xf32, #tpu.memory_space<vmem>>, vector<2x8x4xf32>
    tpu.vector_store %arg10[%c0_25, %c0_26, %c8], %73 {strides = array<i32>} : memref<2x8x32xf32, #tpu.memory_space<vmem>>, vector<2x8x4xf32>,
    %75 = vector.extract_strided_slice %8 {offsets = [0, 0, 12], sizes = [2, 8, 4], strides = [1, 1, 1]} : vector<2x8x96xf32> to vector<2x8x4xf32>
    %76 = arith.truncf %75 : vector<2x8x4xf32> to vector<2x8x4xbf16>
    %77 = vector.extract_strided_slice %8 {offsets = [0, 0, 44], sizes = [2, 8, 4], strides = [1, 1, 1]} : vector<2x8x96xf32> to vector<2x8x4xf32>
    %78 = arith.truncf %77 : vector<2x8x4xf32> to vector<2x8x4xbf16>
    %79 = vector.extract_strided_slice %8 {offsets = [0, 0, 76], sizes = [2, 8, 4], strides = [1, 1, 1]} : vector<2x8x96xf32> to vector<2x8x4xf32>
    %80 = arith.truncf %79 : vector<2x8x4xf32> to vector<2x8x4xbf16>
    "tpu.trace_start"() <{level = 10 : i32, message = "bqd,bkd->bqk"}> : () -> ()
    %cst_27 = arith.constant dense<0.000000e+00> : vector<2x8x8xf32>
    %81 = tpu.matmul %76, %78, %cst_27 {dimension_numbers = #tpu.dot_dimension_numbers<[2], [2], [1], [1], [0, 0, 0, 1, 1, 1], [0], [0]>} : vector<2x8x4xbf16>, vector<2x8x4xbf16>, vector<2x8x8xf32> -> vector<2x8x8xf32>
    "tpu.trace_stop"() : () -> ()
    %cst_28 = arith.constant 5.000000e-01 : f32
    %82 = vector.broadcast %cst_28 : f32 to vector<2x8x8xf32>
    %83 = arith.mulf %81, %82 : vector<2x8x8xf32>
    %cst_29 = arith.constant dense<0xFF800000> : vector<2x8xf32>
    %84 = vector.multi_reduction <maximumf>, %83, %cst_29 [2] : vector<2x8x8xf32> to vector<2x8xf32>
    %85 = vector.shape_cast %84 : vector<2x8xf32> to vector<2x8x1xf32>
    %86 = vector.broadcast %85 : vector<2x8x1xf32> to vector<2x8x8xf32>
    %87 = arith.subf %83, %86 : vector<2x8x8xf32>
    %88 = math.exp %87 : vector<2x8x8xf32>
    %cst_30 = arith.constant dense<0.000000e+00> : vector<2x8xf32>
    %89 = vector.multi_reduction <add>, %88, %cst_30 [2] : vector<2x8x8xf32> to vector<2x8xf32>
    %90 = vector.shape_cast %89 : vector<2x8xf32> to vector<2x8x1xf32>
    %91 = tpu.reciprocal %90 {approx = true} : vector<2x8x1xf32> -> vector<2x8x1xf32>
    %92 = vector.broadcast %91 : vector<2x8x1xf32> to vector<2x8x8xf32>
    %93 = arith.mulf %88, %92 : vector<2x8x8xf32>
    %94 = arith.truncf %93 : vector<2x8x8xf32> to vector<2x8x8xbf16>
    "tpu.trace_start"() <{level = 10 : i32, message = "bqk,bkd->bqd"}> : () -> ()
    %cst_31 = arith.constant dense<0.000000e+00> : vector<2x8x4xf32>
    %95 = tpu.matmul %94, %80, %cst_31 {dimension_numbers = #tpu.dot_dimension_numbers<[2], [1], [1], [2], [0, 0, 0, 1, 1, 2], [0], [0]>} : vector<2x8x8xbf16>, vector<2x8x4xbf16>, vector<2x8x4xf32> -> vector<2x8x4xf32>
    "tpu.trace_stop"() : () -> ()
    %c0_32 = arith.constant 0 : index
    %c0_33 = arith.constant 0 : index
    %c12 = arith.constant 12 : index
    %96 = vector.load %arg10[%c0_32, %c0_33, %c12] : memref<2x8x32xf32, #tpu.memory_space<vmem>>, vector<2x8x4xf32>
    tpu.vector_store %arg10[%c0_32, %c0_33, %c12], %95 {strides = array<i32>} : memref<2x8x32xf32, #tpu.memory_space<vmem>>, vector<2x8x4xf32>,
    %97 = vector.extract_strided_slice %8 {offsets = [0, 0, 16], sizes = [2, 8, 4], strides = [1, 1, 1]} : vector<2x8x96xf32> to vector<2x8x4xf32>
    %98 = arith.truncf %97 : vector<2x8x4xf32> to vector<2x8x4xbf16>
    %99 = vector.extract_strided_slice %8 {offsets = [0, 0, 48], sizes = [2, 8, 4], strides = [1, 1, 1]} : vector<2x8x96xf32> to vector<2x8x4xf32>
    %100 = arith.truncf %99 : vector<2x8x4xf32> to vector<2x8x4xbf16>
    %101 = vector.extract_strided_slice %8 {offsets = [0, 0, 80], sizes = [2, 8, 4], strides = [1, 1, 1]} : vector<2x8x96xf32> to vector<2x8x4xf32>
    %102 = arith.truncf %101 : vector<2x8x4xf32> to vector<2x8x4xbf16>
    "tpu.trace_start"() <{level = 10 : i32, message = "bqd,bkd->bqk"}> : () -> ()
    %cst_34 = arith.constant dense<0.000000e+00> : vector<2x8x8xf32>
    %103 = tpu.matmul %98, %100, %cst_34 {dimension_numbers = #tpu.dot_dimension_numbers<[2], [2], [1], [1], [0, 0, 0, 1, 1, 1], [0], [0]>} : vector<2x8x4xbf16>, vector<2x8x4xbf16>, vector<2x8x8xf32> -> vector<2x8x8xf32>
    "tpu.trace_stop"() : () -> ()
    %cst_35 = arith.constant 5.000000e-01 : f32
    %104 = vector.broadcast %cst_35 : f32 to vector<2x8x8xf32>
    %105 = arith.mulf %103, %104 : vector<2x8x8xf32>
    %cst_36 = arith.constant dense<0xFF800000> : vector<2x8xf32>
    %106 = vector.multi_reduction <maximumf>, %105, %cst_36 [2] : vector<2x8x8xf32> to vector<2x8xf32>
    %107 = vector.shape_cast %106 : vector<2x8xf32> to vector<2x8x1xf32>
    %108 = vector.broadcast %107 : vector<2x8x1xf32> to vector<2x8x8xf32>
    %109 = arith.subf %105, %108 : vector<2x8x8xf32>
    %110 = math.exp %109 : vector<2x8x8xf32>
    %cst_37 = arith.constant dense<0.000000e+00> : vector<2x8xf32>
    %111 = vector.multi_reduction <add>, %110, %cst_37 [2] : vector<2x8x8xf32> to vector<2x8xf32>
    %112 = vector.shape_cast %111 : vector<2x8xf32> to vector<2x8x1xf32>
    %113 = tpu.reciprocal %112 {approx = true} : vector<2x8x1xf32> -> vector<2x8x1xf32>
    %114 = vector.broadcast %113 : vector<2x8x1xf32> to vector<2x8x8xf32>
    %115 = arith.mulf %110, %114 : vector<2x8x8xf32>
    %116 = arith.truncf %115 : vector<2x8x8xf32> to vector<2x8x8xbf16>
    "tpu.trace_start"() <{level = 10 : i32, message = "bqk,bkd->bqd"}> : () -> ()
    %cst_38 = arith.constant dense<0.000000e+00> : vector<2x8x4xf32>
    %117 = tpu.matmul %116, %102, %cst_38 {dimension_numbers = #tpu.dot_dimension_numbers<[2], [1], [1], [2], [0, 0, 0, 1, 1, 2], [0], [0]>} : vector<2x8x8xbf16>, vector<2x8x4xbf16>, vector<2x8x4xf32> -> vector<2x8x4xf32>
    "tpu.trace_stop"() : () -> ()
    %c0_39 = arith.constant 0 : index
    %c0_40 = arith.constant 0 : index
    %c16 = arith.constant 16 : index
    %118 = vector.load %arg10[%c0_39, %c0_40, %c16] : memref<2x8x32xf32, #tpu.memory_space<vmem>>, vector<2x8x4xf32>
    tpu.vector_store %arg10[%c0_39, %c0_40, %c16], %117 {strides = array<i32>} : memref<2x8x32xf32, #tpu.memory_space<vmem>>, vector<2x8x4xf32>,
    %119 = vector.extract_strided_slice %8 {offsets = [0, 0, 20], sizes = [2, 8, 4], strides = [1, 1, 1]} : vector<2x8x96xf32> to vector<2x8x4xf32>
    %120 = arith.truncf %119 : vector<2x8x4xf32> to vector<2x8x4xbf16>
    %121 = vector.extract_strided_slice %8 {offsets = [0, 0, 52], sizes = [2, 8, 4], strides = [1, 1, 1]} : vector<2x8x96xf32> to vector<2x8x4xf32>
    %122 = arith.truncf %121 : vector<2x8x4xf32> to vector<2x8x4xbf16>
    %123 = vector.extract_strided_slice %8 {offsets = [0, 0, 84], sizes = [2, 8, 4], strides = [1, 1, 1]} : vector<2x8x96xf32> to vector<2x8x4xf32>
    %124 = arith.truncf %123 : vector<2x8x4xf32> to vector<2x8x4xbf16>
    "tpu.trace_start"() <{level = 10 : i32, message = "bqd,bkd->bqk"}> : () -> ()
    %cst_41 = arith.constant dense<0.000000e+00> : vector<2x8x8xf32>
    %125 = tpu.matmul %120, %122, %cst_41 {dimension_numbers = #tpu.dot_dimension_numbers<[2], [2], [1], [1], [0, 0, 0, 1, 1, 1], [0], [0]>} : vector<2x8x4xbf16>, vector<2x8x4xbf16>, vector<2x8x8xf32> -> vector<2x8x8xf32>
    "tpu.trace_stop"() : () -> ()
    %cst_42 = arith.constant 5.000000e-01 : f32
    %126 = vector.broadcast %cst_42 : f32 to vector<2x8x8xf32>
    %127 = arith.mulf %125, %126 : vector<2x8x8xf32>
    %cst_43 = arith.constant dense<0xFF800000> : vector<2x8xf32>
    %128 = vector.multi_reduction <maximumf>, %127, %cst_43 [2] : vector<2x8x8xf32> to vector<2x8xf32>
    %129 = vector.shape_cast %128 : vector<2x8xf32> to vector<2x8x1xf32>
    %130 = vector.broadcast %129 : vector<2x8x1xf32> to vector<2x8x8xf32>
    %131 = arith.subf %127, %130 : vector<2x8x8xf32>
    %132 = math.exp %131 : vector<2x8x8xf32>
    %cst_44 = arith.constant dense<0.000000e+00> : vector<2x8xf32>
    %133 = vector.multi_reduction <add>, %132, %cst_44 [2] : vector<2x8x8xf32> to vector<2x8xf32>
    %134 = vector.shape_cast %133 : vector<2x8xf32> to vector<2x8x1xf32>
    %135 = tpu.reciprocal %134 {approx = true} : vector<2x8x1xf32> -> vector<2x8x1xf32>
    %136 = vector.broadcast %135 : vector<2x8x1xf32> to vector<2x8x8xf32>
    %137 = arith.mulf %132, %136 : vector<2x8x8xf32>
    %138 = arith.truncf %137 : vector<2x8x8xf32> to vector<2x8x8xbf16>
    "tpu.trace_start"() <{level = 10 : i32, message = "bqk,bkd->bqd"}> : () -> ()
    %cst_45 = arith.constant dense<0.000000e+00> : vector<2x8x4xf32>
    %139 = tpu.matmul %138, %124, %cst_45 {dimension_numbers = #tpu.dot_dimension_numbers<[2], [1], [1], [2], [0, 0, 0, 1, 1, 2], [0], [0]>} : vector<2x8x8xbf16>, vector<2x8x4xbf16>, vector<2x8x4xf32> -> vector<2x8x4xf32>
    "tpu.trace_stop"() : () -> ()
    %c0_46 = arith.constant 0 : index
    %c0_47 = arith.constant 0 : index
    %c20 = arith.constant 20 : index
    %140 = vector.load %arg10[%c0_46, %c0_47, %c20] : memref<2x8x32xf32, #tpu.memory_space<vmem>>, vector<2x8x4xf32>
    tpu.vector_store %arg10[%c0_46, %c0_47, %c20], %139 {strides = array<i32>} : memref<2x8x32xf32, #tpu.memory_space<vmem>>, vector<2x8x4xf32>,
    %141 = vector.extract_strided_slice %8 {offsets = [0, 0, 24], sizes = [2, 8, 4], strides = [1, 1, 1]} : vector<2x8x96xf32> to vector<2x8x4xf32>
    %142 = arith.truncf %141 : vector<2x8x4xf32> to vector<2x8x4xbf16>
    %143 = vector.extract_strided_slice %8 {offsets = [0, 0, 56], sizes = [2, 8, 4], strides = [1, 1, 1]} : vector<2x8x96xf32> to vector<2x8x4xf32>
    %144 = arith.truncf %143 : vector<2x8x4xf32> to vector<2x8x4xbf16>
    %145 = vector.extract_strided_slice %8 {offsets = [0, 0, 88], sizes = [2, 8, 4], strides = [1, 1, 1]} : vector<2x8x96xf32> to vector<2x8x4xf32>
    %146 = arith.truncf %145 : vector<2x8x4xf32> to vector<2x8x4xbf16>
    "tpu.trace_start"() <{level = 10 : i32, message = "bqd,bkd->bqk"}> : () -> ()
    %cst_48 = arith.constant dense<0.000000e+00> : vector<2x8x8xf32>
    %147 = tpu.matmul %142, %144, %cst_48 {dimension_numbers = #tpu.dot_dimension_numbers<[2], [2], [1], [1], [0, 0, 0, 1, 1, 1], [0], [0]>} : vector<2x8x4xbf16>, vector<2x8x4xbf16>, vector<2x8x8xf32> -> vector<2x8x8xf32>
    "tpu.trace_stop"() : () -> ()
    %cst_49 = arith.constant 5.000000e-01 : f32
    %148 = vector.broadcast %cst_49 : f32 to vector<2x8x8xf32>
    %149 = arith.mulf %147, %148 : vector<2x8x8xf32>
    %cst_50 = arith.constant dense<0xFF800000> : vector<2x8xf32>
    %150 = vector.multi_reduction <maximumf>, %149, %cst_50 [2] : vector<2x8x8xf32> to vector<2x8xf32>
    %151 = vector.shape_cast %150 : vector<2x8xf32> to vector<2x8x1xf32>
    %152 = vector.broadcast %151 : vector<2x8x1xf32> to vector<2x8x8xf32>
    %153 = arith.subf %149, %152 : vector<2x8x8xf32>
    %154 = math.exp %153 : vector<2x8x8xf32>
    %cst_51 = arith.constant dense<0.000000e+00> : vector<2x8xf32>
    %155 = vector.multi_reduction <add>, %154, %cst_51 [2] : vector<2x8x8xf32> to vector<2x8xf32>
    %156 = vector.shape_cast %155 : vector<2x8xf32> to vector<2x8x1xf32>
    %157 = tpu.reciprocal %156 {approx = true} : vector<2x8x1xf32> -> vector<2x8x1xf32>
    %158 = vector.broadcast %157 : vector<2x8x1xf32> to vector<2x8x8xf32>
    %159 = arith.mulf %154, %158 : vector<2x8x8xf32>
    %160 = arith.truncf %159 : vector<2x8x8xf32> to vector<2x8x8xbf16>
    "tpu.trace_start"() <{level = 10 : i32, message = "bqk,bkd->bqd"}> : () -> ()
    %cst_52 = arith.constant dense<0.000000e+00> : vector<2x8x4xf32>
    %161 = tpu.matmul %160, %146, %cst_52 {dimension_numbers = #tpu.dot_dimension_numbers<[2], [1], [1], [2], [0, 0, 0, 1, 1, 2], [0], [0]>} : vector<2x8x8xbf16>, vector<2x8x4xbf16>, vector<2x8x4xf32> -> vector<2x8x4xf32>
    "tpu.trace_stop"() : () -> ()
    %c0_53 = arith.constant 0 : index
    %c0_54 = arith.constant 0 : index
    %c24 = arith.constant 24 : index
    %162 = vector.load %arg10[%c0_53, %c0_54, %c24] : memref<2x8x32xf32, #tpu.memory_space<vmem>>, vector<2x8x4xf32>
    tpu.vector_store %arg10[%c0_53, %c0_54, %c24], %161 {strides = array<i32>} : memref<2x8x32xf32, #tpu.memory_space<vmem>>, vector<2x8x4xf32>,
    %163 = vector.extract_strided_slice %8 {offsets = [0, 0, 28], sizes = [2, 8, 4], strides = [1, 1, 1]} : vector<2x8x96xf32> to vector<2x8x4xf32>
    %164 = arith.truncf %163 : vector<2x8x4xf32> to vector<2x8x4xbf16>
    %165 = vector.extract_strided_slice %8 {offsets = [0, 0, 60], sizes = [2, 8, 4], strides = [1, 1, 1]} : vector<2x8x96xf32> to vector<2x8x4xf32>
    %166 = arith.truncf %165 : vector<2x8x4xf32> to vector<2x8x4xbf16>
    %167 = vector.extract_strided_slice %8 {offsets = [0, 0, 92], sizes = [2, 8, 4], strides = [1, 1, 1]} : vector<2x8x96xf32> to vector<2x8x4xf32>
    %168 = arith.truncf %167 : vector<2x8x4xf32> to vector<2x8x4xbf16>
    "tpu.trace_start"() <{level = 10 : i32, message = "bqd,bkd->bqk"}> : () -> ()
    %cst_55 = arith.constant dense<0.000000e+00> : vector<2x8x8xf32>
    %169 = tpu.matmul %164, %166, %cst_55 {dimension_numbers = #tpu.dot_dimension_numbers<[2], [2], [1], [1], [0, 0, 0, 1, 1, 1], [0], [0]>} : vector<2x8x4xbf16>, vector<2x8x4xbf16>, vector<2x8x8xf32> -> vector<2x8x8xf32>
    "tpu.trace_stop"() : () -> ()
    %cst_56 = arith.constant 5.000000e-01 : f32
    %170 = vector.broadcast %cst_56 : f32 to vector<2x8x8xf32>
    %171 = arith.mulf %169, %170 : vector<2x8x8xf32>
    %cst_57 = arith.constant dense<0xFF800000> : vector<2x8xf32>
    %172 = vector.multi_reduction <maximumf>, %171, %cst_57 [2] : vector<2x8x8xf32> to vector<2x8xf32>
    %173 = vector.shape_cast %172 : vector<2x8xf32> to vector<2x8x1xf32>
    %174 = vector.broadcast %173 : vector<2x8x1xf32> to vector<2x8x8xf32>
    %175 = arith.subf %171, %174 : vector<2x8x8xf32>
    %176 = math.exp %175 : vector<2x8x8xf32>
    %cst_58 = arith.constant dense<0.000000e+00> : vector<2x8xf32>
    %177 = vector.multi_reduction <add>, %176, %cst_58 [2] : vector<2x8x8xf32> to vector<2x8xf32>
    %178 = vector.shape_cast %177 : vector<2x8xf32> to vector<2x8x1xf32>
    %179 = tpu.reciprocal %178 {approx = true} : vector<2x8x1xf32> -> vector<2x8x1xf32>
    %180 = vector.broadcast %179 : vector<2x8x1xf32> to vector<2x8x8xf32>
    %181 = arith.mulf %176, %180 : vector<2x8x8xf32>
    %182 = arith.truncf %181 : vector<2x8x8xf32> to vector<2x8x8xbf16>
    "tpu.trace_start"() <{level = 10 : i32, message = "bqk,bkd->bqd"}> : () -> ()
    %cst_59 = arith.constant dense<0.000000e+00> : vector<2x8x4xf32>
    %183 = tpu.matmul %182, %168, %cst_59 {dimension_numbers = #tpu.dot_dimension_numbers<[2], [1], [1], [2], [0, 0, 0, 1, 1, 2], [0], [0]>} : vector<2x8x8xbf16>, vector<2x8x4xbf16>, vector<2x8x4xf32> -> vector<2x8x4xf32>
    "tpu.trace_stop"() : () -> ()
    %c0_60 = arith.constant 0 : index
    %c0_61 = arith.constant 0 : index
    %c28 = arith.constant 28 : index
    %184 = vector.load %arg10[%c0_60, %c0_61, %c28] : memref<2x8x32xf32, #tpu.memory_space<vmem>>, vector<2x8x4xf32>
    tpu.vector_store %arg10[%c0_60, %c0_61, %c28], %183 {strides = array<i32>} : memref<2x8x32xf32, #tpu.memory_space<vmem>>, vector<2x8x4xf32>,
    %c0_62 = arith.constant 0 : index
    %c0_63 = arith.constant 0 : index
    %c0_64 = arith.constant 0 : index
    %185 = vector.load %arg10[%c0_62, %c0_63, %c0_64] : memref<2x8x32xf32, #tpu.memory_space<vmem>>, vector<2x8x32xf32>
    %186 = vector.shape_cast %185 : vector<2x8x32xf32> to vector<16x32xf32>
    %187 = arith.addf %3, %186 : vector<16x32xf32>
    %cst_65 = arith.constant dense<0.000000e+00> : vector<16xf32>
    %188 = vector.multi_reduction <add>, %187, %cst_65 [1] : vector<16x32xf32> to vector<16xf32>
    %189 = vector.shape_cast %188 : vector<16xf32> to vector<16x1xf32>
    %cst_66 = arith.constant 3.200000e+01 : f32
    %190 = vector.broadcast %cst_66 : f32 to vector<16x1xf32>
    %191 = arith.divf %189, %190 : vector<16x1xf32>
    %192 = vector.broadcast %191 : vector<16x1xf32> to vector<16x32xf32>
    %193 = arith.subf %187, %192 : vector<16x32xf32>
    %194 = arith.mulf %193, %193 : vector<16x32xf32>
    %cst_67 = arith.constant dense<0.000000e+00> : vector<16xf32>
    %195 = vector.multi_reduction <add>, %194, %cst_67 [1] : vector<16x32xf32> to vector<16xf32>
    %196 = vector.shape_cast %195 : vector<16xf32> to vector<16x1xf32>
    %cst_68 = arith.constant 3.200000e+01 : f32
    %197 = vector.broadcast %cst_68 : f32 to vector<16x1xf32>
    %198 = arith.divf %196, %197 : vector<16x1xf32>
    %199 = vector.broadcast %191 : vector<16x1xf32> to vector<16x32xf32>
    %200 = arith.subf %187, %199 : vector<16x32xf32>
    %cst_69 = arith.constant 9.99999974E-6 : f32
    %201 = vector.broadcast %cst_69 : f32 to vector<16x1xf32>
    %202 = arith.addf %198, %201 : vector<16x1xf32>
    %203 = math.rsqrt %202 : vector<16x1xf32>
    %204 = vector.broadcast %203 : vector<16x1xf32> to vector<16x32xf32>
    %205 = arith.mulf %200, %204 : vector<16x32xf32>
    %206 = arith.truncf %205 : vector<16x32xf32> to vector<16x32xbf16>
    %c0_70 = arith.constant 0 : index
    %c0_71 = arith.constant 0 : index
    %c0_72 = arith.constant 0 : index
    %207 = vector.load %arg4[%c0_70, %c0_71, %c0_72] : memref<1x32x512xbf16, #tpu.memory_space<vmem>>, vector<1x32x512xbf16>
    %208 = vector.shape_cast %207 : vector<1x32x512xbf16> to vector<32x512xbf16>
    %cst_73 = arith.constant dense<0.000000e+00> : vector<16x512xf32>
    %209 = tpu.matmul %206, %208, %cst_73 {dimension_numbers = #tpu.dot_dimension_numbers<[1], [0], [0], [1], [0, 0, 1, 1], [], []>} : vector<16x32xbf16>, vector<32x512xbf16>, vector<16x512xf32> -> vector<16x512xf32>
    %c0_74 = arith.constant 0 : index
    %c0_75 = arith.constant 0 : index
    %c0_76 = arith.constant 0 : index
    %210 = vector.load %arg5[%c0_74, %c0_75, %c0_76] : memref<1x1x512xf32, #tpu.memory_space<vmem>>, vector<1x1x512xf32>
    %211 = vector.shape_cast %210 : vector<1x1x512xf32> to vector<1x512xf32>
    %212 = vector.broadcast %211 : vector<1x512xf32> to vector<16x512xf32>
    %213 = arith.addf %209, %212 : vector<16x512xf32>
    %cst_77 = arith.constant 0.000000e+00 : f32
    %214 = vector.broadcast %cst_77 : f32 to vector<16x512xf32>
    %215 = arith.maximumf %213, %214 : vector<16x512xf32>
    %216 = arith.truncf %215 : vector<16x512xf32> to vector<16x512xbf16>
    %c0_78 = arith.constant 0 : index
    %c0_79 = arith.constant 0 : index
    %c0_80 = arith.constant 0 : index
    %217 = vector.load %arg6[%c0_78, %c0_79, %c0_80] : memref<1x512x32xbf16, #tpu.memory_space<vmem>>, vector<1x512x32xbf16>
    %218 = vector.shape_cast %217 : vector<1x512x32xbf16> to vector<512x32xbf16>
    %cst_81 = arith.constant dense<0.000000e+00> : vector<16x32xf32>
    %219 = tpu.matmul %216, %218, %cst_81 {dimension_numbers = #tpu.dot_dimension_numbers<[1], [0], [0], [1], [0, 0, 1, 1], [], []>} : vector<16x512xbf16>, vector<512x32xbf16>, vector<16x32xf32> -> vector<16x32xf32>
    %c0_82 = arith.constant 0 : index
    %c0_83 = arith.constant 0 : index
    %c0_84 = arith.constant 0 : index
    %220 = vector.load %arg7[%c0_82, %c0_83, %c0_84] : memref<1x1x32xf32, #tpu.memory_space<vmem>>, vector<1x1x32xf32>
    %221 = vector.shape_cast %220 : vector<1x1x32xf32> to vector<1x32xf32>
    %222 = vector.broadcast %221 : vector<1x32xf32> to vector<16x32xf32>
    %223 = arith.addf %219, %222 : vector<16x32xf32>
    %224 = arith.addf %205, %223 : vector<16x32xf32>
    %cst_85 = arith.constant dense<0.000000e+00> : vector<16xf32>
    %225 = vector.multi_reduction <add>, %224, %cst_85 [1] : vector<16x32xf32> to vector<16xf32>
    %226 = vector.shape_cast %225 : vector<16xf32> to vector<16x1xf32>
    %cst_86 = arith.constant 3.200000e+01 : f32
    %227 = vector.broadcast %cst_86 : f32 to vector<16x1xf32>
    %228 = arith.divf %226, %227 : vector<16x1xf32>
    %229 = vector.broadcast %228 : vector<16x1xf32> to vector<16x32xf32>
    %230 = arith.subf %224, %229 : vector<16x32xf32>
    %231 = arith.mulf %230, %230 : vector<16x32xf32>
    %cst_87 = arith.constant dense<0.000000e+00> : vector<16xf32>
    %232 = vector.multi_reduction <add>, %231, %cst_87 [1] : vector<16x32xf32> to vector<16xf32>
    %233 = vector.shape_cast %232 : vector<16xf32> to vector<16x1xf32>
    %cst_88 = arith.constant 3.200000e+01 : f32
    %234 = vector.broadcast %cst_88 : f32 to vector<16x1xf32>
    %235 = arith.divf %233, %234 : vector<16x1xf32>
    %236 = vector.broadcast %228 : vector<16x1xf32> to vector<16x32xf32>
    %237 = arith.subf %224, %236 : vector<16x32xf32>
    %cst_89 = arith.constant 9.99999974E-6 : f32
    %238 = vector.broadcast %cst_89 : f32 to vector<16x1xf32>
    %239 = arith.addf %235, %238 : vector<16x1xf32>
    %240 = math.rsqrt %239 : vector<16x1xf32>
    %241 = vector.broadcast %240 : vector<16x1xf32> to vector<16x32xf32>
    %242 = arith.mulf %237, %241 : vector<16x32xf32>
    %c0_90 = arith.constant 0 : index
    %c0_91 = arith.constant 0 : index
    %243 = vector.load %arg9[%c0_90, %c0_91] : memref<16x32xf32, #tpu.memory_space<vmem>>, vector<16x32xf32>
    tpu.vector_store %arg9[%c0_90, %c0_91], %242 {strides = array<i32>} : memref<16x32xf32, #tpu.memory_space<vmem>>, vector<16x32xf32>,
    %c1_i32 = arith.constant 1 : i32
    %244 = arith.cmpi eq, %arg1, %c1_i32 : i32
    %245 = arith.extui %244 : i1 to i32
    %c0_i32_92 = arith.constant 0 : i32
    %246 = arith.cmpi ne, %245, %c0_i32_92 : i32
    scf.if %246 {
      %c0_93 = arith.constant 0 : index
      %c0_94 = arith.constant 0 : index
      %247 = vector.load %arg8[%c0_93, %c0_94] : memref<16x32xf32, #tpu.memory_space<vmem>>, vector<16x32xf32>
      tpu.vector_store %arg8[%c0_93, %c0_94], %242 {strides = array<i32>} : memref<16x32xf32, #tpu.memory_space<vmem>>, vector<16x32xf32>,
    } else {
    }
    return
  }
  func.func @transform_0(%arg0: i32, %arg1: i32) -> (i32, i32) {
    %c0_i32 = arith.constant 0 : i32
    %c0_i32_0 = arith.constant 0 : i32
    return %arg0, %c0_i32 : i32, i32
  }
  func.func @transform_1(%arg0: i32, %arg1: i32) -> (i32, i32, i32) {
    %c0_i32 = arith.constant 0 : i32
    %c0_i32_0 = arith.constant 0 : i32
    %c0_i32_1 = arith.constant 0 : i32
    return %arg1, %c0_i32, %c0_i32_0 : i32, i32, i32
  }
  func.func @transform_2(%arg0: i32, %arg1: i32) -> (i32, i32, i32) {
    %c0_i32 = arith.constant 0 : i32
    %c0_i32_0 = arith.constant 0 : i32
    %c0_i32_1 = arith.constant 0 : i32
    return %arg1, %c0_i32, %c0_i32_0 : i32, i32, i32
  }
  func.func @transform_3(%arg0: i32, %arg1: i32) -> (i32, i32, i32) {
    %c0_i32 = arith.constant 0 : i32
    %c0_i32_0 = arith.constant 0 : i32
    %c0_i32_1 = arith.constant 0 : i32
    return %arg1, %c0_i32, %c0_i32_0 : i32, i32, i32
  }
  func.func @transform_4(%arg0: i32, %arg1: i32) -> (i32, i32, i32) {
    %c0_i32 = arith.constant 0 : i32
    %c0_i32_0 = arith.constant 0 : i32
    %c0_i32_1 = arith.constant 0 : i32
    return %arg1, %c0_i32, %c0_i32_0 : i32, i32, i32
  }
  func.func @transform_5(%arg0: i32, %arg1: i32) -> (i32, i32, i32) {
    %c0_i32 = arith.constant 0 : i32
    %c0_i32_0 = arith.constant 0 : i32
    %c0_i32_1 = arith.constant 0 : i32
    return %arg1, %c0_i32, %c0_i32_0 : i32, i32, i32
  }
  func.func @transform_6(%arg0: i32, %arg1: i32) -> (i32, i32) {
    %c0_i32 = arith.constant 0 : i32
    %c0_i32_0 = arith.constant 0 : i32
    return %arg0, %c0_i32 : i32, i32
  }
}

</mosaic_0001>

<llo_original>
// kernel: tpu_custom_call.1
$region0: #{tpu_custom_call.1}
  #allocation0 [shape = 'u32[]', space=smem, size = 0x4, offset = 0x4, fixed_abs, tag = 'smem constant byte address 0x4 - core index']
  #allocation1 [shape = 'u32[144,128]{1,0:T(1,128)}', space=vmem, size = 0x12000, scoped, tag = 'internal scratch']
  #allocation2 [shape = 'f32[16,32]{1,0:T(8,128)}', space=vmem, size = 0x2000, scoped, tag = 'scratch operand']
  #allocation3 [shape = 'f32[2,8,32]{2,1,0:T(8,128)}', space=vmem, size = 0x2000, scoped, tag = 'scratch operand']
  %s0 = inlined_call_operand.vmem [shape: f32[16,32], index: 0, kind: input, shape index: {}]
  %s1 = inlined_call_operand.vmem [shape: bf16[2,32,96], index: 1, kind: input, shape index: {}]
  %s2 = inlined_call_operand.vmem [shape: bf16[2,32,512], index: 2, kind: input, shape index: {}]
  %s3 = inlined_call_operand.vmem [shape: f32[2,1,512], index: 3, kind: input, shape index: {}]
  %s4 = inlined_call_operand.vmem [shape: bf16[2,512,32], index: 4, kind: input, shape index: {}]
  %s5 = inlined_call_operand.vmem [shape: f32[2,1,32], index: 5, kind: input, shape index: {}]
  %s6 = inlined_call_operand.hbm [shape: f32[16,32], index: 6, kind: output, shape index: {}]
  %s7 = sld [smem:[#allocation0]]
  $region65: #{tpu_custom_call.1} parent=0
    _
  %s9 = ssub.s32 1, %s7
  %s10 = scalar_select 0, %s9, %s7
  $region1: #{tpu_custom_call.1} parent=0
    #allocation4 [shape = 'u8[8192]{0}', space=vmem, size = 0x2000, scoped, tag = 'output window, operand 0, single buffered']
    #allocation5 [shape = 's32[2]{0}', space=sflag, size = 0x8, scoped, tag = 'scoped memory for tpu_custom_call.1']
    %11 = vsyncpa [#allocation5], 0
    loop: start=0, step=1, limit=4
    $region2: #{tpu_custom_call.1} parent=1 // loop_pre_header
      _
    $region3: #{tpu_custom_call.1} parent=1 // loop_header
      %s13 = sphi 0, %s17
      %p14 = scmp.ge.s32.totalorder %s13, 4
      %s20 = sphi 0, %s32
      %s21 = sphi 0, %s28
      %s22 = sphi 0, %s20
      %s23 = sphi 0, %s21
      %s24 = sphi 0, %s22
      %s25 = sphi 0, %s23
      %s35 = sphi 0, %s37
      %s38 = sphi 0, %s35
      %s39 = sphi 0, %s38
      %s55 = sphi 0, %s39
      %s61 = sphi 0, %s63
      %s64 = sphi 0, %s61
      %s65 = sphi 0, %s64
      %s81 = sphi 0, %s65
      %s87 = sphi 0, %s89
      %s90 = sphi 0, %s87
      %s91 = sphi 0, %s90
      %s107 = sphi 0, %s91
      %s113 = sphi 0, %s115
      %s116 = sphi 0, %s113
      %s117 = sphi 0, %s116
      %s133 = sphi 0, %s117
      %s139 = sphi 0, %s141
      %s142 = sphi 0, %s139
      %s143 = sphi 0, %s142
      %s159 = sphi 0, %s143
      %s165 = sphi 0, %s167
      %s168 = sphi 0, %s165
      %s169 = sphi 0, %s168
      %s185 = sphi 0, %s169
      %s191 = sphi 0, %s193
      %s194 = sphi 0, %s191
      %s195 = sphi 0, %s194
      %s211 = sphi 0, %s195
    $region4: #{tpu_custom_call.1} parent=1 // loop_header_branch
      %16 = sbr.rel (%p14) target = $region8
    $region5: #{tpu_custom_call.1} parent=1 // loop_body
      %s18 = ssub.s32 %s13, 1
      %s19 = ssub.s32 %s13, 2
      %s26 = sadd.s32 1, %s21
      %p27 = scmp.ge.s32.totalorder %s26, 2
      %s28 = scalar_select %p27, 0, %s26
      %s29 = sadd.s32 1, %s20
      %s30 = scalar_select %p27, %s29, %s20
      %p31 = scmp.ge.s32.totalorder %s30, 1
      %s32 = scalar_select %p31, 0, %s30
      %s33 = ssub.s32 %s20, %s32
      %p34 = scmp.eq.s32.totalorder %s33, 0
      %s36 = sadd.s32 %s35, 1
      %s37 = scalar_select %p34, %s35, %s36
      %p40 = pneg %p34
      %p41 = scmp.eq.s32.totalorder %s13, 1
      %p42 = por %p40, %p41
      %p43 = scmp.ne.s32.totalorder %s35, %s38
      %p44 = scmp.eq.s32.totalorder %s13, 0
      %p45 = por %p43, %p44
      %p46 = scmp.ne.s32.totalorder %s35, %s38
      %p47 = scmp.eq.s32.totalorder %s18, 1
      %p48 = por %p46, %p47
      %p49 = scmp.ne.s32.totalorder %s38, %s39
      %p50 = scmp.eq.s32.totalorder %s18, 0
      %p51 = por %p49, %p50
      %p52 = scmp.ne.s32.totalorder %s38, %s39
      %p53 = scmp.eq.s32.totalorder %s19, 1
      %p54 = por %p52, %p53
      %p56 = scmp.ne.s32.totalorder %s39, %s55
      %p57 = scmp.eq.s32.totalorder %s19, 0
      %p58 = por %p56, %p57
      %s59 = ssub.s32 %s21, %s28
      %p60 = scmp.eq.s32.totalorder %s59, 0
      %s62 = sadd.s32 %s61, 1
      %s63 = scalar_select %p60, %s61, %s62
      %p66 = pneg %p60
      %p67 = scmp.eq.s32.totalorder %s13, 1
      %p68 = por %p66, %p67
      %p69 = scmp.ne.s32.totalorder %s61, %s64
      %p70 = scmp.eq.s32.totalorder %s13, 0
      %p71 = por %p69, %p70
      %p72 = scmp.ne.s32.totalorder %s61, %s64
      %p73 = scmp.eq.s32.totalorder %s18, 1
      %p74 = por %p72, %p73
      %p75 = scmp.ne.s32.totalorder %s64, %s65
      %p76 = scmp.eq.s32.totalorder %s18, 0
      %p77 = por %p75, %p76
      %p78 = scmp.ne.s32.totalorder %s64, %s65
      %p79 = scmp.eq.s32.totalorder %s19, 1
      %p80 = por %p78, %p79
      %p82 = scmp.ne.s32.totalorder %s65, %s81
      %p83 = scmp.eq.s32.totalorder %s19, 0
      %p84 = por %p82, %p83
      %s85 = ssub.s32 %s21, %s28
      %p86 = scmp.eq.s32.totalorder %s85, 0
      %s88 = sadd.s32 %s87, 1
      %s89 = scalar_select %p86, %s87, %s88
      %p92 = pneg %p86
      %p93 = scmp.eq.s32.totalorder %s13, 1
      %p94 = por %p92, %p93
      %p95 = scmp.ne.s32.totalorder %s87, %s90
      %p96 = scmp.eq.s32.totalorder %s13, 0
      %p97 = por %p95, %p96
      %p98 = scmp.ne.s32.totalorder %s87, %s90
      %p99 = scmp.eq.s32.totalorder %s18, 1
      %p100 = por %p98, %p99
      %p101 = scmp.ne.s32.totalorder %s90, %s91
      %p102 = scmp.eq.s32.totalorder %s18, 0
      %p103 = por %p101, %p102
      %p104 = scmp.ne.s32.totalorder %s90, %s91
      %p105 = scmp.eq.s32.totalorder %s19, 1
      %p106 = por %p104, %p105
      %p108 = scmp.ne.s32.totalorder %s91, %s107
      %p109 = scmp.eq.s32.totalorder %s19, 0
      %p110 = por %p108, %p109
      %s111 = ssub.s32 %s21, %s28
      %p112 = scmp.eq.s32.totalorder %s111, 0
      %s114 = sadd.s32 %s113, 1
      %s115 = scalar_select %p112, %s113, %s114
      %p118 = pneg %p112
      %p119 = scmp.eq.s32.totalorder %s13, 1
      %p120 = por %p118, %p119
      %p121 = scmp.ne.s32.totalorder %s113, %s116
      %p122 = scmp.eq.s32.totalorder %s13, 0
      %p123 = por %p121, %p122
      %p124 = scmp.ne.s32.totalorder %s113, %s116
      %p125 = scmp.eq.s32.totalorder %s18, 1
      %p126 = por %p124, %p125
      %p127 = scmp.ne.s32.totalorder %s116, %s117
      %p128 = scmp.eq.s32.totalorder %s18, 0
      %p129 = por %p127, %p128
      %p130 = scmp.ne.s32.totalorder %s116, %s117
      %p131 = scmp.eq.s32.totalorder %s19, 1
      %p132 = por %p130, %p131
      %p134 = scmp.ne.s32.totalorder %s117, %s133
      %p135 = scmp.eq.s32.totalorder %s19, 0
      %p136 = por %p134, %p135
      %s137 = ssub.s32 %s21, %s28
      %p138 = scmp.eq.s32.totalorder %s137, 0
      %s140 = sadd.s32 %s139, 1
      %s141 = scalar_select %p138, %s139, %s140
      %p144 = pneg %p138
      %p145 = scmp.eq.s32.totalorder %s13, 1
      %p146 = por %p144, %p145
      %p147 = scmp.ne.s32.totalorder %s139, %s142
      %p148 = scmp.eq.s32.totalorder %s13, 0
      %p149 = por %p147, %p148
      %p150 = scmp.ne.s32.totalorder %s139, %s142
      %p151 = scmp.eq.s32.totalorder %s18, 1
      %p152 = por %p150, %p151
      %p153 = scmp.ne.s32.totalorder %s142, %s143
      %p154 = scmp.eq.s32.totalorder %s18, 0
      %p155 = por %p153, %p154
      %p156 = scmp.ne.s32.totalorder %s142, %s143
      %p157 = scmp.eq.s32.totalorder %s19, 1
      %p158 = por %p156, %p157
      %p160 = scmp.ne.s32.totalorder %s143, %s159
      %p161 = scmp.eq.s32.totalorder %s19, 0
      %p162 = por %p160, %p161
      %s163 = ssub.s32 %s21, %s28
      %p164 = scmp.eq.s32.totalorder %s163, 0
      %s166 = sadd.s32 %s165, 1
      %s167 = scalar_select %p164, %s165, %s166
      %p170 = pneg %p164
      %p171 = scmp.eq.s32.totalorder %s13, 1
      %p172 = por %p170, %p171
      %p173 = scmp.ne.s32.totalorder %s165, %s168
      %p174 = scmp.eq.s32.totalorder %s13, 0
      %p175 = por %p173, %p174
      %p176 = scmp.ne.s32.totalorder %s165, %s168
      %p177 = scmp.eq.s32.totalorder %s18, 1
      %p178 = por %p176, %p177
      %p179 = scmp.ne.s32.totalorder %s168, %s169
      %p180 = scmp.eq.s32.totalorder %s18, 0
      %p181 = por %p179, %p180
      %p182 = scmp.ne.s32.totalorder %s168, %s169
      %p183 = scmp.eq.s32.totalorder %s19, 1
      %p184 = por %p182, %p183
      %p186 = scmp.ne.s32.totalorder %s169, %s185
      %p187 = scmp.eq.s32.totalorder %s19, 0
      %p188 = por %p186, %p187
      %s189 = ssub.s32 %s20, %s32
      %p190 = scmp.eq.s32.totalorder %s189, 0
      %s192 = sadd.s32 %s191, 1
      %s193 = scalar_select %p190, %s191, %s192
      %p196 = pneg %p190
      %p197 = scmp.eq.s32.totalorder %s13, 1
      %p198 = por %p196, %p197
      %p199 = scmp.ne.s32.totalorder %s191, %s194
      %p200 = scmp.eq.s32.totalorder %s13, 0
      %p201 = por %p199, %p200
      %p202 = scmp.ne.s32.totalorder %s191, %s194
      %p203 = scmp.eq.s32.totalorder %s18, 1
      %p204 = por %p202, %p203
      %p205 = scmp.ne.s32.totalorder %s194, %s195
      %p206 = scmp.eq.s32.totalorder %s18, 0
      %p207 = por %p205, %p206
      %p208 = scmp.ne.s32.totalorder %s194, %s195
      %p209 = scmp.eq.s32.totalorder %s19, 1
      %p210 = por %p208, %p209
      %p212 = scmp.ne.s32.totalorder %s195, %s211
      %p213 = scmp.eq.s32.totalorder %s19, 0
      %p214 = por %p212, %p213
      %p215 = scmp.le.s32.totalorder 1, %s13
      %p216 = scmp.lt.s32.totalorder %s13, 3
      %p217 = pnand %p215, %p216
      %p218 = pneg %p217
      // Predicated region
      $region9: #{tpu_custom_call.1} parent=5 // pred_check
        _
      $region10: #{tpu_custom_call.1} parent=5 // pred_check_branch
        %220 = sbr.rel (%p217) target = $region12
      $region11: #{tpu_custom_call.1} parent=5 // pred_region
        %s221 = ssub.s32 %s13, 1
        // Predicated region
        $region13: #{tpu_custom_call.1} parent=11 // pred_check
          %p222 = pneg %p51
        $region14: #{tpu_custom_call.1} parent=11 // pred_check_branch
          %224 = sbr.rel (%p222) target = $region16
        $region15: #{tpu_custom_call.1} parent=11 // pred_region
          %s225 = smul.u32 2, %s22
          %p226 = scmp.lt.s32.totalorder %s225, 1
          %s227 = scalar_select %p226, %s225, 1
          %s228 = smul.addr %s227, 8
          %s229 = scalar_lea.vmem %s0, %s228
          %s230 = smul.u32 2, %s22
        $region16: #{tpu_custom_call.1} parent=11 // pred_fallthru
          _
      $region12: #{tpu_custom_call.1} parent=5 // pred_fallthru
        _
      %p231 = scmp.lt.s32.totalorder %s13, 2
      // Predicated region
      $region17: #{tpu_custom_call.1} parent=5 // pred_check
        %p232 = pneg %p231
      $region18: #{tpu_custom_call.1} parent=5 // pred_check_branch
        %234 = sbr.rel (%p232) target = $region20
      $region19: #{tpu_custom_call.1} parent=5 // pred_region
        // Predicated region
        $region21: #{tpu_custom_call.1} parent=19 // pred_check
          %p235 = pneg %p71
        $region22: #{tpu_custom_call.1} parent=19 // pred_check_branch
          %237 = sbr.rel (%p235) target = $region24
        $region23: #{tpu_custom_call.1} parent=19 // pred_region
          %p238 = scmp.lt.s32.totalorder %s21, 1
          %s239 = scalar_select %p238, %s21, 1
          %s240 = smul.addr %s239, 4
          %s241 = smul.addr %s240, 4
          %s242 = scalar_lea.vmem %s1, %s241
        $region24: #{tpu_custom_call.1} parent=19 // pred_fallthru
          _
        // Predicated region
        $region25: #{tpu_custom_call.1} parent=19 // pred_check
          %p243 = pneg %p97
        $region26: #{tpu_custom_call.1} parent=19 // pred_check_branch
          %245 = sbr.rel (%p243) target = $region28
        $region27: #{tpu_custom_call.1} parent=19 // pred_region
          %p246 = scmp.lt.s32.totalorder %s21, 1
          %s247 = scalar_select %p246, %s21, 1
          %s248 = smul.addr %s247, 16
          %s249 = smul.addr %s248, 4
          %s250 = scalar_lea.vmem %s2, %s249
        $region28: #{tpu_custom_call.1} parent=19 // pred_fallthru
          _
        // Predicated region
        $region29: #{tpu_custom_call.1} parent=19 // pred_check
          %p251 = pneg %p123
        $region30: #{tpu_custom_call.1} parent=19 // pred_check_branch
          %253 = sbr.rel (%p251) target = $region32
        $region31: #{tpu_custom_call.1} parent=19 // pred_region
          %p254 = scmp.lt.s32.totalorder %s21, 1
          %s255 = scalar_select %p254, %s21, 1
          %s256 = smul.addr %s255, 4
          %s257 = scalar_lea.vmem %s3, %s256
        $region32: #{tpu_custom_call.1} parent=19 // pred_fallthru
          _
        // Predicated region
        $region33: #{tpu_custom_call.1} parent=19 // pred_check
          %p258 = pneg %p149
        $region34: #{tpu_custom_call.1} parent=19 // pred_check_branch
          %260 = sbr.rel (%p258) target = $region36
        $region35: #{tpu_custom_call.1} parent=19 // pred_region
          %p261 = scmp.lt.s32.totalorder %s21, 1
          %s262 = scalar_select %p261, %s21, 1
          %s263 = smul.addr %s262, 64
          %s264 = smul.addr %s263, 4
          %s265 = scalar_lea.vmem %s4, %s264
        $region36: #{tpu_custom_call.1} parent=19 // pred_fallthru
          _
        // Predicated region
        $region37: #{tpu_custom_call.1} parent=19 // pred_check
          %p266 = pneg %p175
        $region38: #{tpu_custom_call.1} parent=19 // pred_check_branch
          %268 = sbr.rel (%p266) target = $region40
        $region39: #{tpu_custom_call.1} parent=19 // pred_region
          %p269 = scmp.lt.s32.totalorder %s21, 1
          %s270 = scalar_select %p269, %s21, 1
          %s271 = scalar_lea.vmem %s5, %s270
        $region40: #{tpu_custom_call.1} parent=19 // pred_fallthru
          _
      $region20: #{tpu_custom_call.1} parent=5 // pred_fallthru
        _
      %p272 = scmp.le.s32.totalorder 1, %s13
      %p273 = scmp.lt.s32.totalorder %s13, 3
      %p274 = pnand %p272, %p273
      %p275 = pneg %p274
      // Predicated region
      $region41: #{tpu_custom_call.1} parent=5 // pred_check
        _
      $region42: #{tpu_custom_call.1} parent=5 // pred_check_branch
        %277 = sbr.rel (%p274) target = $region44
      $region43: #{tpu_custom_call.1} parent=5 // pred_region
        %s278 = ssub.s32 %s13, 1
        %s279 = smul.u32 2, %s22
        %p280 = scmp.lt.s32.totalorder %s279, 1
        %s281 = scalar_select %p280, %s279, 1
        %s282 = smul.addr %s281, 8
        %s283 = scalar_lea.vmem %s0, %s282
        %p284 = pneg %p51
        %p285 = pneg %p48
        %p286 = scmp.lt.s32.totalorder %s23, 1
        %s287 = scalar_select %p286, %s23, 1
        %s288 = smul.addr %s287, 4
        %s289 = smul.addr %s288, 4
        %s290 = scalar_lea.vmem %s1, %s289
        %p291 = pneg %p77
        %p292 = pneg %p74
        %p293 = scmp.lt.s32.totalorder %s23, 1
        %s294 = scalar_select %p293, %s23, 1
        %s295 = smul.addr %s294, 16
        %s296 = smul.addr %s295, 4
        %s297 = scalar_lea.vmem %s2, %s296
        %p298 = pneg %p103
        %p299 = pneg %p100
        %p300 = scmp.lt.s32.totalorder %s23, 1
        %s301 = scalar_select %p300, %s23, 1
        %s302 = smul.addr %s301, 4
        %s303 = scalar_lea.vmem %s3, %s302
        %p304 = pneg %p129
        %p305 = pneg %p126
        %p306 = scmp.lt.s32.totalorder %s23, 1
        %s307 = scalar_select %p306, %s23, 1
        %s308 = smul.addr %s307, 64
        %s309 = smul.addr %s308, 4
        %s310 = scalar_lea.vmem %s4, %s309
        %p311 = pneg %p155
        %p312 = pneg %p152
        %p313 = scmp.lt.s32.totalorder %s23, 1
        %s314 = scalar_select %p313, %s23, 1
        %s315 = scalar_lea.vmem %s5, %s314
        %p316 = pneg %p181
        %p317 = pneg %p178
        %p318 = pneg %p207
        %p319 = pneg %p204
        %s320 = smul.u32 2, %s22
        %p321 = scmp.lt.s32.totalorder %s320, 1
        %s322 = scalar_select %p321, %s320, 1
        %s323 = smul.addr %s322, 8
        %s324 = scalar_lea.vmem %s0, %s323
        %s325 = smul.u32 2, %s22
        %p326 = scmp.lt.s32.totalorder %s23, 1
        %s327 = scalar_select %p326, %s23, 1
        %s328 = smul.addr %s327, 4
        %s329 = smul.addr %s328, 4
        %s330 = scalar_lea.vmem %s1, %s329
        %p331 = scmp.lt.s32.totalorder %s23, 1
        %s332 = scalar_select %p331, %s23, 1
        %s333 = smul.addr %s332, 16
        %s334 = smul.addr %s333, 4
        %s335 = scalar_lea.vmem %s2, %s334
        %p336 = scmp.lt.s32.totalorder %s23, 1
        %s337 = scalar_select %p336, %s23, 1
        %s338 = smul.addr %s337, 4
        %s339 = scalar_lea.vmem %s3, %s338
        %p340 = scmp.lt.s32.totalorder %s23, 1
        %s341 = scalar_select %p340, %s23, 1
        %s342 = smul.addr %s341, 64
        %s343 = smul.addr %s342, 4
        %s344 = scalar_lea.vmem %s4, %s343
        %p345 = scmp.lt.s32.totalorder %s23, 1
        %s346 = scalar_select %p345, %s23, 1
        %s347 = scalar_lea.vmem %s5, %s346
        %s348 = smul.u32 2, %s22
        %p350 = scmp.eq.s32.totalorder %s23, 0
        // Predicated region
        $region45: #{tpu_custom_call.1} parent=43 // pred_check
          %p351 = pneg %p350
        $region46: #{tpu_custom_call.1} parent=43 // pred_check_branch
          %353 = sbr.rel (%p351) target = $region48
        $region47: #{tpu_custom_call.1} parent=43 // pred_region
          %v354 = vld [vmem:[%s324] sm:$0xff]
          %v355 = vld [vmem:[%s324 + $0x8] sm:$0xff]
          %vm356 = vcmask 261120
          %357 = vst.msk [vmem:[#allocation2] sm:$0xff] %vm356, %v354
          %358 = vst.msk [vmem:[#allocation2 + $0x8] sm:$0xff] %vm356, %v355
        $region48: #{tpu_custom_call.1} parent=43 // pred_fallthru
          _
        %v359 = vld [vmem:[#allocation2] sm:$0xff]
        %v360 = vld [vmem:[#allocation2 + $0x8] sm:$0xff]
        %v361 = vpack.c.bf16 %v360, %v359
        %v362 = vld [vmem:[%s330] sm:$0xf]
        %v363 = vld [vmem:[%s330 + $0x4] sm:$0xf]
        %v364 = vld [vmem:[%s330 + $0x8] sm:$0xf]
        %v365 = vld [vmem:[%s330 + $0xc] sm:$0xf]
        %v370 = vunpack.c.l.b16 %v362
        %v371 = vunpack.c.l.b16 %v363
        %v372 = vunpack.c.l.b16 %v364
        %v373 = vunpack.c.l.b16 %v365
        %v374 = vpack.c.b16 %v371, %v370
        %v375 = vpack.c.b16 %v373, %v372
        %vm378 = vcmask 261120
        %v380 = vsel %vm378, %v361, 0
        %382 = vmatprep.subr.bf16.mxu0 0
        %383 = vmatpush1.bf16.msra.mxu0 %v374
        %384 = vmatprep.subr.bf16.mxu0 0
        %385 = vmatpush1.bf16.msra.mxu0 %v375
        %386 = vmatprep.subr.bf16.mxu0 0
        %387 = vmatpush1.bf16.msra.mxu0 0
        %388 = vmatprep.subr.bf16.mxu0 0
        %389 = vmatpush1.bf16.msra.mxu0 0
        %390 = vmatprep.subr.bf16.mxu0 0
        %391 = vmatpush1.bf16.msra.mxu0 0
        %392 = vmatprep.subr.bf16.mxu0 0
        %393 = vmatpush1.bf16.msra.mxu0 0
        %394 = vmatprep.subr.bf16.mxu0 0
        %395 = vmatpush1.bf16.msra.mxu0 0
        %396 = vmatprep.subr.bf16.mxu0 0
        %397 = vmatpush1.bf16.msra.mxu0 0
        %398 = vmatprep.subr.bf16.mxu0 0
        %399 = vmatpush1.bf16.msra.mxu0 0
        %400 = vmatprep.subr.bf16.mxu0 0
        %401 = vmatpush1.bf16.msra.mxu0 0
        %402 = vmatprep.subr.bf16.mxu0 0
        %403 = vmatpush1.bf16.msra.mxu0 0
        %404 = vmatprep.subr.bf16.mxu0 0
        %405 = vmatpush1.bf16.msra.mxu0 0
        %406 = vmatprep.subr.bf16.mxu0 0
        %407 = vmatpush1.bf16.msra.mxu0 0
        %408 = vmatprep.subr.bf16.mxu0 0
        %409 = vmatpush1.bf16.msra.mxu0 0
        %410 = vmatprep.subr.bf16.mxu0 0
        %411 = vmatpush1.bf16.msra.mxu0 0
        %412 = vmatprep.subr.bf16.mxu0 0
        %413 = vmatpush1.bf16.msra.mxu0 0
        %414 = vmatprep.mubr.bf16.mxu0 0
        %415 = vmatmul.mubr.bf16.gmra.mrb[0].mxu0 %v380
        %v416 = vpop.f32.mrb[0].mxu0
        %v417 = vadd.f32 0.0, %v416
        %v418 = vpop.f32.mrb[0].mxu0
        %v419 = vpop.f32.mrb[0].mxu0
        %v420 = vadd.f32 0.0, %v419
        %v421 = vpop.f32.mrb[0].mxu0
        %422 = vdwg.mxu0
        %v423 = vpack.c.bf16 %v417, %v417
        %v424 = vpack.c.bf16 %v420, %v420
        %426 = vrot.lane.b32.xlu0 %v423, 96
        %v427 = vpop.permute.xlu0 %426
        %vm428 = vcmask 31744
        %v430 = vsel %vm428, %v423, 0
        %v433 = vsel %vm428, %v427, 0
        %435 = vmatprep.subr.bf16.mxu0 0
        %436 = vmatpush1.bf16.xpose.msra.mxu0 %v433
        %437 = vmatprep.subr.bf16.mxu0 0
        %438 = vmatpush1.bf16.xpose.msra.mxu0 0
        %439 = vmatprep.subr.bf16.mxu0 0
        %440 = vmatpush1.bf16.xpose.msra.mxu0 0
        %441 = vmatprep.subr.bf16.mxu0 0
        %442 = vmatpush1.bf16.xpose.msra.mxu0 0
        %443 = vmatprep.subr.bf16.mxu0 0
        %444 = vmatpush1.bf16.xpose.msra.mxu0 0
        %445 = vmatprep.subr.bf16.mxu0 0
        %446 = vmatpush1.bf16.xpose.msra.mxu0 0
        %447 = vmatprep.subr.bf16.mxu0 0
        %448 = vmatpush1.bf16.xpose.msra.mxu0 0
        %449 = vmatprep.subr.bf16.mxu0 0
        %450 = vmatpush1.bf16.xpose.msra.mxu0 0
        %451 = vmatprep.subr.bf16.mxu0 0
        %452 = vmatpush1.bf16.xpose.msra.mxu0 0
        %453 = vmatprep.subr.bf16.mxu0 0
        %454 = vmatpush1.bf16.xpose.msra.mxu0 0
        %455 = vmatprep.subr.bf16.mxu0 0
        %456 = vmatpush1.bf16.xpose.msra.mxu0 0
        %457 = vmatprep.subr.bf16.mxu0 0
        %458 = vmatpush1.bf16.xpose.msra.mxu0 0
        %459 = vmatprep.subr.bf16.mxu0 0
        %460 = vmatpush1.bf16.xpose.msra.mxu0 0
        %461 = vmatprep.subr.bf16.mxu0 0
        %462 = vmatpush1.bf16.xpose.msra.mxu0 0
        %463 = vmatprep.subr.bf16.mxu0 0
        %464 = vmatpush1.bf16.xpose.msra.mxu0 0
        %465 = vmatprep.subr.bf16.mxu0 0
        %466 = vmatpush1.bf16.xpose.msra.mxu0 0
        %467 = vmatprep.mubr.bf16.mxu0 0
        %468 = vmatmul.mubr.bf16.gmra.mrb[0].mxu0 %v430
        %v469 = vpop.f32.mrb[0].mxu0
        %v470 = vadd.f32 0.0, %v469
        %v471 = vpop.f32.mrb[0].mxu0
        %v472 = vpop.f32.mrb[0].mxu0
        %v473 = vpop.f32.mrb[0].mxu0
        %474 = vdwg.mxu0
        %476 = vrot.lane.b32.xlu0 %v424, 96
        %v477 = vpop.permute.xlu0 %476
        %v479 = vsel %vm428, %v424, 0
        %v482 = vsel %vm428, %v477, 0
        %484 = vmatprep.subr.bf16.mxu0 0
        %485 = vmatpush1.bf16.xpose.msra.mxu0 %v482
        %486 = vmatprep.subr.bf16.mxu0 0
        %487 = vmatpush1.bf16.xpose.msra.mxu0 0
        %488 = vmatprep.subr.bf16.mxu0 0
        %489 = vmatpush1.bf16.xpose.msra.mxu0 0
        %490 = vmatprep.subr.bf16.mxu0 0
        %491 = vmatpush1.bf16.xpose.msra.mxu0 0
        %492 = vmatprep.subr.bf16.mxu0 0
        %493 = vmatpush1.bf16.xpose.msra.mxu0 0
        %494 = vmatprep.subr.bf16.mxu0 0
        %495 = vmatpush1.bf16.xpose.msra.mxu0 0
        %496 = vmatprep.subr.bf16.mxu0 0
        %497 = vmatpush1.bf16.xpose.msra.mxu0 0
        %498 = vmatprep.subr.bf16.mxu0 0
        %499 = vmatpush1.bf16.xpose.msra.mxu0 0
        %500 = vmatprep.subr.bf16.mxu0 0
        %501 = vmatpush1.bf16.xpose.msra.mxu0 0
        %502 = vmatprep.subr.bf16.mxu0 0
        %503 = vmatpush1.bf16.xpose.msra.mxu0 0
        %504 = vmatprep.subr.bf16.mxu0 0
        %505 = vmatpush1.bf16.xpose.msra.mxu0 0
        %506 = vmatprep.subr.bf16.mxu0 0
        %507 = vmatpush1.bf16.xpose.msra.mxu0 0
        %508 = vmatprep.subr.bf16.mxu0 0
        %509 = vmatpush1.bf16.xpose.msra.mxu0 0
        %510 = vmatprep.subr.bf16.mxu0 0
        %511 = vmatpush1.bf16.xpose.msra.mxu0 0
        %512 = vmatprep.subr.bf16.mxu0 0
        %513 = vmatpush1.bf16.xpose.msra.mxu0 0
        %514 = vmatprep.subr.bf16.mxu0 0
        %515 = vmatpush1.bf16.xpose.msra.mxu0 0
        %516 = vmatprep.mubr.bf16.mxu0 0
        %517 = vmatmul.mubr.bf16.gmra.mrb[0].mxu0 %v479
        %v518 = vpop.f32.mrb[0].mxu0
        %v519 = vadd.f32 0.0, %v518
        %v520 = vpop.f32.mrb[0].mxu0
        %v521 = vpop.f32.mrb[0].mxu0
        %v522 = vpop.f32.mrb[0].mxu0
        %523 = vdwg.mxu0
        %v524 = vmul.f32 %v470, 0.5
        %v525 = vmul.f32 %v519, 0.5
        %vm526 = vcmask 64512
        %v527 = vsel %vm526, %v524, -inf
        %528 = vmax.xlane.f32.xlu0 %v527
        %v529 = vpop.xlane.xlu0 %528
        %v530 = vsel %vm526, %v525, -inf
        %531 = vmax.xlane.f32.xlu0 %v530
        %v532 = vpop.xlane.xlu0 %531
        %v533 = vsub.f32 %v524, %v529
        %v534 = vsub.f32 %v525, %v532
        %v535 = vmul.f32 %v533, 1.442695
        %v536 = vpow.pop %v535
        %v537 = vmul.f32 %v534, 1.442695
        %v538 = vpow.pop %v537
        %v539 = vsel %vm526, %v536, 0.0
        %540 = vadd.xlane.f32.xlu0 %v539
        %v541 = vpop.xlane.xlu0 %540
        %v542 = vsel %vm526, %v538, 0.0
        %543 = vadd.xlane.f32.xlu0 %v542
        %v544 = vpop.xlane.xlu0 %543
        %v545 = vrcp.pop %v541
        %v546 = vrcp.pop %v544
        %v547 = vmul.f32 %v536, %v545
        %v548 = vmul.f32 %v538, %v546
        %v549 = vpack.c.bf16 %v547, %v547
        %v550 = vpack.c.bf16 %v548, %v548
        %551 = vrot.lane.b32.xlu0 %v423, 64
        %v552 = vpop.permute.xlu0 %551
        %v554 = vsel %vm526, %v549, 0
        %vm556 = vcmask 1043456
        %v558 = vsel %vm556, %v552, 0
        %560 = vmatprep.subr.bf16.mxu0 0
        %561 = vmatpush1.bf16.msra.mxu0 %v558
        %562 = vmatprep.subr.bf16.mxu0 0
        %563 = vmatpush1.bf16.msra.mxu0 0
        %564 = vmatprep.subr.bf16.mxu0 0
        %565 = vmatpush1.bf16.msra.mxu0 0
        %566 = vmatprep.subr.bf16.mxu0 0
        %567 = vmatpush1.bf16.msra.mxu0 0
        %568 = vmatprep.subr.bf16.mxu0 0
        %569 = vmatpush1.bf16.msra.mxu0 0
        %570 = vmatprep.subr.bf16.mxu0 0
        %571 = vmatpush1.bf16.msra.mxu0 0
        %572 = vmatprep.subr.bf16.mxu0 0
        %573 = vmatpush1.bf16.msra.mxu0 0
        %574 = vmatprep.subr.bf16.mxu0 0
        %575 = vmatpush1.bf16.msra.mxu0 0
        %576 = vmatprep.subr.bf16.mxu0 0
        %577 = vmatpush1.bf16.msra.mxu0 0
        %578 = vmatprep.subr.bf16.mxu0 0
        %579 = vmatpush1.bf16.msra.mxu0 0
        %580 = vmatprep.subr.bf16.mxu0 0
        %581 = vmatpush1.bf16.msra.mxu0 0
        %582 = vmatprep.subr.bf16.mxu0 0
        %583 = vmatpush1.bf16.msra.mxu0 0
        %584 = vmatprep.subr.bf16.mxu0 0
        %585 = vmatpush1.bf16.msra.mxu0 0
        %586 = vmatprep.subr.bf16.mxu0 0
        %587 = vmatpush1.bf16.msra.mxu0 0
        %588 = vmatprep.subr.bf16.mxu0 0
        %589 = vmatpush1.bf16.msra.mxu0 0
        %590 = vmatprep.subr.bf16.mxu0 0
        %591 = vmatpush1.bf16.msra.mxu0 0
        %592 = vmatprep.mubr.bf16.mxu0 0
        %593 = vmatmul.mubr.bf16.gmra.mrb[0].mxu0 %v554
        %v594 = vpop.f32.mrb[0].mxu0
        %v595 = vadd.f32 0.0, %v594
        %v596 = vpop.f32.mrb[0].mxu0
        %v597 = vpop.f32.mrb[0].mxu0
        %v598 = vpop.f32.mrb[0].mxu0
        %599 = vdwg.mxu0
        %600 = vrot.lane.b32.xlu0 %v424, 64
        %v601 = vpop.permute.xlu0 %600
        %v603 = vsel %vm526, %v550, 0
        %v606 = vsel %vm556, %v601, 0
        %608 = vmatprep.subr.bf16.mxu0 0
        %609 = vmatpush1.bf16.msra.mxu0 %v606
        %610 = vmatprep.subr.bf16.mxu0 0
        %611 = vmatpush1.bf16.msra.mxu0 0
        %612 = vmatprep.subr.bf16.mxu0 0
        %613 = vmatpush1.bf16.msra.mxu0 0
        %614 = vmatprep.subr.bf16.mxu0 0
        %615 = vmatpush1.bf16.msra.mxu0 0
        %616 = vmatprep.subr.bf16.mxu0 0
        %617 = vmatpush1.bf16.msra.mxu0 0
        %618 = vmatprep.subr.bf16.mxu0 0
        %619 = vmatpush1.bf16.msra.mxu0 0
        %620 = vmatprep.subr.bf16.mxu0 0
        %621 = vmatpush1.bf16.msra.mxu0 0
        %622 = vmatprep.subr.bf16.mxu0 0
        %623 = vmatpush1.bf16.msra.mxu0 0
        %624 = vmatprep.subr.bf16.mxu0 0
        %625 = vmatpush1.bf16.msra.mxu0 0
        %626 = vmatprep.subr.bf16.mxu0 0
        %627 = vmatpush1.bf16.msra.mxu0 0
        %628 = vmatprep.subr.bf16.mxu0 0
        %629 = vmatpush1.bf16.msra.mxu0 0
        %630 = vmatprep.subr.bf16.mxu0 0
        %631 = vmatpush1.bf16.msra.mxu0 0
        %632 = vmatprep.subr.bf16.mxu0 0
        %633 = vmatpush1.bf16.msra.mxu0 0
        %634 = vmatprep.subr.bf16.mxu0 0
        %635 = vmatpush1.bf16.msra.mxu0 0
        %636 = vmatprep.subr.bf16.mxu0 0
        %637 = vmatpush1.bf16.msra.mxu0 0
        %638 = vmatprep.subr.bf16.mxu0 0
        %639 = vmatpush1.bf16.msra.mxu0 0
        %640 = vmatprep.mubr.bf16.mxu0 0
        %641 = vmatmul.mubr.bf16.gmra.mrb[0].mxu0 %v603
        %v642 = vpop.f32.mrb[0].mxu0
        %v643 = vadd.f32 0.0, %v642
        %v644 = vpop.f32.mrb[0].mxu0
        %v645 = vpop.f32.mrb[0].mxu0
        %v646 = vpop.f32.mrb[0].mxu0
        %647 = vdwg.mxu0
        %648 = vst.msk [vmem:[#allocation3] sm:$0xff] %vm428, %v595
        %649 = vst.msk [vmem:[#allocation3 + $0x8] sm:$0xff] %vm428, %v643
        %650 = vrot.lane.b32.xlu0 %v423, 124
        %v651 = vpop.permute.xlu0 %650
        %652 = vrot.lane.b32.xlu0 %v423, 92
        %v653 = vpop.permute.xlu0 %652
        %v655 = vsel %vm428, %v651, 0
        %v658 = vsel %vm428, %v653, 0
        %660 = vmatprep.subr.bf16.mxu0 0
        %661 = vmatpush1.bf16.xpose.msra.mxu0 %v658
        %662 = vmatprep.subr.bf16.mxu0 0
        %663 = vmatpush1.bf16.xpose.msra.mxu0 0
        %664 = vmatprep.subr.bf16.mxu0 0
        %665 = vmatpush1.bf16.xpose.msra.mxu0 0
        %666 = vmatprep.subr.bf16.mxu0 0
        %667 = vmatpush1.bf16.xpose.msra.mxu0 0
        %668 = vmatprep.subr.bf16.mxu0 0
        %669 = vmatpush1.bf16.xpose.msra.mxu0 0
        %670 = vmatprep.subr.bf16.mxu0 0
        %671 = vmatpush1.bf16.xpose.msra.mxu0 0
        %672 = vmatprep.subr.bf16.mxu0 0
        %673 = vmatpush1.bf16.xpose.msra.mxu0 0
        %674 = vmatprep.subr.bf16.mxu0 0
        %675 = vmatpush1.bf16.xpose.msra.mxu0 0
        %676 = vmatprep.subr.bf16.mxu0 0
        %677 = vmatpush1.bf16.xpose.msra.mxu0 0
        %678 = vmatprep.subr.bf16.mxu0 0
        %679 = vmatpush1.bf16.xpose.msra.mxu0 0
        %680 = vmatprep.subr.bf16.mxu0 0
        %681 = vmatpush1.bf16.xpose.msra.mxu0 0
        %682 = vmatprep.subr.bf16.mxu0 0
        %683 = vmatpush1.bf16.xpose.msra.mxu0 0
        %684 = vmatprep.subr.bf16.mxu0 0
        %685 = vmatpush1.bf16.xpose.msra.mxu0 0
        %686 = vmatprep.subr.bf16.mxu0 0
        %687 = vmatpush1.bf16.xpose.msra.mxu0 0
        %688 = vmatprep.subr.bf16.mxu0 0
        %689 = vmatpush1.bf16.xpose.msra.mxu0 0
        %690 = vmatprep.subr.bf16.mxu0 0
        %691 = vmatpush1.bf16.xpose.msra.mxu0 0
        %692 = vmatprep.mubr.bf16.mxu0 0
        %693 = vmatmul.mubr.bf16.gmra.mrb[0].mxu0 %v655
        %v694 = vpop.f32.mrb[0].mxu0
        %v695 = vadd.f32 0.0, %v694
        %v696 = vpop.f32.mrb[0].mxu0
        %v697 = vpop.f32.mrb[0].mxu0
        %v698 = vpop.f32.mrb[0].mxu0
        %699 = vdwg.mxu0
        %700 = vrot.lane.b32.xlu0 %v424, 124
        %v701 = vpop.permute.xlu0 %700
        %702 = vrot.lane.b32.xlu0 %v424, 92
        %v703 = vpop.permute.xlu0 %702
        %v705 = vsel %vm428, %v701, 0
        %v708 = vsel %vm428, %v703, 0
        %710 = vmatprep.subr.bf16.mxu0 0
        %711 = vmatpush1.bf16.xpose.msra.mxu0 %v708
        %712 = vmatprep.subr.bf16.mxu0 0
        %713 = vmatpush1.bf16.xpose.msra.mxu0 0
        %714 = vmatprep.subr.bf16.mxu0 0
        %715 = vmatpush1.bf16.xpose.msra.mxu0 0
        %716 = vmatprep.subr.bf16.mxu0 0
        %717 = vmatpush1.bf16.xpose.msra.mxu0 0
        %718 = vmatprep.subr.bf16.mxu0 0
        %719 = vmatpush1.bf16.xpose.msra.mxu0 0
        %720 = vmatprep.subr.bf16.mxu0 0
        %721 = vmatpush1.bf16.xpose.msra.mxu0 0
        %722 = vmatprep.subr.bf16.mxu0 0
        %723 = vmatpush1.bf16.xpose.msra.mxu0 0
        %724 = vmatprep.subr.bf16.mxu0 0
        %725 = vmatpush1.bf16.xpose.msra.mxu0 0
        %726 = vmatprep.subr.bf16.mxu0 0
        %727 = vmatpush1.bf16.xpose.msra.mxu0 0
        %728 = vmatprep.subr.bf16.mxu0 0
        %729 = vmatpush1.bf16.xpose.msra.mxu0 0
        %730 = vmatprep.subr.bf16.mxu0 0
        %731 = vmatpush1.bf16.xpose.msra.mxu0 0
        %732 = vmatprep.subr.bf16.mxu0 0
        %733 = vmatpush1.bf16.xpose.msra.mxu0 0
        %734 = vmatprep.subr.bf16.mxu0 0
        %735 = vmatpush1.bf16.xpose.msra.mxu0 0
        %736 = vmatprep.subr.bf16.mxu0 0
        %737 = vmatpush1.bf16.xpose.msra.mxu0 0
        %738 = vmatprep.subr.bf16.mxu0 0
        %739 = vmatpush1.bf16.xpose.msra.mxu0 0
        %740 = vmatprep.subr.bf16.mxu0 0
        %741 = vmatpush1.bf16.xpose.msra.mxu0 0
        %742 = vmatprep.mubr.bf16.mxu0 0
        %743 = vmatmul.mubr.bf16.gmra.mrb[0].mxu0 %v705
        %v744 = vpop.f32.mrb[0].mxu0
        %v745 = vadd.f32 0.0, %v744
        %v746 = vpop.f32.mrb[0].mxu0
        %v747 = vpop.f32.mrb[0].mxu0
        %v748 = vpop.f32.mrb[0].mxu0
        %749 = vdwg.mxu0
        %v750 = vmul.f32 %v695, 0.5
        %v751 = vmul.f32 %v745, 0.5
        %v752 = vsel %vm526, %v750, -inf
        %753 = vmax.xlane.f32.xlu0 %v752
        %v754 = vpop.xlane.xlu0 %753
        %v755 = vsel %vm526, %v751, -inf
        %756 = vmax.xlane.f32.xlu0 %v755
        %v757 = vpop.xlane.xlu0 %756
        %v758 = vsub.f32 %v750, %v754
        %v759 = vsub.f32 %v751, %v757
        %v760 = vmul.f32 %v758, 1.442695
        %v761 = vpow.pop %v760
        %v762 = vmul.f32 %v759, 1.442695
        %v763 = vpow.pop %v762
        %v764 = vsel %vm526, %v761, 0.0
        %765 = vadd.xlane.f32.xlu0 %v764
        %v766 = vpop.xlane.xlu0 %765
        %v767 = vsel %vm526, %v763, 0.0
        %768 = vadd.xlane.f32.xlu0 %v767
        %v769 = vpop.xlane.xlu0 %768
        %v770 = vrcp.pop %v766
        %v771 = vrcp.pop %v769
        %v772 = vmul.f32 %v761, %v770
        %v773 = vmul.f32 %v763, %v771
        %v774 = vpack.c.bf16 %v772, %v772
        %v775 = vpack.c.bf16 %v773, %v773
        %776 = vrot.lane.b32.xlu0 %v423, 60
        %v777 = vpop.permute.xlu0 %776
        %v779 = vsel %vm526, %v774, 0
        %v782 = vsel %vm556, %v777, 0
        %784 = vmatprep.subr.bf16.mxu0 0
        %785 = vmatpush1.bf16.msra.mxu0 %v782
        %786 = vmatprep.subr.bf16.mxu0 0
        %787 = vmatpush1.bf16.msra.mxu0 0
        %788 = vmatprep.subr.bf16.mxu0 0
        %789 = vmatpush1.bf16.msra.mxu0 0
        %790 = vmatprep.subr.bf16.mxu0 0
        %791 = vmatpush1.bf16.msra.mxu0 0
        %792 = vmatprep.subr.bf16.mxu0 0
        %793 = vmatpush1.bf16.msra.mxu0 0
        %794 = vmatprep.subr.bf16.mxu0 0
        %795 = vmatpush1.bf16.msra.mxu0 0
        %796 = vmatprep.subr.bf16.mxu0 0
        %797 = vmatpush1.bf16.msra.mxu0 0
        %798 = vmatprep.subr.bf16.mxu0 0
        %799 = vmatpush1.bf16.msra.mxu0 0
        %800 = vmatprep.subr.bf16.mxu0 0
        %801 = vmatpush1.bf16.msra.mxu0 0
        %802 = vmatprep.subr.bf16.mxu0 0
        %803 = vmatpush1.bf16.msra.mxu0 0
        %804 = vmatprep.subr.bf16.mxu0 0
        %805 = vmatpush1.bf16.msra.mxu0 0
        %806 = vmatprep.subr.bf16.mxu0 0
        %807 = vmatpush1.bf16.msra.mxu0 0
        %808 = vmatprep.subr.bf16.mxu0 0
        %809 = vmatpush1.bf16.msra.mxu0 0
        %810 = vmatprep.subr.bf16.mxu0 0
        %811 = vmatpush1.bf16.msra.mxu0 0
        %812 = vmatprep.subr.bf16.mxu0 0
        %813 = vmatpush1.bf16.msra.mxu0 0
        %814 = vmatprep.subr.bf16.mxu0 0
        %815 = vmatpush1.bf16.msra.mxu0 0
        %816 = vmatprep.mubr.bf16.mxu0 0
        %817 = vmatmul.mubr.bf16.gmra.mrb[0].mxu0 %v779
        %v818 = vpop.f32.mrb[0].mxu0
        %v819 = vadd.f32 0.0, %v818
        %v820 = vpop.f32.mrb[0].mxu0
        %v821 = vpop.f32.mrb[0].mxu0
        %v822 = vpop.f32.mrb[0].mxu0
        %823 = vdwg.mxu0
        %824 = vrot.lane.b32.xlu0 %v424, 60
        %v825 = vpop.permute.xlu0 %824
        %v827 = vsel %vm526, %v775, 0
        %v830 = vsel %vm556, %v825, 0
        %832 = vmatprep.subr.bf16.mxu0 0
        %833 = vmatpush1.bf16.msra.mxu0 %v830
        %834 = vmatprep.subr.bf16.mxu0 0
        %835 = vmatpush1.bf16.msra.mxu0 0
        %836 = vmatprep.subr.bf16.mxu0 0
        %837 = vmatpush1.bf16.msra.mxu0 0
        %838 = vmatprep.subr.bf16.mxu0 0
        %839 = vmatpush1.bf16.msra.mxu0 0
        %840 = vmatprep.subr.bf16.mxu0 0
        %841 = vmatpush1.bf16.msra.mxu0 0
        %842 = vmatprep.subr.bf16.mxu0 0
        %843 = vmatpush1.bf16.msra.mxu0 0
        %844 = vmatprep.subr.bf16.mxu0 0
        %845 = vmatpush1.bf16.msra.mxu0 0
        %846 = vmatprep.subr.bf16.mxu0 0
        %847 = vmatpush1.bf16.msra.mxu0 0
        %848 = vmatprep.subr.bf16.mxu0 0
        %849 = vmatpush1.bf16.msra.mxu0 0
        %850 = vmatprep.subr.bf16.mxu0 0
        %851 = vmatpush1.bf16.msra.mxu0 0
        %852 = vmatprep.subr.bf16.mxu0 0
        %853 = vmatpush1.bf16.msra.mxu0 0
        %854 = vmatprep.subr.bf16.mxu0 0
        %855 = vmatpush1.bf16.msra.mxu0 0
        %856 = vmatprep.subr.bf16.mxu0 0
        %857 = vmatpush1.bf16.msra.mxu0 0
        %858 = vmatprep.subr.bf16.mxu0 0
        %859 = vmatpush1.bf16.msra.mxu0 0
        %860 = vmatprep.subr.bf16.mxu0 0
        %861 = vmatpush1.bf16.msra.mxu0 0
        %862 = vmatprep.subr.bf16.mxu0 0
        %863 = vmatpush1.bf16.msra.mxu0 0
        %864 = vmatprep.mubr.bf16.mxu0 0
        %865 = vmatmul.mubr.bf16.gmra.mrb[0].mxu0 %v827
        %v866 = vpop.f32.mrb[0].mxu0
        %v867 = vadd.f32 0.0, %v866
        %v868 = vpop.f32.mrb[0].mxu0
        %v869 = vpop.f32.mrb[0].mxu0
        %v870 = vpop.f32.mrb[0].mxu0
        %871 = vdwg.mxu0
        %874 = vrot.lane.b32.xlu0 %v819, 4
        %v875 = vpop.permute.xlu0 %874
        %876 = vrot.lane.b32.xlu0 %v867, 4
        %v877 = vpop.permute.xlu0 %876
        %vm880 = vcmask 64544
        %881 = vst.msk [vmem:[#allocation3] sm:$0xff] %vm880, %v875
        %882 = vst.msk [vmem:[#allocation3 + $0x8] sm:$0xff] %vm880, %v877
        %883 = vrot.lane.b32.xlu0 %v423, 120
        %v884 = vpop.permute.xlu0 %883
        %885 = vrot.lane.b32.xlu0 %v423, 88
        %v886 = vpop.permute.xlu0 %885
        %v888 = vsel %vm428, %v884, 0
        %v891 = vsel %vm428, %v886, 0
        %893 = vmatprep.subr.bf16.mxu0 0
        %894 = vmatpush1.bf16.xpose.msra.mxu0 %v891
        %895 = vmatprep.subr.bf16.mxu0 0
        %896 = vmatpush1.bf16.xpose.msra.mxu0 0
        %897 = vmatprep.subr.bf16.mxu0 0
        %898 = vmatpush1.bf16.xpose.msra.mxu0 0
        %899 = vmatprep.subr.bf16.mxu0 0
        %900 = vmatpush1.bf16.xpose.msra.mxu0 0
        %901 = vmatprep.subr.bf16.mxu0 0
        %902 = vmatpush1.bf16.xpose.msra.mxu0 0
        %903 = vmatprep.subr.bf16.mxu0 0
        %904 = vmatpush1.bf16.xpose.msra.mxu0 0
        %905 = vmatprep.subr.bf16.mxu0 0
        %906 = vmatpush1.bf16.xpose.msra.mxu0 0
        %907 = vmatprep.subr.bf16.mxu0 0
        %908 = vmatpush1.bf16.xpose.msra.mxu0 0
        %909 = vmatprep.subr.bf16.mxu0 0
        %910 = vmatpush1.bf16.xpose.msra.mxu0 0
        %911 = vmatprep.subr.bf16.mxu0 0
        %912 = vmatpush1.bf16.xpose.msra.mxu0 0
        %913 = vmatprep.subr.bf16.mxu0 0
        %914 = vmatpush1.bf16.xpose.msra.mxu0 0
        %915 = vmatprep.subr.bf16.mxu0 0
        %916 = vmatpush1.bf16.xpose.msra.mxu0 0
        %917 = vmatprep.subr.bf16.mxu0 0
        %918 = vmatpush1.bf16.xpose.msra.mxu0 0
        %919 = vmatprep.subr.bf16.mxu0 0
        %920 = vmatpush1.bf16.xpose.msra.mxu0 0
        %921 = vmatprep.subr.bf16.mxu0 0
        %922 = vmatpush1.bf16.xpose.msra.mxu0 0
        %923 = vmatprep.subr.bf16.mxu0 0
        %924 = vmatpush1.bf16.xpose.msra.mxu0 0
        %925 = vmatprep.mubr.bf16.mxu0 0
        %926 = vmatmul.mubr.bf16.gmra.mrb[0].mxu0 %v888
        %v927 = vpop.f32.mrb[0].mxu0
        %v928 = vadd.f32 0.0, %v927
        %v929 = vpop.f32.mrb[0].mxu0
        %v930 = vpop.f32.mrb[0].mxu0
        %v931 = vpop.f32.mrb[0].mxu0
        %932 = vdwg.mxu0
        %933 = vrot.lane.b32.xlu0 %v424, 120
        %v934 = vpop.permute.xlu0 %933
        %935 = vrot.lane.b32.xlu0 %v424, 88
        %v936 = vpop.permute.xlu0 %935
        %v938 = vsel %vm428, %v934, 0
        %v941 = vsel %vm428, %v936, 0
        %943 = vmatprep.subr.bf16.mxu0 0
        %944 = vmatpush1.bf16.xpose.msra.mxu0 %v941
        %945 = vmatprep.subr.bf16.mxu0 0
        %946 = vmatpush1.bf16.xpose.msra.mxu0 0
        %947 = vmatprep.subr.bf16.mxu0 0
        %948 = vmatpush1.bf16.xpose.msra.mxu0 0
        %949 = vmatprep.subr.bf16.mxu0 0
        %950 = vmatpush1.bf16.xpose.msra.mxu0 0
        %951 = vmatprep.subr.bf16.mxu0 0
        %952 = vmatpush1.bf16.xpose.msra.mxu0 0
        %953 = vmatprep.subr.bf16.mxu0 0
        %954 = vmatpush1.bf16.xpose.msra.mxu0 0
        %955 = vmatprep.subr.bf16.mxu0 0
        %956 = vmatpush1.bf16.xpose.msra.mxu0 0
        %957 = vmatprep.subr.bf16.mxu0 0
        %958 = vmatpush1.bf16.xpose.msra.mxu0 0
        %959 = vmatprep.subr.bf16.mxu0 0
        %960 = vmatpush1.bf16.xpose.msra.mxu0 0
        %961 = vmatprep.subr.bf16.mxu0 0
        %962 = vmatpush1.bf16.xpose.msra.mxu0 0
        %963 = vmatprep.subr.bf16.mxu0 0
        %964 = vmatpush1.bf16.xpose.msra.mxu0 0
        %965 = vmatprep.subr.bf16.mxu0 0
        %966 = vmatpush1.bf16.xpose.msra.mxu0 0
        %967 = vmatprep.subr.bf16.mxu0 0
        %968 = vmatpush1.bf16.xpose.msra.mxu0 0
        %969 = vmatprep.subr.bf16.mxu0 0
        %970 = vmatpush1.bf16.xpose.msra.mxu0 0
        %971 = vmatprep.subr.bf16.mxu0 0
        %972 = vmatpush1.bf16.xpose.msra.mxu0 0
        %973 = vmatprep.subr.bf16.mxu0 0
        %974 = vmatpush1.bf16.xpose.msra.mxu0 0
        %975 = vmatprep.mubr.bf16.mxu0 0
        %976 = vmatmul.mubr.bf16.gmra.mrb[0].mxu0 %v938
        %v977 = vpop.f32.mrb[0].mxu0
        %v978 = vadd.f32 0.0, %v977
        %v979 = vpop.f32.mrb[0].mxu0
        %v980 = vpop.f32.mrb[0].mxu0
        %v981 = vpop.f32.mrb[0].mxu0
        %982 = vdwg.mxu0
        %v983 = vmul.f32 %v928, 0.5
        %v984 = vmul.f32 %v978, 0.5
        %v985 = vsel %vm526, %v983, -inf
        %986 = vmax.xlane.f32.xlu0 %v985
        %v987 = vpop.xlane.xlu0 %986
        %v988 = vsel %vm526, %v984, -inf
        %989 = vmax.xlane.f32.xlu0 %v988
        %v990 = vpop.xlane.xlu0 %989
        %v991 = vsub.f32 %v983, %v987
        %v992 = vsub.f32 %v984, %v990
        %v993 = vmul.f32 %v991, 1.442695
        %v994 = vpow.pop %v993
        %v995 = vmul.f32 %v992, 1.442695
        %v996 = vpow.pop %v995
        %v997 = vsel %vm526, %v994, 0.0
        %998 = vadd.xlane.f32.xlu0 %v997
        %v999 = vpop.xlane.xlu0 %998
        %v1000 = vsel %vm526, %v996, 0.0
        %1001 = vadd.xlane.f32.xlu0 %v1000
        %v1002 = vpop.xlane.xlu0 %1001
        %v1003 = vrcp.pop %v999
        %v1004 = vrcp.pop %v1002
        %v1005 = vmul.f32 %v994, %v1003
        %v1006 = vmul.f32 %v996, %v1004
        %v1007 = vpack.c.bf16 %v1005, %v1005
        %v1008 = vpack.c.bf16 %v1006, %v1006
        %1009 = vrot.lane.b32.xlu0 %v423, 56
        %v1010 = vpop.permute.xlu0 %1009
        %v1012 = vsel %vm526, %v1007, 0
        %v1015 = vsel %vm556, %v1010, 0
        %1017 = vmatprep.subr.bf16.mxu0 0
        %1018 = vmatpush1.bf16.msra.mxu0 %v1015
        %1019 = vmatprep.subr.bf16.mxu0 0
        %1020 = vmatpush1.bf16.msra.mxu0 0
        %1021 = vmatprep.subr.bf16.mxu0 0
        %1022 = vmatpush1.bf16.msra.mxu0 0
        %1023 = vmatprep.subr.bf16.mxu0 0
        %1024 = vmatpush1.bf16.msra.mxu0 0
        %1025 = vmatprep.subr.bf16.mxu0 0
        %1026 = vmatpush1.bf16.msra.mxu0 0
        %1027 = vmatprep.subr.bf16.mxu0 0
        %1028 = vmatpush1.bf16.msra.mxu0 0
        %1029 = vmatprep.subr.bf16.mxu0 0
        %1030 = vmatpush1.bf16.msra.mxu0 0
        %1031 = vmatprep.subr.bf16.mxu0 0
        %1032 = vmatpush1.bf16.msra.mxu0 0
        %1033 = vmatprep.subr.bf16.mxu0 0
        %1034 = vmatpush1.bf16.msra.mxu0 0
        %1035 = vmatprep.subr.bf16.mxu0 0
        %1036 = vmatpush1.bf16.msra.mxu0 0
        %1037 = vmatprep.subr.bf16.mxu0 0
        %1038 = vmatpush1.bf16.msra.mxu0 0
        %1039 = vmatprep.subr.bf16.mxu0 0
        %1040 = vmatpush1.bf16.msra.mxu0 0
        %1041 = vmatprep.subr.bf16.mxu0 0
        %1042 = vmatpush1.bf16.msra.mxu0 0
        %1043 = vmatprep.subr.bf16.mxu0 0
        %1044 = vmatpush1.bf16.msra.mxu0 0
        %1045 = vmatprep.subr.bf16.mxu0 0
        %1046 = vmatpush1.bf16.msra.mxu0 0
        %1047 = vmatprep.subr.bf16.mxu0 0
        %1048 = vmatpush1.bf16.msra.mxu0 0
        %1049 = vmatprep.mubr.bf16.mxu0 0
        %1050 = vmatmul.mubr.bf16.gmra.mrb[0].mxu0 %v1012
        %v1051 = vpop.f32.mrb[0].mxu0
        %v1052 = vadd.f32 0.0, %v1051
        %v1053 = vpop.f32.mrb[0].mxu0
        %v1054 = vpop.f32.mrb[0].mxu0
        %v1055 = vpop.f32.mrb[0].mxu0
        %1056 = vdwg.mxu0
        %1057 = vrot.lane.b32.xlu0 %v424, 56
        %v1058 = vpop.permute.xlu0 %1057
        %v1060 = vsel %vm526, %v1008, 0
        %v1063 = vsel %vm556, %v1058, 0
        %1065 = vmatprep.subr.bf16.mxu0 0
        %1066 = vmatpush1.bf16.msra.mxu0 %v1063
        %1067 = vmatprep.subr.bf16.mxu0 0
        %1068 = vmatpush1.bf16.msra.mxu0 0
        %1069 = vmatprep.subr.bf16.mxu0 0
        %1070 = vmatpush1.bf16.msra.mxu0 0
        %1071 = vmatprep.subr.bf16.mxu0 0
        %1072 = vmatpush1.bf16.msra.mxu0 0
        %1073 = vmatprep.subr.bf16.mxu0 0
        %1074 = vmatpush1.bf16.msra.mxu0 0
        %1075 = vmatprep.subr.bf16.mxu0 0
        %1076 = vmatpush1.bf16.msra.mxu0 0
        %1077 = vmatprep.subr.bf16.mxu0 0
        %1078 = vmatpush1.bf16.msra.mxu0 0
        %1079 = vmatprep.subr.bf16.mxu0 0
        %1080 = vmatpush1.bf16.msra.mxu0 0
        %1081 = vmatprep.subr.bf16.mxu0 0
        %1082 = vmatpush1.bf16.msra.mxu0 0
        %1083 = vmatprep.subr.bf16.mxu0 0
        %1084 = vmatpush1.bf16.msra.mxu0 0
        %1085 = vmatprep.subr.bf16.mxu0 0
        %1086 = vmatpush1.bf16.msra.mxu0 0
        %1087 = vmatprep.subr.bf16.mxu0 0
        %1088 = vmatpush1.bf16.msra.mxu0 0
        %1089 = vmatprep.subr.bf16.mxu0 0
        %1090 = vmatpush1.bf16.msra.mxu0 0
        %1091 = vmatprep.subr.bf16.mxu0 0
        %1092 = vmatpush1.bf16.msra.mxu0 0
        %1093 = vmatprep.subr.bf16.mxu0 0
        %1094 = vmatpush1.bf16.msra.mxu0 0
        %1095 = vmatprep.subr.bf16.mxu0 0
        %1096 = vmatpush1.bf16.msra.mxu0 0
        %1097 = vmatprep.mubr.bf16.mxu0 0
        %1098 = vmatmul.mubr.bf16.gmra.mrb[0].mxu0 %v1060
        %v1099 = vpop.f32.mrb[0].mxu0
        %v1100 = vadd.f32 0.0, %v1099
        %v1101 = vpop.f32.mrb[0].mxu0
        %v1102 = vpop.f32.mrb[0].mxu0
        %v1103 = vpop.f32.mrb[0].mxu0
        %1104 = vdwg.mxu0
        %1107 = vrot.lane.b32.xlu0 %v1052, 8
        %v1108 = vpop.permute.xlu0 %1107
        %1109 = vrot.lane.b32.xlu0 %v1100, 8
        %v1110 = vpop.permute.xlu0 %1109
        %vm1113 = vcmask 97344
        %1114 = vst.msk [vmem:[#allocation3] sm:$0xff] %vm1113, %v1108
        %1115 = vst.msk [vmem:[#allocation3 + $0x8] sm:$0xff] %vm1113, %v1110
        %1116 = vrot.lane.b32.xlu0 %v423, 116
        %v1117 = vpop.permute.xlu0 %1116
        %1118 = vrot.lane.b32.xlu0 %v423, 84
        %v1119 = vpop.permute.xlu0 %1118
        %v1121 = vsel %vm428, %v1117, 0
        %v1124 = vsel %vm428, %v1119, 0
        %1126 = vmatprep.subr.bf16.mxu0 0
        %1127 = vmatpush1.bf16.xpose.msra.mxu0 %v1124
        %1128 = vmatprep.subr.bf16.mxu0 0
        %1129 = vmatpush1.bf16.xpose.msra.mxu0 0
        %1130 = vmatprep.subr.bf16.mxu0 0
        %1131 = vmatpush1.bf16.xpose.msra.mxu0 0
        %1132 = vmatprep.subr.bf16.mxu0 0
        %1133 = vmatpush1.bf16.xpose.msra.mxu0 0
        %1134 = vmatprep.subr.bf16.mxu0 0
        %1135 = vmatpush1.bf16.xpose.msra.mxu0 0
        %1136 = vmatprep.subr.bf16.mxu0 0
        %1137 = vmatpush1.bf16.xpose.msra.mxu0 0
        %1138 = vmatprep.subr.bf16.mxu0 0
        %1139 = vmatpush1.bf16.xpose.msra.mxu0 0
        %1140 = vmatprep.subr.bf16.mxu0 0
        %1141 = vmatpush1.bf16.xpose.msra.mxu0 0
        %1142 = vmatprep.subr.bf16.mxu0 0
        %1143 = vmatpush1.bf16.xpose.msra.mxu0 0
        %1144 = vmatprep.subr.bf16.mxu0 0
        %1145 = vmatpush1.bf16.xpose.msra.mxu0 0
        %1146 = vmatprep.subr.bf16.mxu0 0
        %1147 = vmatpush1.bf16.xpose.msra.mxu0 0
        %1148 = vmatprep.subr.bf16.mxu0 0
        %1149 = vmatpush1.bf16.xpose.msra.mxu0 0
        %1150 = vmatprep.subr.bf16.mxu0 0
        %1151 = vmatpush1.bf16.xpose.msra.mxu0 0
        %1152 = vmatprep.subr.bf16.mxu0 0
        %1153 = vmatpush1.bf16.xpose.msra.mxu0 0
        %1154 = vmatprep.subr.bf16.mxu0 0
        %1155 = vmatpush1.bf16.xpose.msra.mxu0 0
        %1156 = vmatprep.subr.bf16.mxu0 0
        %1157 = vmatpush1.bf16.xpose.msra.mxu0 0
        %1158 = vmatprep.mubr.bf16.mxu0 0
        %1159 = vmatmul.mubr.bf16.gmra.mrb[0].mxu0 %v1121
        %v1160 = vpop.f32.mrb[0].mxu0
        %v1161 = vadd.f32 0.0, %v1160
        %v1162 = vpop.f32.mrb[0].mxu0
        %v1163 = vpop.f32.mrb[0].mxu0
        %v1164 = vpop.f32.mrb[0].mxu0
        %1165 = vdwg.mxu0
        %1166 = vrot.lane.b32.xlu0 %v424, 116
        %v1167 = vpop.permute.xlu0 %1166
        %1168 = vrot.lane.b32.xlu0 %v424, 84
        %v1169 = vpop.permute.xlu0 %1168
        %v1171 = vsel %vm428, %v1167, 0
        %v1174 = vsel %vm428, %v1169, 0
        %1176 = vmatprep.subr.bf16.mxu0 0
        %1177 = vmatpush1.bf16.xpose.msra.mxu0 %v1174
        %1178 = vmatprep.subr.bf16.mxu0 0
        %1179 = vmatpush1.bf16.xpose.msra.mxu0 0
        %1180 = vmatprep.subr.bf16.mxu0 0
        %1181 = vmatpush1.bf16.xpose.msra.mxu0 0
        %1182 = vmatprep.subr.bf16.mxu0 0
        %1183 = vmatpush1.bf16.xpose.msra.mxu0 0
        %1184 = vmatprep.subr.bf16.mxu0 0
        %1185 = vmatpush1.bf16.xpose.msra.mxu0 0
        %1186 = vmatprep.subr.bf16.mxu0 0
        %1187 = vmatpush1.bf16.xpose.msra.mxu0 0
        %1188 = vmatprep.subr.bf16.mxu0 0
        %1189 = vmatpush1.bf16.xpose.msra.mxu0 0
        %1190 = vmatprep.subr.bf16.mxu0 0
        %1191 = vmatpush1.bf16.xpose.msra.mxu0 0
        %1192 = vmatprep.subr.bf16.mxu0 0
        %1193 = vmatpush1.bf16.xpose.msra.mxu0 0
        %1194 = vmatprep.subr.bf16.mxu0 0
        %1195 = vmatpush1.bf16.xpose.msra.mxu0 0
        %1196 = vmatprep.subr.bf16.mxu0 0
        %1197 = vmatpush1.bf16.xpose.msra.mxu0 0
        %1198 = vmatprep.subr.bf16.mxu0 0
        %1199 = vmatpush1.bf16.xpose.msra.mxu0 0
        %1200 = vmatprep.subr.bf16.mxu0 0
        %1201 = vmatpush1.bf16.xpose.msra.mxu0 0
        %1202 = vmatprep.subr.bf16.mxu0 0
        %1203 = vmatpush1.bf16.xpose.msra.mxu0 0
        %1204 = vmatprep.subr.bf16.mxu0 0
        %1205 = vmatpush1.bf16.xpose.msra.mxu0 0
        %1206 = vmatprep.subr.bf16.mxu0 0
        %1207 = vmatpush1.bf16.xpose.msra.mxu0 0
        %1208 = vmatprep.mubr.bf16.mxu0 0
        %1209 = vmatmul.mubr.bf16.gmra.mrb[0].mxu0 %v1171
        %v1210 = vpop.f32.mrb[0].mxu0
        %v1211 = vadd.f32 0.0, %v1210
        %v1212 = vpop.f32.mrb[0].mxu0
        %v1213 = vpop.f32.mrb[0].mxu0
        %v1214 = vpop.f32.mrb[0].mxu0
        %1215 = vdwg.mxu0
        %v1216 = vmul.f32 %v1161, 0.5
        %v1217 = vmul.f32 %v1211, 0.5
        %v1218 = vsel %vm526, %v1216, -inf
        %1219 = vmax.xlane.f32.xlu0 %v1218
        %v1220 = vpop.xlane.xlu0 %1219
        %v1221 = vsel %vm526, %v1217, -inf
        %1222 = vmax.xlane.f32.xlu0 %v1221
        %v1223 = vpop.xlane.xlu0 %1222
        %v1224 = vsub.f32 %v1216, %v1220
        %v1225 = vsub.f32 %v1217, %v1223
        %v1226 = vmul.f32 %v1224, 1.442695
        %v1227 = vpow.pop %v1226
        %v1228 = vmul.f32 %v1225, 1.442695
        %v1229 = vpow.pop %v1228
        %v1230 = vsel %vm526, %v1227, 0.0
        %1231 = vadd.xlane.f32.xlu0 %v1230
        %v1232 = vpop.xlane.xlu0 %1231
        %v1233 = vsel %vm526, %v1229, 0.0
        %1234 = vadd.xlane.f32.xlu0 %v1233
        %v1235 = vpop.xlane.xlu0 %1234
        %v1236 = vrcp.pop %v1232
        %v1237 = vrcp.pop %v1235
        %v1238 = vmul.f32 %v1227, %v1236
        %v1239 = vmul.f32 %v1229, %v1237
        %v1240 = vpack.c.bf16 %v1238, %v1238
        %v1241 = vpack.c.bf16 %v1239, %v1239
        %1242 = vrot.lane.b32.xlu0 %v423, 52
        %v1243 = vpop.permute.xlu0 %1242
        %v1245 = vsel %vm526, %v1240, 0
        %v1248 = vsel %vm556, %v1243, 0
        %1250 = vmatprep.subr.bf16.mxu0 0
        %1251 = vmatpush1.bf16.msra.mxu0 %v1248
        %1252 = vmatprep.subr.bf16.mxu0 0
        %1253 = vmatpush1.bf16.msra.mxu0 0
        %1254 = vmatprep.subr.bf16.mxu0 0
        %1255 = vmatpush1.bf16.msra.mxu0 0
        %1256 = vmatprep.subr.bf16.mxu0 0
        %1257 = vmatpush1.bf16.msra.mxu0 0
        %1258 = vmatprep.subr.bf16.mxu0 0
        %1259 = vmatpush1.bf16.msra.mxu0 0
        %1260 = vmatprep.subr.bf16.mxu0 0
        %1261 = vmatpush1.bf16.msra.mxu0 0
        %1262 = vmatprep.subr.bf16.mxu0 0
        %1263 = vmatpush1.bf16.msra.mxu0 0
        %1264 = vmatprep.subr.bf16.mxu0 0
        %1265 = vmatpush1.bf16.msra.mxu0 0
        %1266 = vmatprep.subr.bf16.mxu0 0
        %1267 = vmatpush1.bf16.msra.mxu0 0
        %1268 = vmatprep.subr.bf16.mxu0 0
        %1269 = vmatpush1.bf16.msra.mxu0 0
        %1270 = vmatprep.subr.bf16.mxu0 0
        %1271 = vmatpush1.bf16.msra.mxu0 0
        %1272 = vmatprep.subr.bf16.mxu0 0
        %1273 = vmatpush1.bf16.msra.mxu0 0
        %1274 = vmatprep.subr.bf16.mxu0 0
        %1275 = vmatpush1.bf16.msra.mxu0 0
        %1276 = vmatprep.subr.bf16.mxu0 0
        %1277 = vmatpush1.bf16.msra.mxu0 0
        %1278 = vmatprep.subr.bf16.mxu0 0
        %1279 = vmatpush1.bf16.msra.mxu0 0
        %1280 = vmatprep.subr.bf16.mxu0 0
        %1281 = vmatpush1.bf16.msra.mxu0 0
        %1282 = vmatprep.mubr.bf16.mxu0 0
        %1283 = vmatmul.mubr.bf16.gmra.mrb[0].mxu0 %v1245
        %v1284 = vpop.f32.mrb[0].mxu0
        %v1285 = vadd.f32 0.0, %v1284
        %v1286 = vpop.f32.mrb[0].mxu0
        %v1287 = vpop.f32.mrb[0].mxu0
        %v1288 = vpop.f32.mrb[0].mxu0
        %1289 = vdwg.mxu0
        %1290 = vrot.lane.b32.xlu0 %v424, 52
        %v1291 = vpop.permute.xlu0 %1290
        %v1293 = vsel %vm526, %v1241, 0
        %v1296 = vsel %vm556, %v1291, 0
        %1298 = vmatprep.subr.bf16.mxu0 0
        %1299 = vmatpush1.bf16.msra.mxu0 %v1296
        %1300 = vmatprep.subr.bf16.mxu0 0
        %1301 = vmatpush1.bf16.msra.mxu0 0
        %1302 = vmatprep.subr.bf16.mxu0 0
        %1303 = vmatpush1.bf16.msra.mxu0 0
        %1304 = vmatprep.subr.bf16.mxu0 0
        %1305 = vmatpush1.bf16.msra.mxu0 0
        %1306 = vmatprep.subr.bf16.mxu0 0
        %1307 = vmatpush1.bf16.msra.mxu0 0
        %1308 = vmatprep.subr.bf16.mxu0 0
        %1309 = vmatpush1.bf16.msra.mxu0 0
        %1310 = vmatprep.subr.bf16.mxu0 0
        %1311 = vmatpush1.bf16.msra.mxu0 0
        %1312 = vmatprep.subr.bf16.mxu0 0
        %1313 = vmatpush1.bf16.msra.mxu0 0
        %1314 = vmatprep.subr.bf16.mxu0 0
        %1315 = vmatpush1.bf16.msra.mxu0 0
        %1316 = vmatprep.subr.bf16.mxu0 0
        %1317 = vmatpush1.bf16.msra.mxu0 0
        %1318 = vmatprep.subr.bf16.mxu0 0
        %1319 = vmatpush1.bf16.msra.mxu0 0
        %1320 = vmatprep.subr.bf16.mxu0 0
        %1321 = vmatpush1.bf16.msra.mxu0 0
        %1322 = vmatprep.subr.bf16.mxu0 0
        %1323 = vmatpush1.bf16.msra.mxu0 0
        %1324 = vmatprep.subr.bf16.mxu0 0
        %1325 = vmatpush1.bf16.msra.mxu0 0
        %1326 = vmatprep.subr.bf16.mxu0 0
        %1327 = vmatpush1.bf16.msra.mxu0 0
        %1328 = vmatprep.subr.bf16.mxu0 0
        %1329 = vmatpush1.bf16.msra.mxu0 0
        %1330 = vmatprep.mubr.bf16.mxu0 0
        %1331 = vmatmul.mubr.bf16.gmra.mrb[0].mxu0 %v1293
        %v1332 = vpop.f32.mrb[0].mxu0
        %v1333 = vadd.f32 0.0, %v1332
        %v1334 = vpop.f32.mrb[0].mxu0
        %v1335 = vpop.f32.mrb[0].mxu0
        %v1336 = vpop.f32.mrb[0].mxu0
        %1337 = vdwg.mxu0
        %1340 = vrot.lane.b32.xlu0 %v1285, 12
        %v1341 = vpop.permute.xlu0 %1340
        %1342 = vrot.lane.b32.xlu0 %v1333, 12
        %v1343 = vpop.permute.xlu0 %1342
        %vm1346 = vcmask 130144
        %1347 = vst.msk [vmem:[#allocation3] sm:$0xff] %vm1346, %v1341
        %1348 = vst.msk [vmem:[#allocation3 + $0x8] sm:$0xff] %vm1346, %v1343
        %1349 = vrot.lane.b32.xlu0 %v423, 112
        %v1350 = vpop.permute.xlu0 %1349
        %1351 = vrot.lane.b32.xlu0 %v423, 80
        %v1352 = vpop.permute.xlu0 %1351
        %v1354 = vsel %vm428, %v1350, 0
        %v1357 = vsel %vm428, %v1352, 0
        %1359 = vmatprep.subr.bf16.mxu0 0
        %1360 = vmatpush1.bf16.xpose.msra.mxu0 %v1357
        %1361 = vmatprep.subr.bf16.mxu0 0
        %1362 = vmatpush1.bf16.xpose.msra.mxu0 0
        %1363 = vmatprep.subr.bf16.mxu0 0
        %1364 = vmatpush1.bf16.xpose.msra.mxu0 0
        %1365 = vmatprep.subr.bf16.mxu0 0
        %1366 = vmatpush1.bf16.xpose.msra.mxu0 0
        %1367 = vmatprep.subr.bf16.mxu0 0
        %1368 = vmatpush1.bf16.xpose.msra.mxu0 0
        %1369 = vmatprep.subr.bf16.mxu0 0
        %1370 = vmatpush1.bf16.xpose.msra.mxu0 0
        %1371 = vmatprep.subr.bf16.mxu0 0
        %1372 = vmatpush1.bf16.xpose.msra.mxu0 0
        %1373 = vmatprep.subr.bf16.mxu0 0
        %1374 = vmatpush1.bf16.xpose.msra.mxu0 0
        %1375 = vmatprep.subr.bf16.mxu0 0
        %1376 = vmatpush1.bf16.xpose.msra.mxu0 0
        %1377 = vmatprep.subr.bf16.mxu0 0
        %1378 = vmatpush1.bf16.xpose.msra.mxu0 0
        %1379 = vmatprep.subr.bf16.mxu0 0
        %1380 = vmatpush1.bf16.xpose.msra.mxu0 0
        %1381 = vmatprep.subr.bf16.mxu0 0
        %1382 = vmatpush1.bf16.xpose.msra.mxu0 0
        %1383 = vmatprep.subr.bf16.mxu0 0
        %1384 = vmatpush1.bf16.xpose.msra.mxu0 0
        %1385 = vmatprep.subr.bf16.mxu0 0
        %1386 = vmatpush1.bf16.xpose.msra.mxu0 0
        %1387 = vmatprep.subr.bf16.mxu0 0
        %1388 = vmatpush1.bf16.xpose.msra.mxu0 0
        %1389 = vmatprep.subr.bf16.mxu0 0
        %1390 = vmatpush1.bf16.xpose.msra.mxu0 0
        %1391 = vmatprep.mubr.bf16.mxu0 0
        %1392 = vmatmul.mubr.bf16.gmra.mrb[0].mxu0 %v1354
        %v1393 = vpop.f32.mrb[0].mxu0
        %v1394 = vadd.f32 0.0, %v1393
        %v1395 = vpop.f32.mrb[0].mxu0
        %v1396 = vpop.f32.mrb[0].mxu0
        %v1397 = vpop.f32.mrb[0].mxu0
        %1398 = vdwg.mxu0
        %1399 = vrot.lane.b32.xlu0 %v424, 112
        %v1400 = vpop.permute.xlu0 %1399
        %1401 = vrot.lane.b32.xlu0 %v424, 80
        %v1402 = vpop.permute.xlu0 %1401
        %v1404 = vsel %vm428, %v1400, 0
        %v1407 = vsel %vm428, %v1402, 0
        %1409 = vmatprep.subr.bf16.mxu0 0
        %1410 = vmatpush1.bf16.xpose.msra.mxu0 %v1407
        %1411 = vmatprep.subr.bf16.mxu0 0
        %1412 = vmatpush1.bf16.xpose.msra.mxu0 0
        %1413 = vmatprep.subr.bf16.mxu0 0
        %1414 = vmatpush1.bf16.xpose.msra.mxu0 0
        %1415 = vmatprep.subr.bf16.mxu0 0
        %1416 = vmatpush1.bf16.xpose.msra.mxu0 0
        %1417 = vmatprep.subr.bf16.mxu0 0
        %1418 = vmatpush1.bf16.xpose.msra.mxu0 0
        %1419 = vmatprep.subr.bf16.mxu0 0
        %1420 = vmatpush1.bf16.xpose.msra.mxu0 0
        %1421 = vmatprep.subr.bf16.mxu0 0
        %1422 = vmatpush1.bf16.xpose.msra.mxu0 0
        %1423 = vmatprep.subr.bf16.mxu0 0
        %1424 = vmatpush1.bf16.xpose.msra.mxu0 0
        %1425 = vmatprep.subr.bf16.mxu0 0
        %1426 = vmatpush1.bf16.xpose.msra.mxu0 0
        %1427 = vmatprep.subr.bf16.mxu0 0
        %1428 = vmatpush1.bf16.xpose.msra.mxu0 0
        %1429 = vmatprep.subr.bf16.mxu0 0
        %1430 = vmatpush1.bf16.xpose.msra.mxu0 0
        %1431 = vmatprep.subr.bf16.mxu0 0
        %1432 = vmatpush1.bf16.xpose.msra.mxu0 0
        %1433 = vmatprep.subr.bf16.mxu0 0
        %1434 = vmatpush1.bf16.xpose.msra.mxu0 0
        %1435 = vmatprep.subr.bf16.mxu0 0
        %1436 = vmatpush1.bf16.xpose.msra.mxu0 0
        %1437 = vmatprep.subr.bf16.mxu0 0
        %1438 = vmatpush1.bf16.xpose.msra.mxu0 0
        %1439 = vmatprep.subr.bf16.mxu0 0
        %1440 = vmatpush1.bf16.xpose.msra.mxu0 0
        %1441 = vmatprep.mubr.bf16.mxu0 0
        %1442 = vmatmul.mubr.bf16.gmra.mrb[0].mxu0 %v1404
        %v1443 = vpop.f32.mrb[0].mxu0
        %v1444 = vadd.f32 0.0, %v1443
        %v1445 = vpop.f32.mrb[0].mxu0
        %v1446 = vpop.f32.mrb[0].mxu0
        %v1447 = vpop.f32.mrb[0].mxu0
        %1448 = vdwg.mxu0
        %v1449 = vmul.f32 %v1394, 0.5
        %v1450 = vmul.f32 %v1444, 0.5
        %v1451 = vsel %vm526, %v1449, -inf
        %1452 = vmax.xlane.f32.xlu0 %v1451
        %v1453 = vpop.xlane.xlu0 %1452
        %v1454 = vsel %vm526, %v1450, -inf
        %1455 = vmax.xlane.f32.xlu0 %v1454
        %v1456 = vpop.xlane.xlu0 %1455
        %v1457 = vsub.f32 %v1449, %v1453
        %v1458 = vsub.f32 %v1450, %v1456
        %v1459 = vmul.f32 %v1457, 1.442695
        %v1460 = vpow.pop %v1459
        %v1461 = vmul.f32 %v1458, 1.442695
        %v1462 = vpow.pop %v1461
        %v1463 = vsel %vm526, %v1460, 0.0
        %1464 = vadd.xlane.f32.xlu0 %v1463
        %v1465 = vpop.xlane.xlu0 %1464
        %v1466 = vsel %vm526, %v1462, 0.0
        %1467 = vadd.xlane.f32.xlu0 %v1466
        %v1468 = vpop.xlane.xlu0 %1467
        %v1469 = vrcp.pop %v1465
        %v1470 = vrcp.pop %v1468
        %v1471 = vmul.f32 %v1460, %v1469
        %v1472 = vmul.f32 %v1462, %v1470
        %v1473 = vpack.c.bf16 %v1471, %v1471
        %v1474 = vpack.c.bf16 %v1472, %v1472
        %1475 = vrot.lane.b32.xlu0 %v423, 48
        %v1476 = vpop.permute.xlu0 %1475
        %v1478 = vsel %vm526, %v1473, 0
        %v1481 = vsel %vm556, %v1476, 0
        %1483 = vmatprep.subr.bf16.mxu0 0
        %1484 = vmatpush1.bf16.msra.mxu0 %v1481
        %1485 = vmatprep.subr.bf16.mxu0 0
        %1486 = vmatpush1.bf16.msra.mxu0 0
        %1487 = vmatprep.subr.bf16.mxu0 0
        %1488 = vmatpush1.bf16.msra.mxu0 0
        %1489 = vmatprep.subr.bf16.mxu0 0
        %1490 = vmatpush1.bf16.msra.mxu0 0
        %1491 = vmatprep.subr.bf16.mxu0 0
        %1492 = vmatpush1.bf16.msra.mxu0 0
        %1493 = vmatprep.subr.bf16.mxu0 0
        %1494 = vmatpush1.bf16.msra.mxu0 0
        %1495 = vmatprep.subr.bf16.mxu0 0
        %1496 = vmatpush1.bf16.msra.mxu0 0
        %1497 = vmatprep.subr.bf16.mxu0 0
        %1498 = vmatpush1.bf16.msra.mxu0 0
        %1499 = vmatprep.subr.bf16.mxu0 0
        %1500 = vmatpush1.bf16.msra.mxu0 0
        %1501 = vmatprep.subr.bf16.mxu0 0
        %1502 = vmatpush1.bf16.msra.mxu0 0
        %1503 = vmatprep.subr.bf16.mxu0 0
        %1504 = vmatpush1.bf16.msra.mxu0 0
        %1505 = vmatprep.subr.bf16.mxu0 0
        %1506 = vmatpush1.bf16.msra.mxu0 0
        %1507 = vmatprep.subr.bf16.mxu0 0
        %1508 = vmatpush1.bf16.msra.mxu0 0
        %1509 = vmatprep.subr.bf16.mxu0 0
        %1510 = vmatpush1.bf16.msra.mxu0 0
        %1511 = vmatprep.subr.bf16.mxu0 0
        %1512 = vmatpush1.bf16.msra.mxu0 0
        %1513 = vmatprep.subr.bf16.mxu0 0
        %1514 = vmatpush1.bf16.msra.mxu0 0
        %1515 = vmatprep.mubr.bf16.mxu0 0
        %1516 = vmatmul.mubr.bf16.gmra.mrb[0].mxu0 %v1478
        %v1517 = vpop.f32.mrb[0].mxu0
        %v1518 = vadd.f32 0.0, %v1517
        %v1519 = vpop.f32.mrb[0].mxu0
        %v1520 = vpop.f32.mrb[0].mxu0
        %v1521 = vpop.f32.mrb[0].mxu0
        %1522 = vdwg.mxu0
        %1523 = vrot.lane.b32.xlu0 %v424, 48
        %v1524 = vpop.permute.xlu0 %1523
        %v1526 = vsel %vm526, %v1474, 0
        %v1529 = vsel %vm556, %v1524, 0
        %1531 = vmatprep.subr.bf16.mxu0 0
        %1532 = vmatpush1.bf16.msra.mxu0 %v1529
        %1533 = vmatprep.subr.bf16.mxu0 0
        %1534 = vmatpush1.bf16.msra.mxu0 0
        %1535 = vmatprep.subr.bf16.mxu0 0
        %1536 = vmatpush1.bf16.msra.mxu0 0
        %1537 = vmatprep.subr.bf16.mxu0 0
        %1538 = vmatpush1.bf16.msra.mxu0 0
        %1539 = vmatprep.subr.bf16.mxu0 0
        %1540 = vmatpush1.bf16.msra.mxu0 0
        %1541 = vmatprep.subr.bf16.mxu0 0
        %1542 = vmatpush1.bf16.msra.mxu0 0
        %1543 = vmatprep.subr.bf16.mxu0 0
        %1544 = vmatpush1.bf16.msra.mxu0 0
        %1545 = vmatprep.subr.bf16.mxu0 0
        %1546 = vmatpush1.bf16.msra.mxu0 0
        %1547 = vmatprep.subr.bf16.mxu0 0
        %1548 = vmatpush1.bf16.msra.mxu0 0
        %1549 = vmatprep.subr.bf16.mxu0 0
        %1550 = vmatpush1.bf16.msra.mxu0 0
        %1551 = vmatprep.subr.bf16.mxu0 0
        %1552 = vmatpush1.bf16.msra.mxu0 0
        %1553 = vmatprep.subr.bf16.mxu0 0
        %1554 = vmatpush1.bf16.msra.mxu0 0
        %1555 = vmatprep.subr.bf16.mxu0 0
        %1556 = vmatpush1.bf16.msra.mxu0 0
        %1557 = vmatprep.subr.bf16.mxu0 0
        %1558 = vmatpush1.bf16.msra.mxu0 0
        %1559 = vmatprep.subr.bf16.mxu0 0
        %1560 = vmatpush1.bf16.msra.mxu0 0
        %1561 = vmatprep.subr.bf16.mxu0 0
        %1562 = vmatpush1.bf16.msra.mxu0 0
        %1563 = vmatprep.mubr.bf16.mxu0 0
        %1564 = vmatmul.mubr.bf16.gmra.mrb[0].mxu0 %v1526
        %v1565 = vpop.f32.mrb[0].mxu0
        %v1566 = vadd.f32 0.0, %v1565
        %v1567 = vpop.f32.mrb[0].mxu0
        %v1568 = vpop.f32.mrb[0].mxu0
        %v1569 = vpop.f32.mrb[0].mxu0
        %1570 = vdwg.mxu0
        %1573 = vrot.lane.b32.xlu0 %v1518, 16
        %v1574 = vpop.permute.xlu0 %1573
        %1575 = vrot.lane.b32.xlu0 %v1566, 16
        %v1576 = vpop.permute.xlu0 %1575
        %vm1579 = vcmask 162944
        %1580 = vst.msk [vmem:[#allocation3] sm:$0xff] %vm1579, %v1574
        %1581 = vst.msk [vmem:[#allocation3 + $0x8] sm:$0xff] %vm1579, %v1576
        %1582 = vrot.lane.b32.xlu0 %v423, 108
        %v1583 = vpop.permute.xlu0 %1582
        %1584 = vrot.lane.b32.xlu0 %v423, 76
        %v1585 = vpop.permute.xlu0 %1584
        %v1587 = vsel %vm428, %v1583, 0
        %v1590 = vsel %vm428, %v1585, 0
        %1592 = vmatprep.subr.bf16.mxu0 0
        %1593 = vmatpush1.bf16.xpose.msra.mxu0 %v1590
        %1594 = vmatprep.subr.bf16.mxu0 0
        %1595 = vmatpush1.bf16.xpose.msra.mxu0 0
        %1596 = vmatprep.subr.bf16.mxu0 0
        %1597 = vmatpush1.bf16.xpose.msra.mxu0 0
        %1598 = vmatprep.subr.bf16.mxu0 0
        %1599 = vmatpush1.bf16.xpose.msra.mxu0 0
        %1600 = vmatprep.subr.bf16.mxu0 0
        %1601 = vmatpush1.bf16.xpose.msra.mxu0 0
        %1602 = vmatprep.subr.bf16.mxu0 0
        %1603 = vmatpush1.bf16.xpose.msra.mxu0 0
        %1604 = vmatprep.subr.bf16.mxu0 0
        %1605 = vmatpush1.bf16.xpose.msra.mxu0 0
        %1606 = vmatprep.subr.bf16.mxu0 0
        %1607 = vmatpush1.bf16.xpose.msra.mxu0 0
        %1608 = vmatprep.subr.bf16.mxu0 0
        %1609 = vmatpush1.bf16.xpose.msra.mxu0 0
        %1610 = vmatprep.subr.bf16.mxu0 0
        %1611 = vmatpush1.bf16.xpose.msra.mxu0 0
        %1612 = vmatprep.subr.bf16.mxu0 0
        %1613 = vmatpush1.bf16.xpose.msra.mxu0 0
        %1614 = vmatprep.subr.bf16.mxu0 0
        %1615 = vmatpush1.bf16.xpose.msra.mxu0 0
        %1616 = vmatprep.subr.bf16.mxu0 0
        %1617 = vmatpush1.bf16.xpose.msra.mxu0 0
        %1618 = vmatprep.subr.bf16.mxu0 0
        %1619 = vmatpush1.bf16.xpose.msra.mxu0 0
        %1620 = vmatprep.subr.bf16.mxu0 0
        %1621 = vmatpush1.bf16.xpose.msra.mxu0 0
        %1622 = vmatprep.subr.bf16.mxu0 0
        %1623 = vmatpush1.bf16.xpose.msra.mxu0 0
        %1624 = vmatprep.mubr.bf16.mxu0 0
        %1625 = vmatmul.mubr.bf16.gmra.mrb[0].mxu0 %v1587
        %v1626 = vpop.f32.mrb[0].mxu0
        %v1627 = vadd.f32 0.0, %v1626
        %v1628 = vpop.f32.mrb[0].mxu0
        %v1629 = vpop.f32.mrb[0].mxu0
        %v1630 = vpop.f32.mrb[0].mxu0
        %1631 = vdwg.mxu0
        %1632 = vrot.lane.b32.xlu0 %v424, 108
        %v1633 = vpop.permute.xlu0 %1632
        %1634 = vrot.lane.b32.xlu0 %v424, 76
        %v1635 = vpop.permute.xlu0 %1634
        %v1637 = vsel %vm428, %v1633, 0
        %v1640 = vsel %vm428, %v1635, 0
        %1642 = vmatprep.subr.bf16.mxu0 0
        %1643 = vmatpush1.bf16.xpose.msra.mxu0 %v1640
        %1644 = vmatprep.subr.bf16.mxu0 0
        %1645 = vmatpush1.bf16.xpose.msra.mxu0 0
        %1646 = vmatprep.subr.bf16.mxu0 0
        %1647 = vmatpush1.bf16.xpose.msra.mxu0 0
        %1648 = vmatprep.subr.bf16.mxu0 0
        %1649 = vmatpush1.bf16.xpose.msra.mxu0 0
        %1650 = vmatprep.subr.bf16.mxu0 0
        %1651 = vmatpush1.bf16.xpose.msra.mxu0 0
        %1652 = vmatprep.subr.bf16.mxu0 0
        %1653 = vmatpush1.bf16.xpose.msra.mxu0 0
        %1654 = vmatprep.subr.bf16.mxu0 0
        %1655 = vmatpush1.bf16.xpose.msra.mxu0 0
        %1656 = vmatprep.subr.bf16.mxu0 0
        %1657 = vmatpush1.bf16.xpose.msra.mxu0 0
        %1658 = vmatprep.subr.bf16.mxu0 0
        %1659 = vmatpush1.bf16.xpose.msra.mxu0 0
        %1660 = vmatprep.subr.bf16.mxu0 0
        %1661 = vmatpush1.bf16.xpose.msra.mxu0 0
        %1662 = vmatprep.subr.bf16.mxu0 0
        %1663 = vmatpush1.bf16.xpose.msra.mxu0 0
        %1664 = vmatprep.subr.bf16.mxu0 0
        %1665 = vmatpush1.bf16.xpose.msra.mxu0 0
        %1666 = vmatprep.subr.bf16.mxu0 0
        %1667 = vmatpush1.bf16.xpose.msra.mxu0 0
        %1668 = vmatprep.subr.bf16.mxu0 0
        %1669 = vmatpush1.bf16.xpose.msra.mxu0 0
        %1670 = vmatprep.subr.bf16.mxu0 0
        %1671 = vmatpush1.bf16.xpose.msra.mxu0 0
        %1672 = vmatprep.subr.bf16.mxu0 0
        %1673 = vmatpush1.bf16.xpose.msra.mxu0 0
        %1674 = vmatprep.mubr.bf16.mxu0 0
        %1675 = vmatmul.mubr.bf16.gmra.mrb[0].mxu0 %v1637
        %v1676 = vpop.f32.mrb[0].mxu0
        %v1677 = vadd.f32 0.0, %v1676
        %v1678 = vpop.f32.mrb[0].mxu0
        %v1679 = vpop.f32.mrb[0].mxu0
        %v1680 = vpop.f32.mrb[0].mxu0
        %1681 = vdwg.mxu0
        %v1682 = vmul.f32 %v1627, 0.5
        %v1683 = vmul.f32 %v1677, 0.5
        %v1684 = vsel %vm526, %v1682, -inf
        %1685 = vmax.xlane.f32.xlu0 %v1684
        %v1686 = vpop.xlane.xlu0 %1685
        %v1687 = vsel %vm526, %v1683, -inf
        %1688 = vmax.xlane.f32.xlu0 %v1687
        %v1689 = vpop.xlane.xlu0 %1688
        %v1690 = vsub.f32 %v1682, %v1686
        %v1691 = vsub.f32 %v1683, %v1689
        %v1692 = vmul.f32 %v1690, 1.442695
        %v1693 = vpow.pop %v1692
        %v1694 = vmul.f32 %v1691, 1.442695
        %v1695 = vpow.pop %v1694
        %v1696 = vsel %vm526, %v1693, 0.0
        %1697 = vadd.xlane.f32.xlu0 %v1696
        %v1698 = vpop.xlane.xlu0 %1697
        %v1699 = vsel %vm526, %v1695, 0.0
        %1700 = vadd.xlane.f32.xlu0 %v1699
        %v1701 = vpop.xlane.xlu0 %1700
        %v1702 = vrcp.pop %v1698
        %v1703 = vrcp.pop %v1701
        %v1704 = vmul.f32 %v1693, %v1702
        %v1705 = vmul.f32 %v1695, %v1703
        %v1706 = vpack.c.bf16 %v1704, %v1704
        %v1707 = vpack.c.bf16 %v1705, %v1705
        %1708 = vrot.lane.b32.xlu0 %v423, 44
        %v1709 = vpop.permute.xlu0 %1708
        %v1711 = vsel %vm526, %v1706, 0
        %v1714 = vsel %vm556, %v1709, 0
        %1716 = vmatprep.subr.bf16.mxu0 0
        %1717 = vmatpush1.bf16.msra.mxu0 %v1714
        %1718 = vmatprep.subr.bf16.mxu0 0
        %1719 = vmatpush1.bf16.msra.mxu0 0
        %1720 = vmatprep.subr.bf16.mxu0 0
        %1721 = vmatpush1.bf16.msra.mxu0 0
        %1722 = vmatprep.subr.bf16.mxu0 0
        %1723 = vmatpush1.bf16.msra.mxu0 0
        %1724 = vmatprep.subr.bf16.mxu0 0
        %1725 = vmatpush1.bf16.msra.mxu0 0
        %1726 = vmatprep.subr.bf16.mxu0 0
        %1727 = vmatpush1.bf16.msra.mxu0 0
        %1728 = vmatprep.subr.bf16.mxu0 0
        %1729 = vmatpush1.bf16.msra.mxu0 0
        %1730 = vmatprep.subr.bf16.mxu0 0
        %1731 = vmatpush1.bf16.msra.mxu0 0
        %1732 = vmatprep.subr.bf16.mxu0 0
        %1733 = vmatpush1.bf16.msra.mxu0 0
        %1734 = vmatprep.subr.bf16.mxu0 0
        %1735 = vmatpush1.bf16.msra.mxu0 0
        %1736 = vmatprep.subr.bf16.mxu0 0
        %1737 = vmatpush1.bf16.msra.mxu0 0
        %1738 = vmatprep.subr.bf16.mxu0 0
        %1739 = vmatpush1.bf16.msra.mxu0 0
        %1740 = vmatprep.subr.bf16.mxu0 0
        %1741 = vmatpush1.bf16.msra.mxu0 0
        %1742 = vmatprep.subr.bf16.mxu0 0
        %1743 = vmatpush1.bf16.msra.mxu0 0
        %1744 = vmatprep.subr.bf16.mxu0 0
        %1745 = vmatpush1.bf16.msra.mxu0 0
        %1746 = vmatprep.subr.bf16.mxu0 0
        %1747 = vmatpush1.bf16.msra.mxu0 0
        %1748 = vmatprep.mubr.bf16.mxu0 0
        %1749 = vmatmul.mubr.bf16.gmra.mrb[0].mxu0 %v1711
        %v1750 = vpop.f32.mrb[0].mxu0
        %v1751 = vadd.f32 0.0, %v1750
        %v1752 = vpop.f32.mrb[0].mxu0
        %v1753 = vpop.f32.mrb[0].mxu0
        %v1754 = vpop.f32.mrb[0].mxu0
        %1755 = vdwg.mxu0
        %1756 = vrot.lane.b32.xlu0 %v424, 44
        %v1757 = vpop.permute.xlu0 %1756
        %v1759 = vsel %vm526, %v1707, 0
        %v1762 = vsel %vm556, %v1757, 0
        %1764 = vmatprep.subr.bf16.mxu0 0
        %1765 = vmatpush1.bf16.msra.mxu0 %v1762
        %1766 = vmatprep.subr.bf16.mxu0 0
        %1767 = vmatpush1.bf16.msra.mxu0 0
        %1768 = vmatprep.subr.bf16.mxu0 0
        %1769 = vmatpush1.bf16.msra.mxu0 0
        %1770 = vmatprep.subr.bf16.mxu0 0
        %1771 = vmatpush1.bf16.msra.mxu0 0
        %1772 = vmatprep.subr.bf16.mxu0 0
        %1773 = vmatpush1.bf16.msra.mxu0 0
        %1774 = vmatprep.subr.bf16.mxu0 0
        %1775 = vmatpush1.bf16.msra.mxu0 0
        %1776 = vmatprep.subr.bf16.mxu0 0
        %1777 = vmatpush1.bf16.msra.mxu0 0
        %1778 = vmatprep.subr.bf16.mxu0 0
        %1779 = vmatpush1.bf16.msra.mxu0 0
        %1780 = vmatprep.subr.bf16.mxu0 0
        %1781 = vmatpush1.bf16.msra.mxu0 0
        %1782 = vmatprep.subr.bf16.mxu0 0
        %1783 = vmatpush1.bf16.msra.mxu0 0
        %1784 = vmatprep.subr.bf16.mxu0 0
        %1785 = vmatpush1.bf16.msra.mxu0 0
        %1786 = vmatprep.subr.bf16.mxu0 0
        %1787 = vmatpush1.bf16.msra.mxu0 0
        %1788 = vmatprep.subr.bf16.mxu0 0
        %1789 = vmatpush1.bf16.msra.mxu0 0
        %1790 = vmatprep.subr.bf16.mxu0 0
        %1791 = vmatpush1.bf16.msra.mxu0 0
        %1792 = vmatprep.subr.bf16.mxu0 0
        %1793 = vmatpush1.bf16.msra.mxu0 0
        %1794 = vmatprep.subr.bf16.mxu0 0
        %1795 = vmatpush1.bf16.msra.mxu0 0
        %1796 = vmatprep.mubr.bf16.mxu0 0
        %1797 = vmatmul.mubr.bf16.gmra.mrb[0].mxu0 %v1759
        %v1798 = vpop.f32.mrb[0].mxu0
        %v1799 = vadd.f32 0.0, %v1798
        %v1800 = vpop.f32.mrb[0].mxu0
        %v1801 = vpop.f32.mrb[0].mxu0
        %v1802 = vpop.f32.mrb[0].mxu0
        %1803 = vdwg.mxu0
        %1806 = vrot.lane.b32.xlu0 %v1751, 20
        %v1807 = vpop.permute.xlu0 %1806
        %1808 = vrot.lane.b32.xlu0 %v1799, 20
        %v1809 = vpop.permute.xlu0 %1808
        %vm1812 = vcmask 195744
        %1813 = vst.msk [vmem:[#allocation3] sm:$0xff] %vm1812, %v1807
        %1814 = vst.msk [vmem:[#allocation3 + $0x8] sm:$0xff] %vm1812, %v1809
        %1815 = vrot.lane.b32.xlu0 %v423, 104
        %v1816 = vpop.permute.xlu0 %1815
        %1817 = vrot.lane.b32.xlu0 %v423, 72
        %v1818 = vpop.permute.xlu0 %1817
        %v1820 = vsel %vm428, %v1816, 0
        %v1823 = vsel %vm428, %v1818, 0
        %1825 = vmatprep.subr.bf16.mxu0 0
        %1826 = vmatpush1.bf16.xpose.msra.mxu0 %v1823
        %1827 = vmatprep.subr.bf16.mxu0 0
        %1828 = vmatpush1.bf16.xpose.msra.mxu0 0
        %1829 = vmatprep.subr.bf16.mxu0 0
        %1830 = vmatpush1.bf16.xpose.msra.mxu0 0
        %1831 = vmatprep.subr.bf16.mxu0 0
        %1832 = vmatpush1.bf16.xpose.msra.mxu0 0
        %1833 = vmatprep.subr.bf16.mxu0 0
        %1834 = vmatpush1.bf16.xpose.msra.mxu0 0
        %1835 = vmatprep.subr.bf16.mxu0 0
        %1836 = vmatpush1.bf16.xpose.msra.mxu0 0
        %1837 = vmatprep.subr.bf16.mxu0 0
        %1838 = vmatpush1.bf16.xpose.msra.mxu0 0
        %1839 = vmatprep.subr.bf16.mxu0 0
        %1840 = vmatpush1.bf16.xpose.msra.mxu0 0
        %1841 = vmatprep.subr.bf16.mxu0 0
        %1842 = vmatpush1.bf16.xpose.msra.mxu0 0
        %1843 = vmatprep.subr.bf16.mxu0 0
        %1844 = vmatpush1.bf16.xpose.msra.mxu0 0
        %1845 = vmatprep.subr.bf16.mxu0 0
        %1846 = vmatpush1.bf16.xpose.msra.mxu0 0
        %1847 = vmatprep.subr.bf16.mxu0 0
        %1848 = vmatpush1.bf16.xpose.msra.mxu0 0
        %1849 = vmatprep.subr.bf16.mxu0 0
        %1850 = vmatpush1.bf16.xpose.msra.mxu0 0
        %1851 = vmatprep.subr.bf16.mxu0 0
        %1852 = vmatpush1.bf16.xpose.msra.mxu0 0
        %1853 = vmatprep.subr.bf16.mxu0 0
        %1854 = vmatpush1.bf16.xpose.msra.mxu0 0
        %1855 = vmatprep.subr.bf16.mxu0 0
        %1856 = vmatpush1.bf16.xpose.msra.mxu0 0
        %1857 = vmatprep.mubr.bf16.mxu0 0
        %1858 = vmatmul.mubr.bf16.gmra.mrb[0].mxu0 %v1820
        %v1859 = vpop.f32.mrb[0].mxu0
        %v1860 = vadd.f32 0.0, %v1859
        %v1861 = vpop.f32.mrb[0].mxu0
        %v1862 = vpop.f32.mrb[0].mxu0
        %v1863 = vpop.f32.mrb[0].mxu0
        %1864 = vdwg.mxu0
        %1865 = vrot.lane.b32.xlu0 %v424, 104
        %v1866 = vpop.permute.xlu0 %1865
        %1867 = vrot.lane.b32.xlu0 %v424, 72
        %v1868 = vpop.permute.xlu0 %1867
        %v1870 = vsel %vm428, %v1866, 0
        %v1873 = vsel %vm428, %v1868, 0
        %1875 = vmatprep.subr.bf16.mxu0 0
        %1876 = vmatpush1.bf16.xpose.msra.mxu0 %v1873
        %1877 = vmatprep.subr.bf16.mxu0 0
        %1878 = vmatpush1.bf16.xpose.msra.mxu0 0
        %1879 = vmatprep.subr.bf16.mxu0 0
        %1880 = vmatpush1.bf16.xpose.msra.mxu0 0
        %1881 = vmatprep.subr.bf16.mxu0 0
        %1882 = vmatpush1.bf16.xpose.msra.mxu0 0
        %1883 = vmatprep.subr.bf16.mxu0 0
        %1884 = vmatpush1.bf16.xpose.msra.mxu0 0
        %1885 = vmatprep.subr.bf16.mxu0 0
        %1886 = vmatpush1.bf16.xpose.msra.mxu0 0
        %1887 = vmatprep.subr.bf16.mxu0 0
        %1888 = vmatpush1.bf16.xpose.msra.mxu0 0
        %1889 = vmatprep.subr.bf16.mxu0 0
        %1890 = vmatpush1.bf16.xpose.msra.mxu0 0
        %1891 = vmatprep.subr.bf16.mxu0 0
        %1892 = vmatpush1.bf16.xpose.msra.mxu0 0
        %1893 = vmatprep.subr.bf16.mxu0 0
        %1894 = vmatpush1.bf16.xpose.msra.mxu0 0
        %1895 = vmatprep.subr.bf16.mxu0 0
        %1896 = vmatpush1.bf16.xpose.msra.mxu0 0
        %1897 = vmatprep.subr.bf16.mxu0 0
        %1898 = vmatpush1.bf16.xpose.msra.mxu0 0
        %1899 = vmatprep.subr.bf16.mxu0 0
        %1900 = vmatpush1.bf16.xpose.msra.mxu0 0
        %1901 = vmatprep.subr.bf16.mxu0 0
        %1902 = vmatpush1.bf16.xpose.msra.mxu0 0
        %1903 = vmatprep.subr.bf16.mxu0 0
        %1904 = vmatpush1.bf16.xpose.msra.mxu0 0
        %1905 = vmatprep.subr.bf16.mxu0 0
        %1906 = vmatpush1.bf16.xpose.msra.mxu0 0
        %1907 = vmatprep.mubr.bf16.mxu0 0
        %1908 = vmatmul.mubr.bf16.gmra.mrb[0].mxu0 %v1870
        %v1909 = vpop.f32.mrb[0].mxu0
        %v1910 = vadd.f32 0.0, %v1909
        %v1911 = vpop.f32.mrb[0].mxu0
        %v1912 = vpop.f32.mrb[0].mxu0
        %v1913 = vpop.f32.mrb[0].mxu0
        %1914 = vdwg.mxu0
        %v1915 = vmul.f32 %v1860, 0.5
        %v1916 = vmul.f32 %v1910, 0.5
        %v1917 = vsel %vm526, %v1915, -inf
        %1918 = vmax.xlane.f32.xlu0 %v1917
        %v1919 = vpop.xlane.xlu0 %1918
        %v1920 = vsel %vm526, %v1916, -inf
        %1921 = vmax.xlane.f32.xlu0 %v1920
        %v1922 = vpop.xlane.xlu0 %1921
        %v1923 = vsub.f32 %v1915, %v1919
        %v1924 = vsub.f32 %v1916, %v1922
        %v1925 = vmul.f32 %v1923, 1.442695
        %v1926 = vpow.pop %v1925
        %v1927 = vmul.f32 %v1924, 1.442695
        %v1928 = vpow.pop %v1927
        %v1929 = vsel %vm526, %v1926, 0.0
        %1930 = vadd.xlane.f32.xlu0 %v1929
        %v1931 = vpop.xlane.xlu0 %1930
        %v1932 = vsel %vm526, %v1928, 0.0
        %1933 = vadd.xlane.f32.xlu0 %v1932
        %v1934 = vpop.xlane.xlu0 %1933
        %v1935 = vrcp.pop %v1931
        %v1936 = vrcp.pop %v1934
        %v1937 = vmul.f32 %v1926, %v1935
        %v1938 = vmul.f32 %v1928, %v1936
        %v1939 = vpack.c.bf16 %v1937, %v1937
        %v1940 = vpack.c.bf16 %v1938, %v1938
        %1941 = vrot.lane.b32.xlu0 %v423, 40
        %v1942 = vpop.permute.xlu0 %1941
        %v1944 = vsel %vm526, %v1939, 0
        %v1947 = vsel %vm556, %v1942, 0
        %1949 = vmatprep.subr.bf16.mxu0 0
        %1950 = vmatpush1.bf16.msra.mxu0 %v1947
        %1951 = vmatprep.subr.bf16.mxu0 0
        %1952 = vmatpush1.bf16.msra.mxu0 0
        %1953 = vmatprep.subr.bf16.mxu0 0
        %1954 = vmatpush1.bf16.msra.mxu0 0
        %1955 = vmatprep.subr.bf16.mxu0 0
        %1956 = vmatpush1.bf16.msra.mxu0 0
        %1957 = vmatprep.subr.bf16.mxu0 0
        %1958 = vmatpush1.bf16.msra.mxu0 0
        %1959 = vmatprep.subr.bf16.mxu0 0
        %1960 = vmatpush1.bf16.msra.mxu0 0
        %1961 = vmatprep.subr.bf16.mxu0 0
        %1962 = vmatpush1.bf16.msra.mxu0 0
        %1963 = vmatprep.subr.bf16.mxu0 0
        %1964 = vmatpush1.bf16.msra.mxu0 0
        %1965 = vmatprep.subr.bf16.mxu0 0
        %1966 = vmatpush1.bf16.msra.mxu0 0
        %1967 = vmatprep.subr.bf16.mxu0 0
        %1968 = vmatpush1.bf16.msra.mxu0 0
        %1969 = vmatprep.subr.bf16.mxu0 0
        %1970 = vmatpush1.bf16.msra.mxu0 0
        %1971 = vmatprep.subr.bf16.mxu0 0
        %1972 = vmatpush1.bf16.msra.mxu0 0
        %1973 = vmatprep.subr.bf16.mxu0 0
        %1974 = vmatpush1.bf16.msra.mxu0 0
        %1975 = vmatprep.subr.bf16.mxu0 0
        %1976 = vmatpush1.bf16.msra.mxu0 0
        %1977 = vmatprep.subr.bf16.mxu0 0
        %1978 = vmatpush1.bf16.msra.mxu0 0
        %1979 = vmatprep.subr.bf16.mxu0 0
        %1980 = vmatpush1.bf16.msra.mxu0 0
        %1981 = vmatprep.mubr.bf16.mxu0 0
        %1982 = vmatmul.mubr.bf16.gmra.mrb[0].mxu0 %v1944
        %v1983 = vpop.f32.mrb[0].mxu0
        %v1984 = vadd.f32 0.0, %v1983
        %v1985 = vpop.f32.mrb[0].mxu0
        %v1986 = vpop.f32.mrb[0].mxu0
        %v1987 = vpop.f32.mrb[0].mxu0
        %1988 = vdwg.mxu0
        %1989 = vrot.lane.b32.xlu0 %v424, 40
        %v1990 = vpop.permute.xlu0 %1989
        %v1992 = vsel %vm526, %v1940, 0
        %v1995 = vsel %vm556, %v1990, 0
        %1997 = vmatprep.subr.bf16.mxu0 0
        %1998 = vmatpush1.bf16.msra.mxu0 %v1995
        %1999 = vmatprep.subr.bf16.mxu0 0
        %2000 = vmatpush1.bf16.msra.mxu0 0
        %2001 = vmatprep.subr.bf16.mxu0 0
        %2002 = vmatpush1.bf16.msra.mxu0 0
        %2003 = vmatprep.subr.bf16.mxu0 0
        %2004 = vmatpush1.bf16.msra.mxu0 0
        %2005 = vmatprep.subr.bf16.mxu0 0
        %2006 = vmatpush1.bf16.msra.mxu0 0
        %2007 = vmatprep.subr.bf16.mxu0 0
        %2008 = vmatpush1.bf16.msra.mxu0 0
        %2009 = vmatprep.subr.bf16.mxu0 0
        %2010 = vmatpush1.bf16.msra.mxu0 0
        %2011 = vmatprep.subr.bf16.mxu0 0
        %2012 = vmatpush1.bf16.msra.mxu0 0
        %2013 = vmatprep.subr.bf16.mxu0 0
        %2014 = vmatpush1.bf16.msra.mxu0 0
        %2015 = vmatprep.subr.bf16.mxu0 0
        %2016 = vmatpush1.bf16.msra.mxu0 0
        %2017 = vmatprep.subr.bf16.mxu0 0
        %2018 = vmatpush1.bf16.msra.mxu0 0
        %2019 = vmatprep.subr.bf16.mxu0 0
        %2020 = vmatpush1.bf16.msra.mxu0 0
        %2021 = vmatprep.subr.bf16.mxu0 0
        %2022 = vmatpush1.bf16.msra.mxu0 0
        %2023 = vmatprep.subr.bf16.mxu0 0
        %2024 = vmatpush1.bf16.msra.mxu0 0
        %2025 = vmatprep.subr.bf16.mxu0 0
        %2026 = vmatpush1.bf16.msra.mxu0 0
        %2027 = vmatprep.subr.bf16.mxu0 0
        %2028 = vmatpush1.bf16.msra.mxu0 0
        %2029 = vmatprep.mubr.bf16.mxu0 0
        %2030 = vmatmul.mubr.bf16.gmra.mrb[0].mxu0 %v1992
        %v2031 = vpop.f32.mrb[0].mxu0
        %v2032 = vadd.f32 0.0, %v2031
        %v2033 = vpop.f32.mrb[0].mxu0
        %v2034 = vpop.f32.mrb[0].mxu0
        %v2035 = vpop.f32.mrb[0].mxu0
        %2036 = vdwg.mxu0
        %2039 = vrot.lane.b32.xlu0 %v1984, 24
        %v2040 = vpop.permute.xlu0 %2039
        %2041 = vrot.lane.b32.xlu0 %v2032, 24
        %v2042 = vpop.permute.xlu0 %2041
        %vm2045 = vcmask 228544
        %2046 = vst.msk [vmem:[#allocation3] sm:$0xff] %vm2045, %v2040
        %2047 = vst.msk [vmem:[#allocation3 + $0x8] sm:$0xff] %vm2045, %v2042
        %2048 = vrot.lane.b32.xlu0 %v423, 100
        %v2049 = vpop.permute.xlu0 %2048
        %2050 = vrot.lane.b32.xlu0 %v423, 68
        %v2051 = vpop.permute.xlu0 %2050
        %v2053 = vsel %vm428, %v2049, 0
        %v2056 = vsel %vm428, %v2051, 0
        %2058 = vmatprep.subr.bf16.mxu0 0
        %2059 = vmatpush1.bf16.xpose.msra.mxu0 %v2056
        %2060 = vmatprep.subr.bf16.mxu0 0
        %2061 = vmatpush1.bf16.xpose.msra.mxu0 0
        %2062 = vmatprep.subr.bf16.mxu0 0
        %2063 = vmatpush1.bf16.xpose.msra.mxu0 0
        %2064 = vmatprep.subr.bf16.mxu0 0
        %2065 = vmatpush1.bf16.xpose.msra.mxu0 0
        %2066 = vmatprep.subr.bf16.mxu0 0
        %2067 = vmatpush1.bf16.xpose.msra.mxu0 0
        %2068 = vmatprep.subr.bf16.mxu0 0
        %2069 = vmatpush1.bf16.xpose.msra.mxu0 0
        %2070 = vmatprep.subr.bf16.mxu0 0
        %2071 = vmatpush1.bf16.xpose.msra.mxu0 0
        %2072 = vmatprep.subr.bf16.mxu0 0
        %2073 = vmatpush1.bf16.xpose.msra.mxu0 0
        %2074 = vmatprep.subr.bf16.mxu0 0
        %2075 = vmatpush1.bf16.xpose.msra.mxu0 0
        %2076 = vmatprep.subr.bf16.mxu0 0
        %2077 = vmatpush1.bf16.xpose.msra.mxu0 0
        %2078 = vmatprep.subr.bf16.mxu0 0
        %2079 = vmatpush1.bf16.xpose.msra.mxu0 0
        %2080 = vmatprep.subr.bf16.mxu0 0
        %2081 = vmatpush1.bf16.xpose.msra.mxu0 0
        %2082 = vmatprep.subr.bf16.mxu0 0
        %2083 = vmatpush1.bf16.xpose.msra.mxu0 0
        %2084 = vmatprep.subr.bf16.mxu0 0
        %2085 = vmatpush1.bf16.xpose.msra.mxu0 0
        %2086 = vmatprep.subr.bf16.mxu0 0
        %2087 = vmatpush1.bf16.xpose.msra.mxu0 0
        %2088 = vmatprep.subr.bf16.mxu0 0
        %2089 = vmatpush1.bf16.xpose.msra.mxu0 0
        %2090 = vmatprep.mubr.bf16.mxu0 0
        %2091 = vmatmul.mubr.bf16.gmra.mrb[0].mxu0 %v2053
        %v2092 = vpop.f32.mrb[0].mxu0
        %v2093 = vadd.f32 0.0, %v2092
        %v2094 = vpop.f32.mrb[0].mxu0
        %v2095 = vpop.f32.mrb[0].mxu0
        %v2096 = vpop.f32.mrb[0].mxu0
        %2097 = vdwg.mxu0
        %2098 = vrot.lane.b32.xlu0 %v424, 100
        %v2099 = vpop.permute.xlu0 %2098
        %2100 = vrot.lane.b32.xlu0 %v424, 68
        %v2101 = vpop.permute.xlu0 %2100
        %v2103 = vsel %vm428, %v2099, 0
        %v2106 = vsel %vm428, %v2101, 0
        %2108 = vmatprep.subr.bf16.mxu0 0
        %2109 = vmatpush1.bf16.xpose.msra.mxu0 %v2106
        %2110 = vmatprep.subr.bf16.mxu0 0
        %2111 = vmatpush1.bf16.xpose.msra.mxu0 0
        %2112 = vmatprep.subr.bf16.mxu0 0
        %2113 = vmatpush1.bf16.xpose.msra.mxu0 0
        %2114 = vmatprep.subr.bf16.mxu0 0
        %2115 = vmatpush1.bf16.xpose.msra.mxu0 0
        %2116 = vmatprep.subr.bf16.mxu0 0
        %2117 = vmatpush1.bf16.xpose.msra.mxu0 0
        %2118 = vmatprep.subr.bf16.mxu0 0
        %2119 = vmatpush1.bf16.xpose.msra.mxu0 0
        %2120 = vmatprep.subr.bf16.mxu0 0
        %2121 = vmatpush1.bf16.xpose.msra.mxu0 0
        %2122 = vmatprep.subr.bf16.mxu0 0
        %2123 = vmatpush1.bf16.xpose.msra.mxu0 0
        %2124 = vmatprep.subr.bf16.mxu0 0
        %2125 = vmatpush1.bf16.xpose.msra.mxu0 0
        %2126 = vmatprep.subr.bf16.mxu0 0
        %2127 = vmatpush1.bf16.xpose.msra.mxu0 0
        %2128 = vmatprep.subr.bf16.mxu0 0
        %2129 = vmatpush1.bf16.xpose.msra.mxu0 0
        %2130 = vmatprep.subr.bf16.mxu0 0
        %2131 = vmatpush1.bf16.xpose.msra.mxu0 0
        %2132 = vmatprep.subr.bf16.mxu0 0
        %2133 = vmatpush1.bf16.xpose.msra.mxu0 0
        %2134 = vmatprep.subr.bf16.mxu0 0
        %2135 = vmatpush1.bf16.xpose.msra.mxu0 0
        %2136 = vmatprep.subr.bf16.mxu0 0
        %2137 = vmatpush1.bf16.xpose.msra.mxu0 0
        %2138 = vmatprep.subr.bf16.mxu0 0
        %2139 = vmatpush1.bf16.xpose.msra.mxu0 0
        %2140 = vmatprep.mubr.bf16.mxu0 0
        %2141 = vmatmul.mubr.bf16.gmra.mrb[0].mxu0 %v2103
        %v2142 = vpop.f32.mrb[0].mxu0
        %v2143 = vadd.f32 0.0, %v2142
        %v2144 = vpop.f32.mrb[0].mxu0
        %v2145 = vpop.f32.mrb[0].mxu0
        %v2146 = vpop.f32.mrb[0].mxu0
        %2147 = vdwg.mxu0
        %v2148 = vmul.f32 %v2093, 0.5
        %v2149 = vmul.f32 %v2143, 0.5
        %v2150 = vsel %vm526, %v2148, -inf
        %2151 = vmax.xlane.f32.xlu0 %v2150
        %v2152 = vpop.xlane.xlu0 %2151
        %v2153 = vsel %vm526, %v2149, -inf
        %2154 = vmax.xlane.f32.xlu0 %v2153
        %v2155 = vpop.xlane.xlu0 %2154
        %v2156 = vsub.f32 %v2148, %v2152
        %v2157 = vsub.f32 %v2149, %v2155
        %v2158 = vmul.f32 %v2156, 1.442695
        %v2159 = vpow.pop %v2158
        %v2160 = vmul.f32 %v2157, 1.442695
        %v2161 = vpow.pop %v2160
        %v2162 = vsel %vm526, %v2159, 0.0
        %2163 = vadd.xlane.f32.xlu0 %v2162
        %v2164 = vpop.xlane.xlu0 %2163
        %v2165 = vsel %vm526, %v2161, 0.0
        %2166 = vadd.xlane.f32.xlu0 %v2165
        %v2167 = vpop.xlane.xlu0 %2166
        %v2168 = vrcp.pop %v2164
        %v2169 = vrcp.pop %v2167
        %v2170 = vmul.f32 %v2159, %v2168
        %v2171 = vmul.f32 %v2161, %v2169
        %v2172 = vpack.c.bf16 %v2170, %v2170
        %v2173 = vpack.c.bf16 %v2171, %v2171
        %2174 = vrot.lane.b32.xlu0 %v423, 36
        %v2175 = vpop.permute.xlu0 %2174
        %v2177 = vsel %vm526, %v2172, 0
        %v2180 = vsel %vm556, %v2175, 0
        %2182 = vmatprep.subr.bf16.mxu0 0
        %2183 = vmatpush1.bf16.msra.mxu0 %v2180
        %2184 = vmatprep.subr.bf16.mxu0 0
        %2185 = vmatpush1.bf16.msra.mxu0 0
        %2186 = vmatprep.subr.bf16.mxu0 0
        %2187 = vmatpush1.bf16.msra.mxu0 0
        %2188 = vmatprep.subr.bf16.mxu0 0
        %2189 = vmatpush1.bf16.msra.mxu0 0
        %2190 = vmatprep.subr.bf16.mxu0 0
        %2191 = vmatpush1.bf16.msra.mxu0 0
        %2192 = vmatprep.subr.bf16.mxu0 0
        %2193 = vmatpush1.bf16.msra.mxu0 0
        %2194 = vmatprep.subr.bf16.mxu0 0
        %2195 = vmatpush1.bf16.msra.mxu0 0
        %2196 = vmatprep.subr.bf16.mxu0 0
        %2197 = vmatpush1.bf16.msra.mxu0 0
        %2198 = vmatprep.subr.bf16.mxu0 0
        %2199 = vmatpush1.bf16.msra.mxu0 0
        %2200 = vmatprep.subr.bf16.mxu0 0
        %2201 = vmatpush1.bf16.msra.mxu0 0
        %2202 = vmatprep.subr.bf16.mxu0 0
        %2203 = vmatpush1.bf16.msra.mxu0 0
        %2204 = vmatprep.subr.bf16.mxu0 0
        %2205 = vmatpush1.bf16.msra.mxu0 0
        %2206 = vmatprep.subr.bf16.mxu0 0
        %2207 = vmatpush1.bf16.msra.mxu0 0
        %2208 = vmatprep.subr.bf16.mxu0 0
        %2209 = vmatpush1.bf16.msra.mxu0 0
        %2210 = vmatprep.subr.bf16.mxu0 0
        %2211 = vmatpush1.bf16.msra.mxu0 0
        %2212 = vmatprep.subr.bf16.mxu0 0
        %2213 = vmatpush1.bf16.msra.mxu0 0
        %2214 = vmatprep.mubr.bf16.mxu0 0
        %2215 = vmatmul.mubr.bf16.gmra.mrb[0].mxu0 %v2177
        %v2216 = vpop.f32.mrb[0].mxu0
        %v2217 = vadd.f32 0.0, %v2216
        %v2218 = vpop.f32.mrb[0].mxu0
        %v2219 = vpop.f32.mrb[0].mxu0
        %v2220 = vpop.f32.mrb[0].mxu0
        %2221 = vdwg.mxu0
        %2222 = vrot.lane.b32.xlu0 %v424, 36
        %v2223 = vpop.permute.xlu0 %2222
        %v2225 = vsel %vm526, %v2173, 0
        %v2228 = vsel %vm556, %v2223, 0
        %2230 = vmatprep.subr.bf16.mxu0 0
        %2231 = vmatpush1.bf16.msra.mxu0 %v2228
        %2232 = vmatprep.subr.bf16.mxu0 0
        %2233 = vmatpush1.bf16.msra.mxu0 0
        %2234 = vmatprep.subr.bf16.mxu0 0
        %2235 = vmatpush1.bf16.msra.mxu0 0
        %2236 = vmatprep.subr.bf16.mxu0 0
        %2237 = vmatpush1.bf16.msra.mxu0 0
        %2238 = vmatprep.subr.bf16.mxu0 0
        %2239 = vmatpush1.bf16.msra.mxu0 0
        %2240 = vmatprep.subr.bf16.mxu0 0
        %2241 = vmatpush1.bf16.msra.mxu0 0
        %2242 = vmatprep.subr.bf16.mxu0 0
        %2243 = vmatpush1.bf16.msra.mxu0 0
        %2244 = vmatprep.subr.bf16.mxu0 0
        %2245 = vmatpush1.bf16.msra.mxu0 0
        %2246 = vmatprep.subr.bf16.mxu0 0
        %2247 = vmatpush1.bf16.msra.mxu0 0
        %2248 = vmatprep.subr.bf16.mxu0 0
        %2249 = vmatpush1.bf16.msra.mxu0 0
        %2250 = vmatprep.subr.bf16.mxu0 0
        %2251 = vmatpush1.bf16.msra.mxu0 0
        %2252 = vmatprep.subr.bf16.mxu0 0
        %2253 = vmatpush1.bf16.msra.mxu0 0
        %2254 = vmatprep.subr.bf16.mxu0 0
        %2255 = vmatpush1.bf16.msra.mxu0 0
        %2256 = vmatprep.subr.bf16.mxu0 0
        %2257 = vmatpush1.bf16.msra.mxu0 0
        %2258 = vmatprep.subr.bf16.mxu0 0
        %2259 = vmatpush1.bf16.msra.mxu0 0
        %2260 = vmatprep.subr.bf16.mxu0 0
        %2261 = vmatpush1.bf16.msra.mxu0 0
        %2262 = vmatprep.mubr.bf16.mxu0 0
        %2263 = vmatmul.mubr.bf16.gmra.mrb[0].mxu0 %v2225
        %v2264 = vpop.f32.mrb[0].mxu0
        %v2265 = vadd.f32 0.0, %v2264
        %v2266 = vpop.f32.mrb[0].mxu0
        %v2267 = vpop.f32.mrb[0].mxu0
        %v2268 = vpop.f32.mrb[0].mxu0
        %2269 = vdwg.mxu0
        %2272 = vrot.lane.b32.xlu0 %v2217, 28
        %v2273 = vpop.permute.xlu0 %2272
        %2274 = vrot.lane.b32.xlu0 %v2265, 28
        %v2275 = vpop.permute.xlu0 %2274
        %vm2278 = vcmask 261344
        %2279 = vst.msk [vmem:[#allocation3] sm:$0xff] %vm2278, %v2273
        %2280 = vst.msk [vmem:[#allocation3 + $0x8] sm:$0xff] %vm2278, %v2275
        %v2281 = vld [vmem:[#allocation3] sm:$0xff]
        %v2282 = vld [vmem:[#allocation3 + $0x8] sm:$0xff]
        %v2283 = vadd.f32 %v359, %v2281
        %v2284 = vadd.f32 %v360, %v2282
        %v2285 = vsel %vm378, %v2283, 0.0
        %2286 = vadd.xlane.f32.xlu0 %v2285
        %v2287 = vpop.xlane.xlu0 %2286
        %v2288 = vsel %vm378, %v2284, 0.0
        %2289 = vadd.xlane.f32.xlu0 %v2288
        %v2290 = vpop.xlane.xlu0 %2289
        %v2291 = vrcp.pop 32.0
        %v2292 = vmul.f32 %v2287, %v2291
        %v2293 = vmul.f32 %v2290, %v2291
        %v2294 = vsub.f32 %v2283, %v2292
        %v2295 = vsub.f32 %v2284, %v2293
        %v2296 = vmul.f32 %v2294, %v2294
        %v2297 = vmul.f32 %v2295, %v2295
        %v2298 = vsel %vm378, %v2296, 0.0
        %2299 = vadd.xlane.f32.xlu0 %v2298
        %v2300 = vpop.xlane.xlu0 %2299
        %v2301 = vsel %vm378, %v2297, 0.0
        %2302 = vadd.xlane.f32.xlu0 %v2301
        %v2303 = vpop.xlane.xlu0 %2302
        %v2304 = vmul.f32 %v2300, %v2291
        %v2305 = vmul.f32 %v2303, %v2291
        %v2306 = vadd.f32 %v2304, 1e-05
        %v2307 = vadd.f32 %v2305, 1e-05
        %v2308 = vrsqrt.pop %v2306
        %v2309 = vrsqrt.pop %v2307
        %v2310 = vmul.f32 %v2294, %v2308
        %v2311 = vmul.f32 %v2295, %v2309
        %v2312 = vpack.c.bf16 %v2311, %v2310
        %v2313 = vld [vmem:[%s335] sm:$0xff]
        %v2314 = vld [vmem:[%s335 + $0x8] sm:$0xff]
        %v2315 = vld [vmem:[%s335 + $0x10] sm:$0xff]
        %v2316 = vld [vmem:[%s335 + $0x18] sm:$0xff]
        %v2317 = vld [vmem:[%s335 + $0x20] sm:$0xff]
        %v2318 = vld [vmem:[%s335 + $0x28] sm:$0xff]
        %v2319 = vld [vmem:[%s335 + $0x30] sm:$0xff]
        %v2320 = vld [vmem:[%s335 + $0x38] sm:$0xff]
        %v2321 = vld [vmem:[%s339] sm:$0xf]
        %v2323 = vlaneseq
        %v2324 = vshrl.u32 %v2323, 7
        %v2325 = vsub.s32 0, %v2324
        %v2326 = vrot.slane %v2321, %v2325
        %v2327 = vlaneseq
        %v2328 = vshrl.u32 %v2327, 7
        %v2329 = vsub.s32 1, %v2328
        %v2330 = vrot.slane %v2321, %v2329
        %v2331 = vlaneseq
        %v2332 = vshrl.u32 %v2331, 7
        %v2333 = vsub.s32 2, %v2332
        %v2334 = vrot.slane %v2321, %v2333
        %v2335 = vlaneseq
        %v2336 = vshrl.u32 %v2335, 7
        %v2337 = vsub.s32 3, %v2336
        %v2338 = vrot.slane %v2321, %v2337
        %v2351 = vunpack.c.l.b16 %v2313
        %v2352 = vunpack.c.h.b16 %v2313
        %v2353 = vunpack.c.l.b16 %v2314
        %v2354 = vunpack.c.h.b16 %v2314
        %v2355 = vunpack.c.l.b16 %v2315
        %v2356 = vunpack.c.h.b16 %v2315
        %v2357 = vunpack.c.l.b16 %v2316
        %v2358 = vunpack.c.h.b16 %v2316
        %v2359 = vunpack.c.l.b16 %v2317
        %v2360 = vunpack.c.h.b16 %v2317
        %v2361 = vunpack.c.l.b16 %v2318
        %v2362 = vunpack.c.h.b16 %v2318
        %v2363 = vunpack.c.l.b16 %v2319
        %v2364 = vunpack.c.h.b16 %v2319
        %v2365 = vunpack.c.l.b16 %v2320
        %v2366 = vunpack.c.h.b16 %v2320
        %v2367 = vpack.c.b16 %v2355, %v2351
        %v2368 = vpack.c.b16 %v2356, %v2352
        %v2369 = vpack.c.b16 %v2357, %v2353
        %v2370 = vpack.c.b16 %v2358, %v2354
        %v2371 = vpack.c.b16 %v2363, %v2359
        %v2372 = vpack.c.b16 %v2364, %v2360
        %v2373 = vpack.c.b16 %v2365, %v2361
        %v2374 = vpack.c.b16 %v2366, %v2362
        %v2384 = vsel %vm378, %v2312, 0
        %2386 = vmatprep.subr.bf16.mxu0 %v2368
        %2387 = vmatpush1.bf16.msra.mxu0 %v2367
        %2388 = vmatprep.subr.bf16.mxu0 %v2372
        %2389 = vmatpush1.bf16.msra.mxu0 %v2371
        %2390 = vmatprep.subr.bf16.mxu0 0
        %2391 = vmatpush1.bf16.msra.mxu0 0
        %2392 = vmatprep.subr.bf16.mxu0 0
        %2393 = vmatpush1.bf16.msra.mxu0 0
        %2394 = vmatprep.subr.bf16.mxu0 0
        %2395 = vmatpush1.bf16.msra.mxu0 0
        %2396 = vmatprep.subr.bf16.mxu0 0
        %2397 = vmatpush1.bf16.msra.mxu0 0
        %2398 = vmatprep.subr.bf16.mxu0 0
        %2399 = vmatpush1.bf16.msra.mxu0 0
        %2400 = vmatprep.subr.bf16.mxu0 0
        %2401 = vmatpush1.bf16.msra.mxu0 0
        %2402 = vmatprep.subr.bf16.mxu0 0
        %2403 = vmatpush1.bf16.msra.mxu0 0
        %2404 = vmatprep.subr.bf16.mxu0 0
        %2405 = vmatpush1.bf16.msra.mxu0 0
        %2406 = vmatprep.subr.bf16.mxu0 0
        %2407 = vmatpush1.bf16.msra.mxu0 0
        %2408 = vmatprep.subr.bf16.mxu0 0
        %2409 = vmatpush1.bf16.msra.mxu0 0
        %2410 = vmatprep.subr.bf16.mxu0 0
        %2411 = vmatpush1.bf16.msra.mxu0 0
        %2412 = vmatprep.subr.bf16.mxu0 0
        %2413 = vmatpush1.bf16.msra.mxu0 0
        %2414 = vmatprep.subr.bf16.mxu0 0
        %2415 = vmatpush1.bf16.msra.mxu0 0
        %2416 = vmatprep.subr.bf16.mxu0 0
        %2417 = vmatpush1.bf16.msra.mxu0 0
        %2418 = vmatprep.mubr.bf16.mxu0 0
        %2419 = vmatmul.mubr.bf16.gmra.mrb[0].mxu0 %v2384
        %v2420 = vpop.f32.mrb[0].mxu0
        %v2421 = vadd.f32 %v2326, %v2420
        %v2422 = vpop.f32.mrb[0].mxu0
        %v2423 = vadd.f32 %v2330, %v2422
        %v2424 = vpop.f32.mrb[0].mxu0
        %v2425 = vadd.f32 %v2326, %v2424
        %v2426 = vpop.f32.mrb[0].mxu0
        %v2427 = vadd.f32 %v2330, %v2426
        %2428 = vdwg.mxu0
        %2429 = vmatprep.subr.bf16.mxu0 %v2370
        %2430 = vmatpush1.bf16.msra.mxu0 %v2369
        %2431 = vmatprep.subr.bf16.mxu0 %v2374
        %2432 = vmatpush1.bf16.msra.mxu0 %v2373
        %2433 = vmatprep.subr.bf16.mxu0 0
        %2434 = vmatpush1.bf16.msra.mxu0 0
        %2435 = vmatprep.subr.bf16.mxu0 0
        %2436 = vmatpush1.bf16.msra.mxu0 0
        %2437 = vmatprep.subr.bf16.mxu0 0
        %2438 = vmatpush1.bf16.msra.mxu0 0
        %2439 = vmatprep.subr.bf16.mxu0 0
        %2440 = vmatpush1.bf16.msra.mxu0 0
        %2441 = vmatprep.subr.bf16.mxu0 0
        %2442 = vmatpush1.bf16.msra.mxu0 0
        %2443 = vmatprep.subr.bf16.mxu0 0
        %2444 = vmatpush1.bf16.msra.mxu0 0
        %2445 = vmatprep.subr.bf16.mxu0 0
        %2446 = vmatpush1.bf16.msra.mxu0 0
        %2447 = vmatprep.subr.bf16.mxu0 0
        %2448 = vmatpush1.bf16.msra.mxu0 0
        %2449 = vmatprep.subr.bf16.mxu0 0
        %2450 = vmatpush1.bf16.msra.mxu0 0
        %2451 = vmatprep.subr.bf16.mxu0 0
        %2452 = vmatpush1.bf16.msra.mxu0 0
        %2453 = vmatprep.subr.bf16.mxu0 0
        %2454 = vmatpush1.bf16.msra.mxu0 0
        %2455 = vmatprep.subr.bf16.mxu0 0
        %2456 = vmatpush1.bf16.msra.mxu0 0
        %2457 = vmatprep.subr.bf16.mxu0 0
        %2458 = vmatpush1.bf16.msra.mxu0 0
        %2459 = vmatprep.subr.bf16.mxu0 0
        %2460 = vmatpush1.bf16.msra.mxu0 0
        %2461 = vmatprep.mubr.bf16.mxu0 0
        %2462 = vmatmul.mubr.bf16.gmra.mrb[0].mxu0 %v2384
        %v2463 = vpop.f32.mrb[0].mxu0
        %v2464 = vadd.f32 %v2334, %v2463
        %v2465 = vpop.f32.mrb[0].mxu0
        %v2466 = vadd.f32 %v2338, %v2465
        %v2467 = vpop.f32.mrb[0].mxu0
        %v2468 = vadd.f32 %v2334, %v2467
        %v2469 = vpop.f32.mrb[0].mxu0
        %v2470 = vadd.f32 %v2338, %v2469
        %2471 = vdwg.mxu0
        %v2472 = vmax.f32 %v2421, 0.0
        %v2473 = vmax.f32 %v2423, 0.0
        %v2474 = vmax.f32 %v2464, 0.0
        %v2475 = vmax.f32 %v2466, 0.0
        %v2476 = vmax.f32 %v2425, 0.0
        %v2477 = vmax.f32 %v2427, 0.0
        %v2478 = vmax.f32 %v2468, 0.0
        %v2479 = vmax.f32 %v2470, 0.0
        %v2480 = vpack.c.bf16 %v2476, %v2472
        %v2481 = vpack.c.bf16 %v2477, %v2473
        %v2482 = vpack.c.bf16 %v2478, %v2474
        %v2483 = vpack.c.bf16 %v2479, %v2475
        %v2484 = vld [vmem:[%s344] sm:$0xf]
        %v2485 = vld [vmem:[%s344 + $0x4] sm:$0xf]
        %v2486 = vld [vmem:[%s344 + $0x8] sm:$0xf]
        %v2487 = vld [vmem:[%s344 + $0xc] sm:$0xf]
        %v2488 = vld [vmem:[%s344 + $0x10] sm:$0xf]
        %v2489 = vld [vmem:[%s344 + $0x14] sm:$0xf]
        %v2490 = vld [vmem:[%s344 + $0x18] sm:$0xf]
        %v2491 = vld [vmem:[%s344 + $0x1c] sm:$0xf]
        %v2492 = vld [vmem:[%s344 + $0x20] sm:$0xf]
        %v2493 = vld [vmem:[%s344 + $0x24] sm:$0xf]
        %v2494 = vld [vmem:[%s344 + $0x28] sm:$0xf]
        %v2495 = vld [vmem:[%s344 + $0x2c] sm:$0xf]
        %v2496 = vld [vmem:[%s344 + $0x30] sm:$0xf]
        %v2497 = vld [vmem:[%s344 + $0x34] sm:$0xf]
        %v2498 = vld [vmem:[%s344 + $0x38] sm:$0xf]
        %v2499 = vld [vmem:[%s344 + $0x3c] sm:$0xf]
        %v2500 = vld [vmem:[%s344 + $0x40] sm:$0xf]
        %v2501 = vld [vmem:[%s344 + $0x44] sm:$0xf]
        %v2502 = vld [vmem:[%s344 + $0x48] sm:$0xf]
        %v2503 = vld [vmem:[%s344 + $0x4c] sm:$0xf]
        %v2504 = vld [vmem:[%s344 + $0x50] sm:$0xf]
        %v2505 = vld [vmem:[%s344 + $0x54] sm:$0xf]
        %v2506 = vld [vmem:[%s344 + $0x58] sm:$0xf]
        %v2507 = vld [vmem:[%s344 + $0x5c] sm:$0xf]
        %v2508 = vld [vmem:[%s344 + $0x60] sm:$0xf]
        %v2509 = vld [vmem:[%s344 + $0x64] sm:$0xf]
        %v2510 = vld [vmem:[%s344 + $0x68] sm:$0xf]
        %v2511 = vld [vmem:[%s344 + $0x6c] sm:$0xf]
        %v2512 = vld [vmem:[%s344 + $0x70] sm:$0xf]
        %v2513 = vld [vmem:[%s344 + $0x74] sm:$0xf]
        %v2514 = vld [vmem:[%s344 + $0x78] sm:$0xf]
        %v2515 = vld [vmem:[%s344 + $0x7c] sm:$0xf]
        %v2516 = vld [vmem:[%s344 + $0x80] sm:$0xf]
        %v2517 = vld [vmem:[%s344 + $0x84] sm:$0xf]
        %v2518 = vld [vmem:[%s344 + $0x88] sm:$0xf]
        %v2519 = vld [vmem:[%s344 + $0x8c] sm:$0xf]
        %v2520 = vld [vmem:[%s344 + $0x90] sm:$0xf]
        %v2521 = vld [vmem:[%s344 + $0x94] sm:$0xf]
        %v2522 = vld [vmem:[%s344 + $0x98] sm:$0xf]
        %v2523 = vld [vmem:[%s344 + $0x9c] sm:$0xf]
        %v2524 = vld [vmem:[%s344 + $0xa0] sm:$0xf]
        %v2525 = vld [vmem:[%s344 + $0xa4] sm:$0xf]
        %v2526 = vld [vmem:[%s344 + $0xa8] sm:$0xf]
        %v2527 = vld [vmem:[%s344 + $0xac] sm:$0xf]
        %v2528 = vld [vmem:[%s344 + $0xb0] sm:$0xf]
        %v2529 = vld [vmem:[%s344 + $0xb4] sm:$0xf]
        %v2530 = vld [vmem:[%s344 + $0xb8] sm:$0xf]
        %v2531 = vld [vmem:[%s344 + $0xbc] sm:$0xf]
        %v2532 = vld [vmem:[%s344 + $0xc0] sm:$0xf]
        %v2533 = vld [vmem:[%s344 + $0xc4] sm:$0xf]
        %v2534 = vld [vmem:[%s344 + $0xc8] sm:$0xf]
        %v2535 = vld [vmem:[%s344 + $0xcc] sm:$0xf]
        %v2536 = vld [vmem:[%s344 + $0xd0] sm:$0xf]
        %v2537 = vld [vmem:[%s344 + $0xd4] sm:$0xf]
        %v2538 = vld [vmem:[%s344 + $0xd8] sm:$0xf]
        %v2539 = vld [vmem:[%s344 + $0xdc] sm:$0xf]
        %v2540 = vld [vmem:[%s344 + $0xe0] sm:$0xf]
        %v2541 = vld [vmem:[%s344 + $0xe4] sm:$0xf]
        %v2542 = vld [vmem:[%s344 + $0xe8] sm:$0xf]
        %v2543 = vld [vmem:[%s344 + $0xec] sm:$0xf]
        %v2544 = vld [vmem:[%s344 + $0xf0] sm:$0xf]
        %v2545 = vld [vmem:[%s344 + $0xf4] sm:$0xf]
        %v2546 = vld [vmem:[%s344 + $0xf8] sm:$0xf]
        %v2547 = vld [vmem:[%s344 + $0xfc] sm:$0xf]
        %v2548 = vld [vmem:[%s347] sm:$0x1]
        %v2550 = vlaneseq
        %v2551 = vshrl.u32 %v2550, 7
        %v2552 = vsub.s32 0, %v2551
        %v2553 = vrot.slane %v2548, %v2552
        %v2619 = vunpack.c.l.b16 %v2484
        %v2620 = vunpack.c.l.b16 %v2485
        %v2621 = vunpack.c.l.b16 %v2486
        %v2622 = vunpack.c.l.b16 %v2487
        %v2623 = vunpack.c.l.b16 %v2488
        %v2624 = vunpack.c.l.b16 %v2489
        %v2625 = vunpack.c.l.b16 %v2490
        %v2626 = vunpack.c.l.b16 %v2491
        %v2627 = vunpack.c.l.b16 %v2492
        %v2628 = vunpack.c.l.b16 %v2493
        %v2629 = vunpack.c.l.b16 %v2494
        %v2630 = vunpack.c.l.b16 %v2495
        %v2631 = vunpack.c.l.b16 %v2496
        %v2632 = vunpack.c.l.b16 %v2497
        %v2633 = vunpack.c.l.b16 %v2498
        %v2634 = vunpack.c.l.b16 %v2499
        %v2635 = vunpack.c.l.b16 %v2500
        %v2636 = vunpack.c.l.b16 %v2501
        %v2637 = vunpack.c.l.b16 %v2502
        %v2638 = vunpack.c.l.b16 %v2503
        %v2639 = vunpack.c.l.b16 %v2504
        %v2640 = vunpack.c.l.b16 %v2505
        %v2641 = vunpack.c.l.b16 %v2506
        %v2642 = vunpack.c.l.b16 %v2507
        %v2643 = vunpack.c.l.b16 %v2508
        %v2644 = vunpack.c.l.b16 %v2509
        %v2645 = vunpack.c.l.b16 %v2510
        %v2646 = vunpack.c.l.b16 %v2511
        %v2647 = vunpack.c.l.b16 %v2512
        %v2648 = vunpack.c.l.b16 %v2513
        %v2649 = vunpack.c.l.b16 %v2514
        %v2650 = vunpack.c.l.b16 %v2515
        %v2651 = vunpack.c.l.b16 %v2516
        %v2652 = vunpack.c.l.b16 %v2517
        %v2653 = vunpack.c.l.b16 %v2518
        %v2654 = vunpack.c.l.b16 %v2519
        %v2655 = vunpack.c.l.b16 %v2520
        %v2656 = vunpack.c.l.b16 %v2521
        %v2657 = vunpack.c.l.b16 %v2522
        %v2658 = vunpack.c.l.b16 %v2523
        %v2659 = vunpack.c.l.b16 %v2524
        %v2660 = vunpack.c.l.b16 %v2525
        %v2661 = vunpack.c.l.b16 %v2526
        %v2662 = vunpack.c.l.b16 %v2527
        %v2663 = vunpack.c.l.b16 %v2528
        %v2664 = vunpack.c.l.b16 %v2529
        %v2665 = vunpack.c.l.b16 %v2530
        %v2666 = vunpack.c.l.b16 %v2531
        %v2667 = vunpack.c.l.b16 %v2532
        %v2668 = vunpack.c.l.b16 %v2533
        %v2669 = vunpack.c.l.b16 %v2534
        %v2670 = vunpack.c.l.b16 %v2535
        %v2671 = vunpack.c.l.b16 %v2536
        %v2672 = vunpack.c.l.b16 %v2537
        %v2673 = vunpack.c.l.b16 %v2538
        %v2674 = vunpack.c.l.b16 %v2539
        %v2675 = vunpack.c.l.b16 %v2540
        %v2676 = vunpack.c.l.b16 %v2541
        %v2677 = vunpack.c.l.b16 %v2542
        %v2678 = vunpack.c.l.b16 %v2543
        %v2679 = vunpack.c.l.b16 %v2544
        %v2680 = vunpack.c.l.b16 %v2545
        %v2681 = vunpack.c.l.b16 %v2546
        %v2682 = vunpack.c.l.b16 %v2547
        %v2683 = vpack.c.b16 %v2620, %v2619
        %v2684 = vpack.c.b16 %v2622, %v2621
        %v2685 = vpack.c.b16 %v2624, %v2623
        %v2686 = vpack.c.b16 %v2626, %v2625
        %v2687 = vpack.c.b16 %v2628, %v2627
        %v2688 = vpack.c.b16 %v2630, %v2629
        %v2689 = vpack.c.b16 %v2632, %v2631
        %v2690 = vpack.c.b16 %v2634, %v2633
        %v2691 = vpack.c.b16 %v2636, %v2635
        %v2692 = vpack.c.b16 %v2638, %v2637
        %v2693 = vpack.c.b16 %v2640, %v2639
        %v2694 = vpack.c.b16 %v2642, %v2641
        %v2695 = vpack.c.b16 %v2644, %v2643
        %v2696 = vpack.c.b16 %v2646, %v2645
        %v2697 = vpack.c.b16 %v2648, %v2647
        %v2698 = vpack.c.b16 %v2650, %v2649
        %v2699 = vpack.c.b16 %v2652, %v2651
        %v2700 = vpack.c.b16 %v2654, %v2653
        %v2701 = vpack.c.b16 %v2656, %v2655
        %v2702 = vpack.c.b16 %v2658, %v2657
        %v2703 = vpack.c.b16 %v2660, %v2659
        %v2704 = vpack.c.b16 %v2662, %v2661
        %v2705 = vpack.c.b16 %v2664, %v2663
        %v2706 = vpack.c.b16 %v2666, %v2665
        %v2707 = vpack.c.b16 %v2668, %v2667
        %v2708 = vpack.c.b16 %v2670, %v2669
        %v2709 = vpack.c.b16 %v2672, %v2671
        %v2710 = vpack.c.b16 %v2674, %v2673
        %v2711 = vpack.c.b16 %v2676, %v2675
        %v2712 = vpack.c.b16 %v2678, %v2677
        %v2713 = vpack.c.b16 %v2680, %v2679
        %v2714 = vpack.c.b16 %v2682, %v2681
        %2747 = vmatprep.subr.bf16.mxu0 0
        %2748 = vmatpush1.bf16.msra.mxu0 %v2683
        %2749 = vmatprep.subr.bf16.mxu0 0
        %2750 = vmatpush1.bf16.msra.mxu0 %v2684
        %2751 = vmatprep.subr.bf16.mxu0 0
        %2752 = vmatpush1.bf16.msra.mxu0 %v2685
        %2753 = vmatprep.subr.bf16.mxu0 0
        %2754 = vmatpush1.bf16.msra.mxu0 %v2686
        %2755 = vmatprep.subr.bf16.mxu0 0
        %2756 = vmatpush1.bf16.msra.mxu0 %v2687
        %2757 = vmatprep.subr.bf16.mxu0 0
        %2758 = vmatpush1.bf16.msra.mxu0 %v2688
        %2759 = vmatprep.subr.bf16.mxu0 0
        %2760 = vmatpush1.bf16.msra.mxu0 %v2689
        %2761 = vmatprep.subr.bf16.mxu0 0
        %2762 = vmatpush1.bf16.msra.mxu0 %v2690
        %2763 = vmatprep.subr.bf16.mxu0 0
        %2764 = vmatpush1.bf16.msra.mxu0 %v2691
        %2765 = vmatprep.subr.bf16.mxu0 0
        %2766 = vmatpush1.bf16.msra.mxu0 %v2692
        %2767 = vmatprep.subr.bf16.mxu0 0
        %2768 = vmatpush1.bf16.msra.mxu0 %v2693
        %2769 = vmatprep.subr.bf16.mxu0 0
        %2770 = vmatpush1.bf16.msra.mxu0 %v2694
        %2771 = vmatprep.subr.bf16.mxu0 0
        %2772 = vmatpush1.bf16.msra.mxu0 %v2695
        %2773 = vmatprep.subr.bf16.mxu0 0
        %2774 = vmatpush1.bf16.msra.mxu0 %v2696
        %2775 = vmatprep.subr.bf16.mxu0 0
        %2776 = vmatpush1.bf16.msra.mxu0 %v2697
        %2777 = vmatprep.subr.bf16.mxu0 0
        %2778 = vmatpush1.bf16.msra.mxu0 %v2698
        %2779 = vmatprep.mubr.bf16.mxu0 %v2481
        %2780 = vmatmul.mubr.bf16.gmra.mrb[0].mxu0 %v2480
        %v2781 = vpop.f32.mrb[0].mxu0
        %v2782 = vadd.f32 %v2553, %v2781
        %v2783 = vpop.f32.mrb[0].mxu0
        %v2784 = vpop.f32.mrb[0].mxu0
        %v2785 = vadd.f32 %v2553, %v2784
        %v2786 = vpop.f32.mrb[0].mxu0
        %2787 = vdwg.mxu0
        %2788 = vmatprep.subr.bf16.mxu0 0
        %2789 = vmatpush1.bf16.msra.mxu0 %v2699
        %2790 = vmatprep.subr.bf16.mxu0 0
        %2791 = vmatpush1.bf16.msra.mxu0 %v2700
        %2792 = vmatprep.subr.bf16.mxu0 0
        %2793 = vmatpush1.bf16.msra.mxu0 %v2701
        %2794 = vmatprep.subr.bf16.mxu0 0
        %2795 = vmatpush1.bf16.msra.mxu0 %v2702
        %2796 = vmatprep.subr.bf16.mxu0 0
        %2797 = vmatpush1.bf16.msra.mxu0 %v2703
        %2798 = vmatprep.subr.bf16.mxu0 0
        %2799 = vmatpush1.bf16.msra.mxu0 %v2704
        %2800 = vmatprep.subr.bf16.mxu0 0
        %2801 = vmatpush1.bf16.msra.mxu0 %v2705
        %2802 = vmatprep.subr.bf16.mxu0 0
        %2803 = vmatpush1.bf16.msra.mxu0 %v2706
        %2804 = vmatprep.subr.bf16.mxu0 0
        %2805 = vmatpush1.bf16.msra.mxu0 %v2707
        %2806 = vmatprep.subr.bf16.mxu0 0
        %2807 = vmatpush1.bf16.msra.mxu0 %v2708
        %2808 = vmatprep.subr.bf16.mxu0 0
        %2809 = vmatpush1.bf16.msra.mxu0 %v2709
        %2810 = vmatprep.subr.bf16.mxu0 0
        %2811 = vmatpush1.bf16.msra.mxu0 %v2710
        %2812 = vmatprep.subr.bf16.mxu0 0
        %2813 = vmatpush1.bf16.msra.mxu0 %v2711
        %2814 = vmatprep.subr.bf16.mxu0 0
        %2815 = vmatpush1.bf16.msra.mxu0 %v2712
        %2816 = vmatprep.subr.bf16.mxu0 0
        %2817 = vmatpush1.bf16.msra.mxu0 %v2713
        %2818 = vmatprep.subr.bf16.mxu0 0
        %2819 = vmatpush1.bf16.msra.mxu0 %v2714
        %2820 = vmatprep.mubr.bf16.mxu0 %v2483
        %2821 = vmatmul.mubr.bf16.gmra.mrb[0].mxu0 %v2482
        %v2822 = vpop.f32.mrb[0].mxu0
        %v2823 = vadd.f32 %v2782, %v2822
        %v2824 = vpop.f32.mrb[0].mxu0
        %v2825 = vpop.f32.mrb[0].mxu0
        %v2826 = vadd.f32 %v2785, %v2825
        %v2827 = vpop.f32.mrb[0].mxu0
        %2828 = vdwg.mxu0
        %v2829 = vadd.f32 %v2310, %v2823
        %v2830 = vadd.f32 %v2311, %v2826
        %v2831 = vsel %vm378, %v2829, 0.0
        %2832 = vadd.xlane.f32.xlu0 %v2831
        %v2833 = vpop.xlane.xlu0 %2832
        %v2834 = vsel %vm378, %v2830, 0.0
        %2835 = vadd.xlane.f32.xlu0 %v2834
        %v2836 = vpop.xlane.xlu0 %2835
        %v2837 = vmul.f32 %v2833, %v2291
        %v2838 = vmul.f32 %v2836, %v2291
        %v2839 = vsub.f32 %v2829, %v2837
        %v2840 = vsub.f32 %v2830, %v2838
        %v2841 = vmul.f32 %v2839, %v2839
        %v2842 = vmul.f32 %v2840, %v2840
        %v2843 = vsel %vm378, %v2841, 0.0
        %2844 = vadd.xlane.f32.xlu0 %v2843
        %v2845 = vpop.xlane.xlu0 %2844
        %v2846 = vsel %vm378, %v2842, 0.0
        %2847 = vadd.xlane.f32.xlu0 %v2846
        %v2848 = vpop.xlane.xlu0 %2847
        %v2849 = vmul.f32 %v2845, %v2291
        %v2850 = vmul.f32 %v2848, %v2291
        %v2851 = vadd.f32 %v2849, 1e-05
        %v2852 = vadd.f32 %v2850, 1e-05
        %v2853 = vrsqrt.pop %v2851
        %v2854 = vrsqrt.pop %v2852
        %v2855 = vmul.f32 %v2839, %v2853
        %v2856 = vmul.f32 %v2840, %v2854
        %2857 = vst.msk [vmem:[#allocation2] sm:$0xff] %vm378, %v2855
        %2858 = vst.msk [vmem:[#allocation2 + $0x8] sm:$0xff] %vm378, %v2856
        %p2859 = scmp.eq.s32.totalorder %s23, 1
        // Predicated region
        $region49: #{tpu_custom_call.1} parent=43 // pred_check
          %p2860 = pneg %p2859
        $region50: #{tpu_custom_call.1} parent=43 // pred_check_branch
          %2862 = sbr.rel (%p2860) target = $region52
        $region51: #{tpu_custom_call.1} parent=43 // pred_region
          %2863 = vst.msk [vmem:[#allocation4] sm:$0xff] %vm378, %v2855
          %2864 = vst.msk [vmem:[#allocation4 + $0x8] sm:$0xff] %vm378, %v2856
        $region52: #{tpu_custom_call.1} parent=43 // pred_fallthru
          _
        // Predicated region
        $region53: #{tpu_custom_call.1} parent=43 // pred_check
          %p2865 = pneg %p204
        $region54: #{tpu_custom_call.1} parent=43 // pred_check_branch
          %2867 = sbr.rel (%p2865) target = $region56
        $region55: #{tpu_custom_call.1} parent=43 // pred_region
          %s2868 = smul.u32 2, %s22
          %s2870 = ssub.s32 256, 256
          %2871 = vsyncadd [#allocation5], %s2870
          %s2872 = smul.addr %s2868, 128
          %s2873 = scalar_lea.hbm %s6, %s2872
          %s2874 = sshll.u32 [#allocation4], 4
          %s2875 = int_to_ptr.vmem [resolvable:$true] %s2874
          %2880 = dma.vmem_to_hbm [thread:$0]  %s2875, 256, %s2873, [#allocation5], 128, 128, 8
        $region56: #{tpu_custom_call.1} parent=43 // pred_fallthru
          _
        // Predicated region
        $region57: #{tpu_custom_call.1} parent=43 // pred_check
          %p2881 = pneg %p204
        $region58: #{tpu_custom_call.1} parent=43 // pred_check_branch
          %2883 = sbr.rel (%p2881) target = $region60
        $region59: #{tpu_custom_call.1} parent=43 // pred_region
          %2884 = dma.done [#allocation5], 256
        $region60: #{tpu_custom_call.1} parent=43 // pred_fallthru
          _
      $region44: #{tpu_custom_call.1} parent=5 // pred_fallthru
        _
      %p2885 = scmp.le.s32.totalorder 2, %s13
      // Predicated region
      $region61: #{tpu_custom_call.1} parent=5 // pred_check
        %p2886 = pneg %p2885
      $region62: #{tpu_custom_call.1} parent=5 // pred_check_branch
        %2888 = sbr.rel (%p2886) target = $region64
      $region63: #{tpu_custom_call.1} parent=5 // pred_region
        %s2889 = ssub.s32 %s13, 2
      $region64: #{tpu_custom_call.1} parent=5 // pred_fallthru
        _
    $region6: #{tpu_custom_call.1} parent=1 // loop_footer
      %s17 = sadd.s32 1, %s13
    $region7: #{tpu_custom_call.1} parent=1 // loop_footer_branch
      %12 = sbr.rel target = $region3
    $region8: #{tpu_custom_call.1} parent=1 // loop_exit
      _
    %2890 = vsyncpa [#allocation5], 1
    %s2891 = scalar_lea.sflag [#allocation5], 1
    %2892 = vsyncpa %s2891, 1

</llo_original>
